<compile_context>
chip_gen: v7x
topology: tpu7x:2x2x1
jax: 0.10.0
libtpu: 0.0.40
codegen_flags: <defaults>
</compile_context>

<pallas_src>
import functools

import numpy as np
import jax
import jax.numpy as jnp
from jax import lax
from jax.experimental import pallas as pl
from jax.experimental.pallas import tpu as pltpu


def _basic_block_kernel(xpf_ref, w1_ref, b1_ref, w2_ref, b2_ref, mask_ref, sel_ref,
                        out_ref, hpad_ref, *, N, H, W, Cin, Chid, Cout):
    """Fused conv1+ReLU -> conv2+ReLU -> maxpool(2,2).

    xpf_ref : (Cin,  F)  zero-padded input, channels-first, flat over (N, Hp, Wp).
    w1_ref  : (3, 3, Chid, Cin)   conv1 weights, tap-major, (out, in) per tap.
    b1_ref  : (Chid, 1)
    w2_ref  : (3, 3, Cout, Chid)  conv2 weights.
    b2_ref  : (Cout, 1)
    mask_ref: (1, L) 1.0 where a flat base position is a valid (interior) output.
    sel_ref : (Lm, N*Ho*Wo) one-hot pool-anchor selection matrix.
    out_ref : (Cout, N*Ho*Wo) pooled output (lane-dense).
    hpad_ref: (Chid, F) VMEM scratch holding the zero-padded intermediate h.
    """
    Hp, Wp = H + 2, W + 2
    F = N * Hp * Wp
    L = F - 2 * Wp - 2          # number of conv "base" positions computed per channel
    Lm = L - Wp - 1             # number of pool-anchor positions

    # ---- conv1: 9 lane-shifted-window matmuls on the MXU, f32 accumulation ----
    acc1 = jnp.zeros((Chid, L), jnp.float32)
    for dy in range(3):
        for dx in range(3):
            s = dy * Wp + dx
            acc1 = acc1 + jnp.dot(w1_ref[dy, dx], xpf_ref[:, s:s + L],
                                  preferred_element_type=jnp.float32)
    # bias + ReLU on VPU; zero out junk columns (positions that straddle image edges)
    h = jnp.maximum(acc1 + b1_ref[...], 0.0) * mask_ref[...]

    # ---- re-embed h as a zero-padded flat image (stays in VMEM) for conv2 ----
    hpad_ref[...] = jnp.zeros_like(hpad_ref)
    hpad_ref[:, Wp + 1:Wp + 1 + L] = h      # base position q -> padded position q+Wp+1

    # ---- conv2: same 9 lane-shifted matmuls ----
    acc2 = jnp.zeros((Cout, L), jnp.float32)
    for dy in range(3):
        for dx in range(3):
            s = dy * Wp + dx
            acc2 = acc2 + jnp.dot(w2_ref[dy, dx], hpad_ref[:, s:s + L],
                                  preferred_element_type=jnp.float32)
    r2 = jnp.maximum(acc2 + b2_ref[...], 0.0)

    # ---- 2x2/2 maxpool: 4-way lane-shifted max, then one-hot selection matmul ----
    m = jnp.maximum(jnp.maximum(r2[:, 0:Lm], r2[:, 1:1 + Lm]),
                    jnp.maximum(r2[:, Wp:Wp + Lm], r2[:, Wp + 1:Wp + 1 + Lm]))
    out_ref[...] = jnp.dot(m, sel_ref[...],
                           preferred_element_type=jnp.float32).astype(out_ref.dtype)


def _pool_and_mask_constants(N, H, W):
    """Compile-time constants: validity mask over base positions and the pool selector."""
    Hp, Wp = H + 2, W + 2
    F = N * Hp * Wp
    L = F - 2 * Wp - 2
    Lm = L - Wp - 1
    Ho, Wo = H // 2, W // 2

    q = np.arange(L)
    r = (q % (Hp * Wp)) // Wp
    c = q % Wp
    mask = ((r < H) & (c < W)).astype(np.float32).reshape(1, L)

    sel = np.zeros((Lm, N * Ho * Wo), np.float32)
    for n in range(N):
        for yo in range(Ho):
            for xo in range(Wo):
                j = (n * Ho + yo) * Wo + xo
                sel[n * Hp * Wp + 2 * yo * Wp + 2 * xo, j] = 1.0
    return mask, sel


@jax.jit
def basic_block(x_nchw, w1_hwio, b1, w2_hwio, b2):
    """Forward pass of BasicBlock. x_nchw: (N, Cin, H, W) -> (N, Cout, H//2, W//2)."""
    N, Cin, H, W = x_nchw.shape
    Chid = w1_hwio.shape[-1]
    Cout = w2_hwio.shape[-1]
    Hp, Wp = H + 2, W + 2
    F = N * Hp * Wp
    Ho, Wo = H // 2, W // 2

    mask_np, sel_np = _pool_and_mask_constants(N, H, W)
    mask = jnp.asarray(mask_np)
    sel = jnp.asarray(sel_np)

    # Boundary glue (one tiny fused XLA op, ~10 KB): channels-first, zero-pad, flatten.
    xpf = jnp.pad(jnp.transpose(x_nchw, (1, 0, 2, 3)),
                  ((0, 0), (0, 0), (1, 1), (1, 1))).reshape(Cin, F)
    w1t = jnp.transpose(w1_hwio, (0, 1, 3, 2))   # (3, 3, Chid, Cin)
    w2t = jnp.transpose(w2_hwio, (0, 1, 3, 2))   # (3, 3, Cout, Chid)

    kernel = functools.partial(_basic_block_kernel, N=N, H=H, W=W,
                               Cin=Cin, Chid=Chid, Cout=Cout)
    vmem = pl.BlockSpec(memory_space=pltpu.MemorySpace.VMEM)

    out_flat = pl.pallas_call(
        kernel,
        out_shape=jax.ShapeDtypeStruct((Cout, N * Ho * Wo), jnp.float32),
        in_specs=[vmem] * 7,
        out_specs=vmem,
        scratch_shapes=[pltpu.VMEM((Chid, F), jnp.float32)],   # zero-padded h
    )(xpf, w1t, b1.reshape(-1, 1), w2t, b2.reshape(-1, 1), mask, sel)

    # (Cout, N*Ho*Wo) -> (N, Cout, Ho, Wo); tiny output glue.
    return jnp.transpose(out_flat.reshape(Cout, N, Ho, Wo), (1, 0, 2, 3))


def _reference(x_nchw, w1, b1, w2, b2):
    """Pure-JAX reference using lax convs (for validation)."""
    x = jnp.transpose(x_nchw, (0, 2, 3, 1))
    dn = ('NHWC', 'HWIO', 'NHWC')
    h = lax.conv_general_dilated(x, w1, (1, 1), 'SAME', dimension_numbers=dn) + b1
    h = jnp.maximum(h, 0.0)
    y = lax.conv_general_dilated(h, w2, (1, 1), 'SAME', dimension_numbers=dn) + b2
    y = jnp.maximum(y, 0.0)
    y = lax.reduce_window(y, -jnp.inf, lax.max, (1, 2, 2, 1), (1, 2, 2, 1), 'VALID')
    return jnp.transpose(y, (0, 3, 1, 2))


if __name__ == "__main__":
    key = jax.random.PRNGKey(0)
    N, Cin, H, W = 2, 4, 16, 16
    Chid, Cout = 8, 4

    k1, k2, k3, k4, k5 = jax.random.split(key, 5)
    x = jax.random.normal(k1, (N, Cin, H, W), jnp.float32)
    w1 = 0.1 * jax.random.normal(k2, (3, 3, Cin, Chid), jnp.float32)   # HWIO
    b1 = 0.1 * jax.random.normal(k3, (Chid,), jnp.float32)
    w2 = 0.1 * jax.random.normal(k4, (3, 3, Chid, Cout), jnp.float32)  # HWIO
    b2 = 0.1 * jax.random.normal(k5, (Cout,), jnp.float32)

    out = jax.block_until_ready(basic_block(x, w1, b1, w2, b2))
    assert out.shape == (N, Cout, H // 2, W // 2), out.shape

    ref = jax.block_until_ready(_reference(x, w1, b1, w2, b2))
    if not jnp.allclose(out, ref, atol=1e-4, rtol=1e-4):
        raise AssertionError("Pallas BasicBlock does not match reference")

    print("KERNEL_OK")
</pallas_src>

<mosaic_0001>
module attributes {stable_mosaic.version = 11 : i64} {
  func.func @_basic_block_kernel(%arg0: memref<4x648xf32, #tpu.memory_space<vmem>>, %arg1: memref<3x3x8x4xf32, #tpu.memory_space<vmem>>, %arg2: memref<8x1xf32, #tpu.memory_space<vmem>>, %arg3: memref<3x3x4x8xf32, #tpu.memory_space<vmem>>, %arg4: memref<4x1xf32, #tpu.memory_space<vmem>>, %arg5: memref<1x610xf32, #tpu.memory_space<vmem>>, %arg6: memref<591x128xf32, #tpu.memory_space<vmem>>, %arg7: memref<4x128xf32, #tpu.memory_space<vmem>>, %arg8: memref<8x648xf32, #tpu.memory_space<vmem>>) attributes {dimension_semantics = [], scalar_prefetch = 0 : i64, scratch_operands = 1 : i64, tpu.core_type = #tpu.core_type<tc>} {
    %cst = arith.constant 0.000000e+00 : f32
    %0 = vector.broadcast %cst : f32 to vector<8x610xf32>
    %c0 = arith.constant 0 : index
    %c0_0 = arith.constant 0 : index
    %c0_1 = arith.constant 0 : index
    %c0_2 = arith.constant 0 : index
    %1 = vector.load %arg1[%c0, %c0_0, %c0_1, %c0_2] : memref<3x3x8x4xf32, #tpu.memory_space<vmem>>, vector<1x1x8x4xf32>
    %2 = vector.shape_cast %1 : vector<1x1x8x4xf32> to vector<8x4xf32>
    %c0_3 = arith.constant 0 : index
    %c0_4 = arith.constant 0 : index
    %3 = vector.load %arg0[%c0_3, %c0_4] : memref<4x648xf32, #tpu.memory_space<vmem>>, vector<4x610xf32>
    %cst_5 = arith.constant dense<0.000000e+00> : vector<8x610xf32>
    %4 = tpu.matmul %2, %3, %cst_5 {dimension_numbers = #tpu.dot_dimension_numbers<[1], [0], [0], [1], [0, 0, 1, 1], [], []>} : vector<8x4xf32>, vector<4x610xf32>, vector<8x610xf32> -> vector<8x610xf32>
    %5 = arith.addf %0, %4 : vector<8x610xf32>
    %c0_6 = arith.constant 0 : index
    %c1 = arith.constant 1 : index
    %c0_7 = arith.constant 0 : index
    %c0_8 = arith.constant 0 : index
    %6 = vector.load %arg1[%c0_6, %c1, %c0_7, %c0_8] : memref<3x3x8x4xf32, #tpu.memory_space<vmem>>, vector<1x1x8x4xf32>
    %7 = vector.shape_cast %6 : vector<1x1x8x4xf32> to vector<8x4xf32>
    %c0_9 = arith.constant 0 : index
    %c1_10 = arith.constant 1 : index
    %8 = vector.load %arg0[%c0_9, %c1_10] : memref<4x648xf32, #tpu.memory_space<vmem>>, vector<4x610xf32>
    %cst_11 = arith.constant dense<0.000000e+00> : vector<8x610xf32>
    %9 = tpu.matmul %7, %8, %cst_11 {dimension_numbers = #tpu.dot_dimension_numbers<[1], [0], [0], [1], [0, 0, 1, 1], [], []>} : vector<8x4xf32>, vector<4x610xf32>, vector<8x610xf32> -> vector<8x610xf32>
    %10 = arith.addf %5, %9 : vector<8x610xf32>
    %c0_12 = arith.constant 0 : index
    %c2 = arith.constant 2 : index
    %c0_13 = arith.constant 0 : index
    %c0_14 = arith.constant 0 : index
    %11 = vector.load %arg1[%c0_12, %c2, %c0_13, %c0_14] : memref<3x3x8x4xf32, #tpu.memory_space<vmem>>, vector<1x1x8x4xf32>
    %12 = vector.shape_cast %11 : vector<1x1x8x4xf32> to vector<8x4xf32>
    %c0_15 = arith.constant 0 : index
    %c2_16 = arith.constant 2 : index
    %13 = vector.load %arg0[%c0_15, %c2_16] : memref<4x648xf32, #tpu.memory_space<vmem>>, vector<4x610xf32>
    %cst_17 = arith.constant dense<0.000000e+00> : vector<8x610xf32>
    %14 = tpu.matmul %12, %13, %cst_17 {dimension_numbers = #tpu.dot_dimension_numbers<[1], [0], [0], [1], [0, 0, 1, 1], [], []>} : vector<8x4xf32>, vector<4x610xf32>, vector<8x610xf32> -> vector<8x610xf32>
    %15 = arith.addf %10, %14 : vector<8x610xf32>
    %c1_18 = arith.constant 1 : index
    %c0_19 = arith.constant 0 : index
    %c0_20 = arith.constant 0 : index
    %c0_21 = arith.constant 0 : index
    %16 = vector.load %arg1[%c1_18, %c0_19, %c0_20, %c0_21] : memref<3x3x8x4xf32, #tpu.memory_space<vmem>>, vector<1x1x8x4xf32>
    %17 = vector.shape_cast %16 : vector<1x1x8x4xf32> to vector<8x4xf32>
    %c0_22 = arith.constant 0 : index
    %c18 = arith.constant 18 : index
    %18 = vector.load %arg0[%c0_22, %c18] : memref<4x648xf32, #tpu.memory_space<vmem>>, vector<4x610xf32>
    %cst_23 = arith.constant dense<0.000000e+00> : vector<8x610xf32>
    %19 = tpu.matmul %17, %18, %cst_23 {dimension_numbers = #tpu.dot_dimension_numbers<[1], [0], [0], [1], [0, 0, 1, 1], [], []>} : vector<8x4xf32>, vector<4x610xf32>, vector<8x610xf32> -> vector<8x610xf32>
    %20 = arith.addf %15, %19 : vector<8x610xf32>
    %c1_24 = arith.constant 1 : index
    %c1_25 = arith.constant 1 : index
    %c0_26 = arith.constant 0 : index
    %c0_27 = arith.constant 0 : index
    %21 = vector.load %arg1[%c1_24, %c1_25, %c0_26, %c0_27] : memref<3x3x8x4xf32, #tpu.memory_space<vmem>>, vector<1x1x8x4xf32>
    %22 = vector.shape_cast %21 : vector<1x1x8x4xf32> to vector<8x4xf32>
    %c0_28 = arith.constant 0 : index
    %c19 = arith.constant 19 : index
    %23 = vector.load %arg0[%c0_28, %c19] : memref<4x648xf32, #tpu.memory_space<vmem>>, vector<4x610xf32>
    %cst_29 = arith.constant dense<0.000000e+00> : vector<8x610xf32>
    %24 = tpu.matmul %22, %23, %cst_29 {dimension_numbers = #tpu.dot_dimension_numbers<[1], [0], [0], [1], [0, 0, 1, 1], [], []>} : vector<8x4xf32>, vector<4x610xf32>, vector<8x610xf32> -> vector<8x610xf32>
    %25 = arith.addf %20, %24 : vector<8x610xf32>
    %c1_30 = arith.constant 1 : index
    %c2_31 = arith.constant 2 : index
    %c0_32 = arith.constant 0 : index
    %c0_33 = arith.constant 0 : index
    %26 = vector.load %arg1[%c1_30, %c2_31, %c0_32, %c0_33] : memref<3x3x8x4xf32, #tpu.memory_space<vmem>>, vector<1x1x8x4xf32>
    %27 = vector.shape_cast %26 : vector<1x1x8x4xf32> to vector<8x4xf32>
    %c0_34 = arith.constant 0 : index
    %c20 = arith.constant 20 : index
    %28 = vector.load %arg0[%c0_34, %c20] : memref<4x648xf32, #tpu.memory_space<vmem>>, vector<4x610xf32>
    %cst_35 = arith.constant dense<0.000000e+00> : vector<8x610xf32>
    %29 = tpu.matmul %27, %28, %cst_35 {dimension_numbers = #tpu.dot_dimension_numbers<[1], [0], [0], [1], [0, 0, 1, 1], [], []>} : vector<8x4xf32>, vector<4x610xf32>, vector<8x610xf32> -> vector<8x610xf32>
    %30 = arith.addf %25, %29 : vector<8x610xf32>
    %c2_36 = arith.constant 2 : index
    %c0_37 = arith.constant 0 : index
    %c0_38 = arith.constant 0 : index
    %c0_39 = arith.constant 0 : index
    %31 = vector.load %arg1[%c2_36, %c0_37, %c0_38, %c0_39] : memref<3x3x8x4xf32, #tpu.memory_space<vmem>>, vector<1x1x8x4xf32>
    %32 = vector.shape_cast %31 : vector<1x1x8x4xf32> to vector<8x4xf32>
    %c0_40 = arith.constant 0 : index
    %c36 = arith.constant 36 : index
    %33 = vector.load %arg0[%c0_40, %c36] : memref<4x648xf32, #tpu.memory_space<vmem>>, vector<4x610xf32>
    %cst_41 = arith.constant dense<0.000000e+00> : vector<8x610xf32>
    %34 = tpu.matmul %32, %33, %cst_41 {dimension_numbers = #tpu.dot_dimension_numbers<[1], [0], [0], [1], [0, 0, 1, 1], [], []>} : vector<8x4xf32>, vector<4x610xf32>, vector<8x610xf32> -> vector<8x610xf32>
    %35 = arith.addf %30, %34 : vector<8x610xf32>
    %c2_42 = arith.constant 2 : index
    %c1_43 = arith.constant 1 : index
    %c0_44 = arith.constant 0 : index
    %c0_45 = arith.constant 0 : index
    %36 = vector.load %arg1[%c2_42, %c1_43, %c0_44, %c0_45] : memref<3x3x8x4xf32, #tpu.memory_space<vmem>>, vector<1x1x8x4xf32>
    %37 = vector.shape_cast %36 : vector<1x1x8x4xf32> to vector<8x4xf32>
    %c0_46 = arith.constant 0 : index
    %c37 = arith.constant 37 : index
    %38 = vector.load %arg0[%c0_46, %c37] : memref<4x648xf32, #tpu.memory_space<vmem>>, vector<4x610xf32>
    %cst_47 = arith.constant dense<0.000000e+00> : vector<8x610xf32>
    %39 = tpu.matmul %37, %38, %cst_47 {dimension_numbers = #tpu.dot_dimension_numbers<[1], [0], [0], [1], [0, 0, 1, 1], [], []>} : vector<8x4xf32>, vector<4x610xf32>, vector<8x610xf32> -> vector<8x610xf32>
    %40 = arith.addf %35, %39 : vector<8x610xf32>
    %c2_48 = arith.constant 2 : index
    %c2_49 = arith.constant 2 : index
    %c0_50 = arith.constant 0 : index
    %c0_51 = arith.constant 0 : index
    %41 = vector.load %arg1[%c2_48, %c2_49, %c0_50, %c0_51] : memref<3x3x8x4xf32, #tpu.memory_space<vmem>>, vector<1x1x8x4xf32>
    %42 = vector.shape_cast %41 : vector<1x1x8x4xf32> to vector<8x4xf32>
    %c0_52 = arith.constant 0 : index
    %c38 = arith.constant 38 : index
    %43 = vector.load %arg0[%c0_52, %c38] : memref<4x648xf32, #tpu.memory_space<vmem>>, vector<4x610xf32>
    %cst_53 = arith.constant dense<0.000000e+00> : vector<8x610xf32>
    %44 = tpu.matmul %42, %43, %cst_53 {dimension_numbers = #tpu.dot_dimension_numbers<[1], [0], [0], [1], [0, 0, 1, 1], [], []>} : vector<8x4xf32>, vector<4x610xf32>, vector<8x610xf32> -> vector<8x610xf32>
    %45 = arith.addf %40, %44 : vector<8x610xf32>
    %c0_54 = arith.constant 0 : index
    %c0_55 = arith.constant 0 : index
    %46 = vector.load %arg2[%c0_54, %c0_55] : memref<8x1xf32, #tpu.memory_space<vmem>>, vector<8x1xf32>
    %47 = vector.broadcast %46 : vector<8x1xf32> to vector<8x610xf32>
    %48 = arith.addf %45, %47 : vector<8x610xf32>
    %cst_56 = arith.constant 0.000000e+00 : f32
    %49 = vector.broadcast %cst_56 : f32 to vector<8x610xf32>
    %50 = arith.maximumf %48, %49 : vector<8x610xf32>
    %c0_57 = arith.constant 0 : index
    %c0_58 = arith.constant 0 : index
    %51 = vector.load %arg5[%c0_57, %c0_58] : memref<1x610xf32, #tpu.memory_space<vmem>>, vector<1x610xf32>
    %52 = vector.broadcast %51 : vector<1x610xf32> to vector<8x610xf32>
    %53 = arith.mulf %50, %52 : vector<8x610xf32>
    %cst_59 = arith.constant 0.000000e+00 : f32
    %54 = vector.broadcast %cst_59 : f32 to vector<8x648xf32>
    %c0_60 = arith.constant 0 : index
    %c0_61 = arith.constant 0 : index
    %55 = vector.load %arg8[%c0_60, %c0_61] : memref<8x648xf32, #tpu.memory_space<vmem>>, vector<8x648xf32>
    tpu.vector_store %arg8[%c0_60, %c0_61], %54 {strides = array<i32>} : memref<8x648xf32, #tpu.memory_space<vmem>>, vector<8x648xf32>,
    %c0_62 = arith.constant 0 : index
    %c19_63 = arith.constant 19 : index
    %56 = vector.load %arg8[%c0_62, %c19_63] : memref<8x648xf32, #tpu.memory_space<vmem>>, vector<8x610xf32>
    tpu.vector_store %arg8[%c0_62, %c19_63], %53 {strides = array<i32>} : memref<8x648xf32, #tpu.memory_space<vmem>>, vector<8x610xf32>,
    %cst_64 = arith.constant 0.000000e+00 : f32
    %57 = vector.broadcast %cst_64 : f32 to vector<4x610xf32>
    %c0_65 = arith.constant 0 : index
    %c0_66 = arith.constant 0 : index
    %c0_67 = arith.constant 0 : index
    %c0_68 = arith.constant 0 : index
    %58 = vector.load %arg3[%c0_65, %c0_66, %c0_67, %c0_68] : memref<3x3x4x8xf32, #tpu.memory_space<vmem>>, vector<1x1x4x8xf32>
    %59 = vector.shape_cast %58 : vector<1x1x4x8xf32> to vector<4x8xf32>
    %c0_69 = arith.constant 0 : index
    %c0_70 = arith.constant 0 : index
    %60 = vector.load %arg8[%c0_69, %c0_70] : memref<8x648xf32, #tpu.memory_space<vmem>>, vector<8x610xf32>
    %cst_71 = arith.constant dense<0.000000e+00> : vector<4x610xf32>
    %61 = tpu.matmul %59, %60, %cst_71 {dimension_numbers = #tpu.dot_dimension_numbers<[1], [0], [0], [1], [0, 0, 1, 1], [], []>} : vector<4x8xf32>, vector<8x610xf32>, vector<4x610xf32> -> vector<4x610xf32>
    %62 = arith.addf %57, %61 : vector<4x610xf32>
    %c0_72 = arith.constant 0 : index
    %c1_73 = arith.constant 1 : index
    %c0_74 = arith.constant 0 : index
    %c0_75 = arith.constant 0 : index
    %63 = vector.load %arg3[%c0_72, %c1_73, %c0_74, %c0_75] : memref<3x3x4x8xf32, #tpu.memory_space<vmem>>, vector<1x1x4x8xf32>
    %64 = vector.shape_cast %63 : vector<1x1x4x8xf32> to vector<4x8xf32>
    %c0_76 = arith.constant 0 : index
    %c1_77 = arith.constant 1 : index
    %65 = vector.load %arg8[%c0_76, %c1_77] : memref<8x648xf32, #tpu.memory_space<vmem>>, vector<8x610xf32>
    %cst_78 = arith.constant dense<0.000000e+00> : vector<4x610xf32>
    %66 = tpu.matmul %64, %65, %cst_78 {dimension_numbers = #tpu.dot_dimension_numbers<[1], [0], [0], [1], [0, 0, 1, 1], [], []>} : vector<4x8xf32>, vector<8x610xf32>, vector<4x610xf32> -> vector<4x610xf32>
    %67 = arith.addf %62, %66 : vector<4x610xf32>
    %c0_79 = arith.constant 0 : index
    %c2_80 = arith.constant 2 : index
    %c0_81 = arith.constant 0 : index
    %c0_82 = arith.constant 0 : index
    %68 = vector.load %arg3[%c0_79, %c2_80, %c0_81, %c0_82] : memref<3x3x4x8xf32, #tpu.memory_space<vmem>>, vector<1x1x4x8xf32>
    %69 = vector.shape_cast %68 : vector<1x1x4x8xf32> to vector<4x8xf32>
    %c0_83 = arith.constant 0 : index
    %c2_84 = arith.constant 2 : index
    %70 = vector.load %arg8[%c0_83, %c2_84] : memref<8x648xf32, #tpu.memory_space<vmem>>, vector<8x610xf32>
    %cst_85 = arith.constant dense<0.000000e+00> : vector<4x610xf32>
    %71 = tpu.matmul %69, %70, %cst_85 {dimension_numbers = #tpu.dot_dimension_numbers<[1], [0], [0], [1], [0, 0, 1, 1], [], []>} : vector<4x8xf32>, vector<8x610xf32>, vector<4x610xf32> -> vector<4x610xf32>
    %72 = arith.addf %67, %71 : vector<4x610xf32>
    %c1_86 = arith.constant 1 : index
    %c0_87 = arith.constant 0 : index
    %c0_88 = arith.constant 0 : index
    %c0_89 = arith.constant 0 : index
    %73 = vector.load %arg3[%c1_86, %c0_87, %c0_88, %c0_89] : memref<3x3x4x8xf32, #tpu.memory_space<vmem>>, vector<1x1x4x8xf32>
    %74 = vector.shape_cast %73 : vector<1x1x4x8xf32> to vector<4x8xf32>
    %c0_90 = arith.constant 0 : index
    %c18_91 = arith.constant 18 : index
    %75 = vector.load %arg8[%c0_90, %c18_91] : memref<8x648xf32, #tpu.memory_space<vmem>>, vector<8x610xf32>
    %cst_92 = arith.constant dense<0.000000e+00> : vector<4x610xf32>
    %76 = tpu.matmul %74, %75, %cst_92 {dimension_numbers = #tpu.dot_dimension_numbers<[1], [0], [0], [1], [0, 0, 1, 1], [], []>} : vector<4x8xf32>, vector<8x610xf32>, vector<4x610xf32> -> vector<4x610xf32>
    %77 = arith.addf %72, %76 : vector<4x610xf32>
    %c1_93 = arith.constant 1 : index
    %c1_94 = arith.constant 1 : index
    %c0_95 = arith.constant 0 : index
    %c0_96 = arith.constant 0 : index
    %78 = vector.load %arg3[%c1_93, %c1_94, %c0_95, %c0_96] : memref<3x3x4x8xf32, #tpu.memory_space<vmem>>, vector<1x1x4x8xf32>
    %79 = vector.shape_cast %78 : vector<1x1x4x8xf32> to vector<4x8xf32>
    %c0_97 = arith.constant 0 : index
    %c19_98 = arith.constant 19 : index
    %80 = vector.load %arg8[%c0_97, %c19_98] : memref<8x648xf32, #tpu.memory_space<vmem>>, vector<8x610xf32>
    %cst_99 = arith.constant dense<0.000000e+00> : vector<4x610xf32>
    %81 = tpu.matmul %79, %80, %cst_99 {dimension_numbers = #tpu.dot_dimension_numbers<[1], [0], [0], [1], [0, 0, 1, 1], [], []>} : vector<4x8xf32>, vector<8x610xf32>, vector<4x610xf32> -> vector<4x610xf32>
    %82 = arith.addf %77, %81 : vector<4x610xf32>
    %c1_100 = arith.constant 1 : index
    %c2_101 = arith.constant 2 : index
    %c0_102 = arith.constant 0 : index
    %c0_103 = arith.constant 0 : index
    %83 = vector.load %arg3[%c1_100, %c2_101, %c0_102, %c0_103] : memref<3x3x4x8xf32, #tpu.memory_space<vmem>>, vector<1x1x4x8xf32>
    %84 = vector.shape_cast %83 : vector<1x1x4x8xf32> to vector<4x8xf32>
    %c0_104 = arith.constant 0 : index
    %c20_105 = arith.constant 20 : index
    %85 = vector.load %arg8[%c0_104, %c20_105] : memref<8x648xf32, #tpu.memory_space<vmem>>, vector<8x610xf32>
    %cst_106 = arith.constant dense<0.000000e+00> : vector<4x610xf32>
    %86 = tpu.matmul %84, %85, %cst_106 {dimension_numbers = #tpu.dot_dimension_numbers<[1], [0], [0], [1], [0, 0, 1, 1], [], []>} : vector<4x8xf32>, vector<8x610xf32>, vector<4x610xf32> -> vector<4x610xf32>
    %87 = arith.addf %82, %86 : vector<4x610xf32>
    %c2_107 = arith.constant 2 : index
    %c0_108 = arith.constant 0 : index
    %c0_109 = arith.constant 0 : index
    %c0_110 = arith.constant 0 : index
    %88 = vector.load %arg3[%c2_107, %c0_108, %c0_109, %c0_110] : memref<3x3x4x8xf32, #tpu.memory_space<vmem>>, vector<1x1x4x8xf32>
    %89 = vector.shape_cast %88 : vector<1x1x4x8xf32> to vector<4x8xf32>
    %c0_111 = arith.constant 0 : index
    %c36_112 = arith.constant 36 : index
    %90 = vector.load %arg8[%c0_111, %c36_112] : memref<8x648xf32, #tpu.memory_space<vmem>>, vector<8x610xf32>
    %cst_113 = arith.constant dense<0.000000e+00> : vector<4x610xf32>
    %91 = tpu.matmul %89, %90, %cst_113 {dimension_numbers = #tpu.dot_dimension_numbers<[1], [0], [0], [1], [0, 0, 1, 1], [], []>} : vector<4x8xf32>, vector<8x610xf32>, vector<4x610xf32> -> vector<4x610xf32>
    %92 = arith.addf %87, %91 : vector<4x610xf32>
    %c2_114 = arith.constant 2 : index
    %c1_115 = arith.constant 1 : index
    %c0_116 = arith.constant 0 : index
    %c0_117 = arith.constant 0 : index
    %93 = vector.load %arg3[%c2_114, %c1_115, %c0_116, %c0_117] : memref<3x3x4x8xf32, #tpu.memory_space<vmem>>, vector<1x1x4x8xf32>
    %94 = vector.shape_cast %93 : vector<1x1x4x8xf32> to vector<4x8xf32>
    %c0_118 = arith.constant 0 : index
    %c37_119 = arith.constant 37 : index
    %95 = vector.load %arg8[%c0_118, %c37_119] : memref<8x648xf32, #tpu.memory_space<vmem>>, vector<8x610xf32>
    %cst_120 = arith.constant dense<0.000000e+00> : vector<4x610xf32>
    %96 = tpu.matmul %94, %95, %cst_120 {dimension_numbers = #tpu.dot_dimension_numbers<[1], [0], [0], [1], [0, 0, 1, 1], [], []>} : vector<4x8xf32>, vector<8x610xf32>, vector<4x610xf32> -> vector<4x610xf32>
    %97 = arith.addf %92, %96 : vector<4x610xf32>
    %c2_121 = arith.constant 2 : index
    %c2_122 = arith.constant 2 : index
    %c0_123 = arith.constant 0 : index
    %c0_124 = arith.constant 0 : index
    %98 = vector.load %arg3[%c2_121, %c2_122, %c0_123, %c0_124] : memref<3x3x4x8xf32, #tpu.memory_space<vmem>>, vector<1x1x4x8xf32>
    %99 = vector.shape_cast %98 : vector<1x1x4x8xf32> to vector<4x8xf32>
    %c0_125 = arith.constant 0 : index
    %c38_126 = arith.constant 38 : index
    %100 = vector.load %arg8[%c0_125, %c38_126] : memref<8x648xf32, #tpu.memory_space<vmem>>, vector<8x610xf32>
    %cst_127 = arith.constant dense<0.000000e+00> : vector<4x610xf32>
    %101 = tpu.matmul %99, %100, %cst_127 {dimension_numbers = #tpu.dot_dimension_numbers<[1], [0], [0], [1], [0, 0, 1, 1], [], []>} : vector<4x8xf32>, vector<8x610xf32>, vector<4x610xf32> -> vector<4x610xf32>
    %102 = arith.addf %97, %101 : vector<4x610xf32>
    %c0_128 = arith.constant 0 : index
    %c0_129 = arith.constant 0 : index
    %103 = vector.load %arg4[%c0_128, %c0_129] : memref<4x1xf32, #tpu.memory_space<vmem>>, vector<4x1xf32>
    %104 = vector.broadcast %103 : vector<4x1xf32> to vector<4x610xf32>
    %105 = arith.addf %102, %104 : vector<4x610xf32>
    %cst_130 = arith.constant 0.000000e+00 : f32
    %106 = vector.broadcast %cst_130 : f32 to vector<4x610xf32>
    %107 = arith.maximumf %105, %106 : vector<4x610xf32>
    %108 = vector.extract_strided_slice %107 {offsets = [0, 0], sizes = [4, 591], strides = [1, 1]} : vector<4x610xf32> to vector<4x591xf32>
    %109 = vector.extract_strided_slice %107 {offsets = [0, 1], sizes = [4, 591], strides = [1, 1]} : vector<4x610xf32> to vector<4x591xf32>
    %110 = arith.maximumf %108, %109 : vector<4x591xf32>
    %111 = vector.extract_strided_slice %107 {offsets = [0, 18], sizes = [4, 591], strides = [1, 1]} : vector<4x610xf32> to vector<4x591xf32>
    %112 = vector.extract_strided_slice %107 {offsets = [0, 19], sizes = [4, 591], strides = [1, 1]} : vector<4x610xf32> to vector<4x591xf32>
    %113 = arith.maximumf %111, %112 : vector<4x591xf32>
    %114 = arith.maximumf %110, %113 : vector<4x591xf32>
    %c0_131 = arith.constant 0 : index
    %c0_132 = arith.constant 0 : index
    %115 = vector.load %arg6[%c0_131, %c0_132] : memref<591x128xf32, #tpu.memory_space<vmem>>, vector<591x128xf32>
    %cst_133 = arith.constant dense<0.000000e+00> : vector<4x128xf32>
    %116 = tpu.matmul %114, %115, %cst_133 {dimension_numbers = #tpu.dot_dimension_numbers<[1], [0], [0], [1], [0, 0, 1, 1], [], []>} : vector<4x591xf32>, vector<591x128xf32>, vector<4x128xf32> -> vector<4x128xf32>
    %c0_134 = arith.constant 0 : index
    %c0_135 = arith.constant 0 : index
    %117 = vector.load %arg7[%c0_134, %c0_135] : memref<4x128xf32, #tpu.memory_space<vmem>>, vector<4x128xf32>
    tpu.vector_store %arg7[%c0_134, %c0_135], %116 {strides = array<i32>} : memref<4x128xf32, #tpu.memory_space<vmem>>, vector<4x128xf32>,
    return
  }
}

</mosaic_0001>

<llo_original>
// kernel: basic_block.1
$region0: #{basic_block.1}
  #allocation0 [shape = 'u32[]', space=smem, size = 0x4, offset = 0x4, fixed_abs, tag = 'smem constant byte address 0x4 - core index']
  #allocation1 [shape = 'u32[144,128]{1,0:T(1,128)}', space=vmem, size = 0x12000, scoped, tag = 'internal scratch']
  #allocation2 [shape = 'f32[8,648]{1,0:T(8,128)}', space=vmem, size = 0x6000, scoped, tag = 'scratch operand']
  %s0 = inlined_call_operand.vmem [shape: f32[4,648], index: 0, kind: input, shape index: {}]
  %s1 = inlined_call_operand.vmem [shape: f32[3,3,8,4], index: 1, kind: input, shape index: {}]
  %s2 = inlined_call_operand.vmem [shape: f32[8,1], index: 2, kind: input, shape index: {}]
  %s3 = inlined_call_operand.vmem [shape: f32[3,3,4,8], index: 3, kind: input, shape index: {}]
  %s4 = inlined_call_operand.vmem [shape: f32[4,1], index: 4, kind: input, shape index: {}]
  %s5 = inlined_call_operand.vmem [shape: f32[1,610], index: 5, kind: input, shape index: {}]
  %s6 = inlined_call_operand.vmem [shape: f32[591,128], index: 6, kind: input, shape index: {}]
  %s7 = inlined_call_operand.vmem [shape: f32[4,128], index: 7, kind: output, shape index: {}]
  %s8 = sld [smem:[#allocation0]]
  $region38: #{basic_block.1} parent=0
    _
  %s10 = ssub.s32 1, %s8
  %s11 = scalar_select 0, %s10, %s8
  // Predicated region
  $region2: #{basic_block.1} parent=0 // pred_check
    _
  $region3: #{basic_block.1} parent=0 // pred_check_branch
    %13 = sbr.rel (0) target = $region5
  $region4: #{basic_block.1} parent=0 // pred_region
    _
  $region5: #{basic_block.1} parent=0 // pred_fallthru
    _
  // Predicated region
  $region6: #{basic_block.1} parent=0 // pred_check
    _
  $region7: #{basic_block.1} parent=0 // pred_check_branch
    %15 = sbr.rel (0) target = $region9
  $region8: #{basic_block.1} parent=0 // pred_region
    _
  $region9: #{basic_block.1} parent=0 // pred_fallthru
    _
  // Predicated region
  $region10: #{basic_block.1} parent=0 // pred_check
    _
  $region11: #{basic_block.1} parent=0 // pred_check_branch
    %17 = sbr.rel (0) target = $region13
  $region12: #{basic_block.1} parent=0 // pred_region
    _
  $region13: #{basic_block.1} parent=0 // pred_fallthru
    _
  // Predicated region
  $region14: #{basic_block.1} parent=0 // pred_check
    _
  $region15: #{basic_block.1} parent=0 // pred_check_branch
    %19 = sbr.rel (0) target = $region17
  $region16: #{basic_block.1} parent=0 // pred_region
    _
  $region17: #{basic_block.1} parent=0 // pred_fallthru
    _
  // Predicated region
  $region18: #{basic_block.1} parent=0 // pred_check
    _
  $region19: #{basic_block.1} parent=0 // pred_check_branch
    %21 = sbr.rel (0) target = $region21
  $region20: #{basic_block.1} parent=0 // pred_region
    _
  $region21: #{basic_block.1} parent=0 // pred_fallthru
    _
  // Predicated region
  $region22: #{basic_block.1} parent=0 // pred_check
    _
  $region23: #{basic_block.1} parent=0 // pred_check_branch
    %23 = sbr.rel (0) target = $region25
  $region24: #{basic_block.1} parent=0 // pred_region
    _
  $region25: #{basic_block.1} parent=0 // pred_fallthru
    _
  // Predicated region
  $region26: #{basic_block.1} parent=0 // pred_check
    _
  $region27: #{basic_block.1} parent=0 // pred_check_branch
    %25 = sbr.rel (0) target = $region29
  $region28: #{basic_block.1} parent=0 // pred_region
    _
  $region29: #{basic_block.1} parent=0 // pred_fallthru
    _
  %v26 = vld [vmem:[%s1] sm:$0xff]
  %v27 = vld [vmem:[%s0] sm:$0xff]
  %v28 = vld [vmem:[%s0 + $0x8] sm:$0xff]
  %v29 = vld [vmem:[%s0 + $0x10] sm:$0xf]
  %s30 = scalar_lea.vmem %s1, 8
  %v31 = vld [vmem:[%s30] sm:$0xff]
  %v35 = vcombine.high %v27, %v27
  %v36 = vcombine.high %v28, %v28
  %37 = vrot.lane.b32.xlu0 %v27, 127
  %v38 = vpop.permute.xlu0 %37
  %39 = vrot.lane.b32.xlu0 %v35, 127
  %v40 = vpop.permute.xlu0 %39
  %41 = vrot.lane.b32.xlu0 %v28, 127
  %v42 = vpop.permute.xlu0 %41
  %43 = vrot.lane.b32.xlu0 %v36, 127
  %v44 = vpop.permute.xlu0 %43
  %45 = vrot.lane.b32.xlu0 %v29, 127
  %v46 = vpop.permute.xlu0 %45
  %vm47 = vcmask 1039360
  %v48 = vsel %vm47, %v38, %v40
  %v49 = vsel %vm47, %v40, %v42
  %v50 = vsel %vm47, %v42, %v44
  %v51 = vsel %vm47, %v44, %v46
  %vm52 = vcmask 31744
  %v54 = vsel %vm52, %v31, 0
  %vm56 = vcmask 1043456
  %v57 = vsel %vm56, %v48, 0
  %v59 = vsel %vm56, %v49, 0
  %v61 = vsel %vm56, %v50, 0
  %v63 = vsel %vm56, %v51, 0
  %v65 = vsel %vm56, %v46, 0
  %67 = vmatprep.subr.mxu0 %v59
  %68 = vmatpush1.msra.mxu0 %v57
  %69 = vmatprep.subr.mxu0 0.0
  %70 = vmatpush1.msra.mxu0 0.0
  %71 = vmatprep.subr.mxu0 0.0
  %72 = vmatpush1.msra.mxu0 0.0
  %73 = vmatprep.subr.mxu0 0.0
  %74 = vmatpush1.msra.mxu0 0.0
  %75 = vmatprep.subr.mxu0 0.0
  %76 = vmatpush1.msra.mxu0 0.0
  %77 = vmatprep.subr.mxu0 0.0
  %78 = vmatpush1.msra.mxu0 0.0
  %79 = vmatprep.subr.mxu0 0.0
  %80 = vmatpush1.msra.mxu0 0.0
  %81 = vmatprep.subr.mxu0 0.0
  %82 = vmatpush1.msra.mxu0 0.0
  %83 = vmatprep.subr.mxu0 0.0
  %84 = vmatpush1.msra.mxu0 0.0
  %85 = vmatprep.subr.mxu0 0.0
  %86 = vmatpush1.msra.mxu0 0.0
  %87 = vmatprep.subr.mxu0 0.0
  %88 = vmatpush1.msra.mxu0 0.0
  %89 = vmatprep.subr.mxu0 0.0
  %90 = vmatpush1.msra.mxu0 0.0
  %91 = vmatprep.subr.mxu0 0.0
  %92 = vmatpush1.msra.mxu0 0.0
  %93 = vmatprep.subr.mxu0 0.0
  %94 = vmatpush1.msra.mxu0 0.0
  %95 = vmatprep.subr.mxu0 0.0
  %96 = vmatpush1.msra.mxu0 0.0
  %97 = vmatprep.subr.mxu0 0.0
  %98 = vmatpush1.msra.mxu0 0.0
  %99 = vmatprep.subr.mxu0 0.0
  %100 = vmatpush1.msra.mxu0 0.0
  %101 = vmatprep.subr.mxu0 0.0
  %102 = vmatpush1.msra.mxu0 0.0
  %103 = vmatprep.subr.mxu0 0.0
  %104 = vmatpush1.msra.mxu0 0.0
  %105 = vmatprep.subr.mxu0 0.0
  %106 = vmatpush1.msra.mxu0 0.0
  %107 = vmatprep.subr.mxu0 0.0
  %108 = vmatpush1.msra.mxu0 0.0
  %109 = vmatprep.subr.mxu0 0.0
  %110 = vmatpush1.msra.mxu0 0.0
  %111 = vmatprep.subr.mxu0 0.0
  %112 = vmatpush1.msra.mxu0 0.0
  %113 = vmatprep.subr.mxu0 0.0
  %114 = vmatpush1.msra.mxu0 0.0
  %115 = vmatprep.subr.mxu0 0.0
  %116 = vmatpush1.msra.mxu0 0.0
  %117 = vmatprep.subr.mxu0 0.0
  %118 = vmatpush1.msra.mxu0 0.0
  %119 = vmatprep.subr.mxu0 0.0
  %120 = vmatpush1.msra.mxu0 0.0
  %121 = vmatprep.subr.mxu0 0.0
  %122 = vmatpush1.msra.mxu0 0.0
  %123 = vmatprep.subr.mxu0 0.0
  %124 = vmatpush1.msra.mxu0 0.0
  %125 = vmatprep.subr.mxu0 0.0
  %126 = vmatpush1.msra.mxu0 0.0
  %127 = vmatprep.subr.mxu0 0.0
  %128 = vmatpush1.msra.mxu0 0.0
  %129 = vmatprep.subr.mxu0 0.0
  %130 = vmatpush1.msra.mxu0 0.0
  %131 = vmatprep.mubr.f32.mxu0 0.0
  %132 = vmatmul.mubr.f32.gmra.mrb[0].mxu0 %v54
  %v133 = vpop.f32.mrb[0].mxu0
  %v134 = vadd.f32 0.0, %v133
  %v135 = vpop.f32.mrb[0].mxu0
  %v136 = vadd.f32 0.0, %v135
  %137 = vdwg.mxu0
  %138 = vmatprep.subr.mxu0 %v63
  %139 = vmatpush1.msra.mxu0 %v61
  %140 = vmatprep.subr.mxu0 0.0
  %141 = vmatpush1.msra.mxu0 0.0
  %142 = vmatprep.subr.mxu0 0.0
  %143 = vmatpush1.msra.mxu0 0.0
  %144 = vmatprep.subr.mxu0 0.0
  %145 = vmatpush1.msra.mxu0 0.0
  %146 = vmatprep.subr.mxu0 0.0
  %147 = vmatpush1.msra.mxu0 0.0
  %148 = vmatprep.subr.mxu0 0.0
  %149 = vmatpush1.msra.mxu0 0.0
  %150 = vmatprep.subr.mxu0 0.0
  %151 = vmatpush1.msra.mxu0 0.0
  %152 = vmatprep.subr.mxu0 0.0
  %153 = vmatpush1.msra.mxu0 0.0
  %154 = vmatprep.subr.mxu0 0.0
  %155 = vmatpush1.msra.mxu0 0.0
  %156 = vmatprep.subr.mxu0 0.0
  %157 = vmatpush1.msra.mxu0 0.0
  %158 = vmatprep.subr.mxu0 0.0
  %159 = vmatpush1.msra.mxu0 0.0
  %160 = vmatprep.subr.mxu0 0.0
  %161 = vmatpush1.msra.mxu0 0.0
  %162 = vmatprep.subr.mxu0 0.0
  %163 = vmatpush1.msra.mxu0 0.0
  %164 = vmatprep.subr.mxu0 0.0
  %165 = vmatpush1.msra.mxu0 0.0
  %166 = vmatprep.subr.mxu0 0.0
  %167 = vmatpush1.msra.mxu0 0.0
  %168 = vmatprep.subr.mxu0 0.0
  %169 = vmatpush1.msra.mxu0 0.0
  %170 = vmatprep.subr.mxu0 0.0
  %171 = vmatpush1.msra.mxu0 0.0
  %172 = vmatprep.subr.mxu0 0.0
  %173 = vmatpush1.msra.mxu0 0.0
  %174 = vmatprep.subr.mxu0 0.0
  %175 = vmatpush1.msra.mxu0 0.0
  %176 = vmatprep.subr.mxu0 0.0
  %177 = vmatpush1.msra.mxu0 0.0
  %178 = vmatprep.subr.mxu0 0.0
  %179 = vmatpush1.msra.mxu0 0.0
  %180 = vmatprep.subr.mxu0 0.0
  %181 = vmatpush1.msra.mxu0 0.0
  %182 = vmatprep.subr.mxu0 0.0
  %183 = vmatpush1.msra.mxu0 0.0
  %184 = vmatprep.subr.mxu0 0.0
  %185 = vmatpush1.msra.mxu0 0.0
  %186 = vmatprep.subr.mxu0 0.0
  %187 = vmatpush1.msra.mxu0 0.0
  %188 = vmatprep.subr.mxu0 0.0
  %189 = vmatpush1.msra.mxu0 0.0
  %190 = vmatprep.subr.mxu0 0.0
  %191 = vmatpush1.msra.mxu0 0.0
  %192 = vmatprep.subr.mxu0 0.0
  %193 = vmatpush1.msra.mxu0 0.0
  %194 = vmatprep.subr.mxu0 0.0
  %195 = vmatpush1.msra.mxu0 0.0
  %196 = vmatprep.subr.mxu0 0.0
  %197 = vmatpush1.msra.mxu0 0.0
  %198 = vmatprep.subr.mxu0 0.0
  %199 = vmatpush1.msra.mxu0 0.0
  %200 = vmatprep.subr.mxu0 0.0
  %201 = vmatpush1.msra.mxu0 0.0
  %202 = vmatprep.mubr.f32.mxu0 0.0
  %203 = vmatmul.mubr.f32.gmra.mrb[0].mxu0 %v54
  %v204 = vpop.f32.mrb[0].mxu0
  %v205 = vadd.f32 0.0, %v204
  %v206 = vpop.f32.mrb[0].mxu0
  %v207 = vadd.f32 0.0, %v206
  %208 = vdwg.mxu0
  %209 = vmatprep.subr.mxu0 0.0
  %210 = vmatpush1.msra.mxu0 %v65
  %211 = vmatprep.subr.mxu0 0.0
  %212 = vmatpush1.msra.mxu0 0.0
  %213 = vmatprep.subr.mxu0 0.0
  %214 = vmatpush1.msra.mxu0 0.0
  %215 = vmatprep.subr.mxu0 0.0
  %216 = vmatpush1.msra.mxu0 0.0
  %217 = vmatprep.subr.mxu0 0.0
  %218 = vmatpush1.msra.mxu0 0.0
  %219 = vmatprep.subr.mxu0 0.0
  %220 = vmatpush1.msra.mxu0 0.0
  %221 = vmatprep.subr.mxu0 0.0
  %222 = vmatpush1.msra.mxu0 0.0
  %223 = vmatprep.subr.mxu0 0.0
  %224 = vmatpush1.msra.mxu0 0.0
  %225 = vmatprep.subr.mxu0 0.0
  %226 = vmatpush1.msra.mxu0 0.0
  %227 = vmatprep.subr.mxu0 0.0
  %228 = vmatpush1.msra.mxu0 0.0
  %229 = vmatprep.subr.mxu0 0.0
  %230 = vmatpush1.msra.mxu0 0.0
  %231 = vmatprep.subr.mxu0 0.0
  %232 = vmatpush1.msra.mxu0 0.0
  %233 = vmatprep.subr.mxu0 0.0
  %234 = vmatpush1.msra.mxu0 0.0
  %235 = vmatprep.subr.mxu0 0.0
  %236 = vmatpush1.msra.mxu0 0.0
  %237 = vmatprep.subr.mxu0 0.0
  %238 = vmatpush1.msra.mxu0 0.0
  %239 = vmatprep.subr.mxu0 0.0
  %240 = vmatpush1.msra.mxu0 0.0
  %241 = vmatprep.subr.mxu0 0.0
  %242 = vmatpush1.msra.mxu0 0.0
  %243 = vmatprep.subr.mxu0 0.0
  %244 = vmatpush1.msra.mxu0 0.0
  %245 = vmatprep.subr.mxu0 0.0
  %246 = vmatpush1.msra.mxu0 0.0
  %247 = vmatprep.subr.mxu0 0.0
  %248 = vmatpush1.msra.mxu0 0.0
  %249 = vmatprep.subr.mxu0 0.0
  %250 = vmatpush1.msra.mxu0 0.0
  %251 = vmatprep.subr.mxu0 0.0
  %252 = vmatpush1.msra.mxu0 0.0
  %253 = vmatprep.subr.mxu0 0.0
  %254 = vmatpush1.msra.mxu0 0.0
  %255 = vmatprep.subr.mxu0 0.0
  %256 = vmatpush1.msra.mxu0 0.0
  %257 = vmatprep.subr.mxu0 0.0
  %258 = vmatpush1.msra.mxu0 0.0
  %259 = vmatprep.subr.mxu0 0.0
  %260 = vmatpush1.msra.mxu0 0.0
  %261 = vmatprep.subr.mxu0 0.0
  %262 = vmatpush1.msra.mxu0 0.0
  %263 = vmatprep.subr.mxu0 0.0
  %264 = vmatpush1.msra.mxu0 0.0
  %265 = vmatprep.subr.mxu0 0.0
  %266 = vmatpush1.msra.mxu0 0.0
  %267 = vmatprep.subr.mxu0 0.0
  %268 = vmatpush1.msra.mxu0 0.0
  %269 = vmatprep.subr.mxu0 0.0
  %270 = vmatpush1.msra.mxu0 0.0
  %271 = vmatprep.subr.mxu0 0.0
  %272 = vmatpush1.msra.mxu0 0.0
  %273 = vmatprep.mubr.f32.mxu0 0.0
  %274 = vmatmul.mubr.f32.gmra.mrb[0].mxu0 %v54
  %v275 = vpop.f32.mrb[0].mxu0
  %v276 = vadd.f32 0.0, %v275
  %v277 = vpop.f32.mrb[0].mxu0
  %278 = vdwg.mxu0
  %v280 = vsel %vm52, %v26, 0
  %v282 = vsel %vm56, %v27, 0
  %v284 = vsel %vm56, %v35, 0
  %v286 = vsel %vm56, %v28, 0
  %v288 = vsel %vm56, %v36, 0
  %v290 = vsel %vm56, %v29, 0
  %292 = vmatprep.subr.mxu0 %v284
  %293 = vmatpush1.msra.mxu0 %v282
  %294 = vmatprep.subr.mxu0 0.0
  %295 = vmatpush1.msra.mxu0 0.0
  %296 = vmatprep.subr.mxu0 0.0
  %297 = vmatpush1.msra.mxu0 0.0
  %298 = vmatprep.subr.mxu0 0.0
  %299 = vmatpush1.msra.mxu0 0.0
  %300 = vmatprep.subr.mxu0 0.0
  %301 = vmatpush1.msra.mxu0 0.0
  %302 = vmatprep.subr.mxu0 0.0
  %303 = vmatpush1.msra.mxu0 0.0
  %304 = vmatprep.subr.mxu0 0.0
  %305 = vmatpush1.msra.mxu0 0.0
  %306 = vmatprep.subr.mxu0 0.0
  %307 = vmatpush1.msra.mxu0 0.0
  %308 = vmatprep.subr.mxu0 0.0
  %309 = vmatpush1.msra.mxu0 0.0
  %310 = vmatprep.subr.mxu0 0.0
  %311 = vmatpush1.msra.mxu0 0.0
  %312 = vmatprep.subr.mxu0 0.0
  %313 = vmatpush1.msra.mxu0 0.0
  %314 = vmatprep.subr.mxu0 0.0
  %315 = vmatpush1.msra.mxu0 0.0
  %316 = vmatprep.subr.mxu0 0.0
  %317 = vmatpush1.msra.mxu0 0.0
  %318 = vmatprep.subr.mxu0 0.0
  %319 = vmatpush1.msra.mxu0 0.0
  %320 = vmatprep.subr.mxu0 0.0
  %321 = vmatpush1.msra.mxu0 0.0
  %322 = vmatprep.subr.mxu0 0.0
  %323 = vmatpush1.msra.mxu0 0.0
  %324 = vmatprep.subr.mxu0 0.0
  %325 = vmatpush1.msra.mxu0 0.0
  %326 = vmatprep.subr.mxu0 0.0
  %327 = vmatpush1.msra.mxu0 0.0
  %328 = vmatprep.subr.mxu0 0.0
  %329 = vmatpush1.msra.mxu0 0.0
  %330 = vmatprep.subr.mxu0 0.0
  %331 = vmatpush1.msra.mxu0 0.0
  %332 = vmatprep.subr.mxu0 0.0
  %333 = vmatpush1.msra.mxu0 0.0
  %334 = vmatprep.subr.mxu0 0.0
  %335 = vmatpush1.msra.mxu0 0.0
  %336 = vmatprep.subr.mxu0 0.0
  %337 = vmatpush1.msra.mxu0 0.0
  %338 = vmatprep.subr.mxu0 0.0
  %339 = vmatpush1.msra.mxu0 0.0
  %340 = vmatprep.subr.mxu0 0.0
  %341 = vmatpush1.msra.mxu0 0.0
  %342 = vmatprep.subr.mxu0 0.0
  %343 = vmatpush1.msra.mxu0 0.0
  %344 = vmatprep.subr.mxu0 0.0
  %345 = vmatpush1.msra.mxu0 0.0
  %346 = vmatprep.subr.mxu0 0.0
  %347 = vmatpush1.msra.mxu0 0.0
  %348 = vmatprep.subr.mxu0 0.0
  %349 = vmatpush1.msra.mxu0 0.0
  %350 = vmatprep.subr.mxu0 0.0
  %351 = vmatpush1.msra.mxu0 0.0
  %352 = vmatprep.subr.mxu0 0.0
  %353 = vmatpush1.msra.mxu0 0.0
  %354 = vmatprep.subr.mxu0 0.0
  %355 = vmatpush1.msra.mxu0 0.0
  %356 = vmatprep.mubr.f32.mxu0 0.0
  %357 = vmatmul.mubr.f32.gmra.mrb[0].mxu0 %v280
  %v358 = vpop.f32.mrb[0].mxu0
  %v359 = vadd.f32 %v134, %v358
  %v360 = vpop.f32.mrb[0].mxu0
  %v361 = vadd.f32 %v136, %v360
  %362 = vdwg.mxu0
  %363 = vmatprep.subr.mxu0 %v288
  %364 = vmatpush1.msra.mxu0 %v286
  %365 = vmatprep.subr.mxu0 0.0
  %366 = vmatpush1.msra.mxu0 0.0
  %367 = vmatprep.subr.mxu0 0.0
  %368 = vmatpush1.msra.mxu0 0.0
  %369 = vmatprep.subr.mxu0 0.0
  %370 = vmatpush1.msra.mxu0 0.0
  %371 = vmatprep.subr.mxu0 0.0
  %372 = vmatpush1.msra.mxu0 0.0
  %373 = vmatprep.subr.mxu0 0.0
  %374 = vmatpush1.msra.mxu0 0.0
  %375 = vmatprep.subr.mxu0 0.0
  %376 = vmatpush1.msra.mxu0 0.0
  %377 = vmatprep.subr.mxu0 0.0
  %378 = vmatpush1.msra.mxu0 0.0
  %379 = vmatprep.subr.mxu0 0.0
  %380 = vmatpush1.msra.mxu0 0.0
  %381 = vmatprep.subr.mxu0 0.0
  %382 = vmatpush1.msra.mxu0 0.0
  %383 = vmatprep.subr.mxu0 0.0
  %384 = vmatpush1.msra.mxu0 0.0
  %385 = vmatprep.subr.mxu0 0.0
  %386 = vmatpush1.msra.mxu0 0.0
  %387 = vmatprep.subr.mxu0 0.0
  %388 = vmatpush1.msra.mxu0 0.0
  %389 = vmatprep.subr.mxu0 0.0
  %390 = vmatpush1.msra.mxu0 0.0
  %391 = vmatprep.subr.mxu0 0.0
  %392 = vmatpush1.msra.mxu0 0.0
  %393 = vmatprep.subr.mxu0 0.0
  %394 = vmatpush1.msra.mxu0 0.0
  %395 = vmatprep.subr.mxu0 0.0
  %396 = vmatpush1.msra.mxu0 0.0
  %397 = vmatprep.subr.mxu0 0.0
  %398 = vmatpush1.msra.mxu0 0.0
  %399 = vmatprep.subr.mxu0 0.0
  %400 = vmatpush1.msra.mxu0 0.0
  %401 = vmatprep.subr.mxu0 0.0
  %402 = vmatpush1.msra.mxu0 0.0
  %403 = vmatprep.subr.mxu0 0.0
  %404 = vmatpush1.msra.mxu0 0.0
  %405 = vmatprep.subr.mxu0 0.0
  %406 = vmatpush1.msra.mxu0 0.0
  %407 = vmatprep.subr.mxu0 0.0
  %408 = vmatpush1.msra.mxu0 0.0
  %409 = vmatprep.subr.mxu0 0.0
  %410 = vmatpush1.msra.mxu0 0.0
  %411 = vmatprep.subr.mxu0 0.0
  %412 = vmatpush1.msra.mxu0 0.0
  %413 = vmatprep.subr.mxu0 0.0
  %414 = vmatpush1.msra.mxu0 0.0
  %415 = vmatprep.subr.mxu0 0.0
  %416 = vmatpush1.msra.mxu0 0.0
  %417 = vmatprep.subr.mxu0 0.0
  %418 = vmatpush1.msra.mxu0 0.0
  %419 = vmatprep.subr.mxu0 0.0
  %420 = vmatpush1.msra.mxu0 0.0
  %421 = vmatprep.subr.mxu0 0.0
  %422 = vmatpush1.msra.mxu0 0.0
  %423 = vmatprep.subr.mxu0 0.0
  %424 = vmatpush1.msra.mxu0 0.0
  %425 = vmatprep.subr.mxu0 0.0
  %426 = vmatpush1.msra.mxu0 0.0
  %427 = vmatprep.mubr.f32.mxu0 0.0
  %428 = vmatmul.mubr.f32.gmra.mrb[0].mxu0 %v280
  %v429 = vpop.f32.mrb[0].mxu0
  %v430 = vadd.f32 %v205, %v429
  %v431 = vpop.f32.mrb[0].mxu0
  %v432 = vadd.f32 %v207, %v431
  %433 = vdwg.mxu0
  %434 = vmatprep.subr.mxu0 0.0
  %435 = vmatpush1.msra.mxu0 %v290
  %436 = vmatprep.subr.mxu0 0.0
  %437 = vmatpush1.msra.mxu0 0.0
  %438 = vmatprep.subr.mxu0 0.0
  %439 = vmatpush1.msra.mxu0 0.0
  %440 = vmatprep.subr.mxu0 0.0
  %441 = vmatpush1.msra.mxu0 0.0
  %442 = vmatprep.subr.mxu0 0.0
  %443 = vmatpush1.msra.mxu0 0.0
  %444 = vmatprep.subr.mxu0 0.0
  %445 = vmatpush1.msra.mxu0 0.0
  %446 = vmatprep.subr.mxu0 0.0
  %447 = vmatpush1.msra.mxu0 0.0
  %448 = vmatprep.subr.mxu0 0.0
  %449 = vmatpush1.msra.mxu0 0.0
  %450 = vmatprep.subr.mxu0 0.0
  %451 = vmatpush1.msra.mxu0 0.0
  %452 = vmatprep.subr.mxu0 0.0
  %453 = vmatpush1.msra.mxu0 0.0
  %454 = vmatprep.subr.mxu0 0.0
  %455 = vmatpush1.msra.mxu0 0.0
  %456 = vmatprep.subr.mxu0 0.0
  %457 = vmatpush1.msra.mxu0 0.0
  %458 = vmatprep.subr.mxu0 0.0
  %459 = vmatpush1.msra.mxu0 0.0
  %460 = vmatprep.subr.mxu0 0.0
  %461 = vmatpush1.msra.mxu0 0.0
  %462 = vmatprep.subr.mxu0 0.0
  %463 = vmatpush1.msra.mxu0 0.0
  %464 = vmatprep.subr.mxu0 0.0
  %465 = vmatpush1.msra.mxu0 0.0
  %466 = vmatprep.subr.mxu0 0.0
  %467 = vmatpush1.msra.mxu0 0.0
  %468 = vmatprep.subr.mxu0 0.0
  %469 = vmatpush1.msra.mxu0 0.0
  %470 = vmatprep.subr.mxu0 0.0
  %471 = vmatpush1.msra.mxu0 0.0
  %472 = vmatprep.subr.mxu0 0.0
  %473 = vmatpush1.msra.mxu0 0.0
  %474 = vmatprep.subr.mxu0 0.0
  %475 = vmatpush1.msra.mxu0 0.0
  %476 = vmatprep.subr.mxu0 0.0
  %477 = vmatpush1.msra.mxu0 0.0
  %478 = vmatprep.subr.mxu0 0.0
  %479 = vmatpush1.msra.mxu0 0.0
  %480 = vmatprep.subr.mxu0 0.0
  %481 = vmatpush1.msra.mxu0 0.0
  %482 = vmatprep.subr.mxu0 0.0
  %483 = vmatpush1.msra.mxu0 0.0
  %484 = vmatprep.subr.mxu0 0.0
  %485 = vmatpush1.msra.mxu0 0.0
  %486 = vmatprep.subr.mxu0 0.0
  %487 = vmatpush1.msra.mxu0 0.0
  %488 = vmatprep.subr.mxu0 0.0
  %489 = vmatpush1.msra.mxu0 0.0
  %490 = vmatprep.subr.mxu0 0.0
  %491 = vmatpush1.msra.mxu0 0.0
  %492 = vmatprep.subr.mxu0 0.0
  %493 = vmatpush1.msra.mxu0 0.0
  %494 = vmatprep.subr.mxu0 0.0
  %495 = vmatpush1.msra.mxu0 0.0
  %496 = vmatprep.subr.mxu0 0.0
  %497 = vmatpush1.msra.mxu0 0.0
  %498 = vmatprep.mubr.f32.mxu0 0.0
  %499 = vmatmul.mubr.f32.gmra.mrb[0].mxu0 %v280
  %v500 = vpop.f32.mrb[0].mxu0
  %v501 = vadd.f32 %v276, %v500
  %v502 = vpop.f32.mrb[0].mxu0
  %503 = vdwg.mxu0
  %s504 = scalar_lea.vmem %s1, 16
  %v505 = vld [vmem:[%s504] sm:$0xff]
  %v506 = vld [vmem:[%s0] sm:$0xff]
  %v507 = vld [vmem:[%s0 + $0x8] sm:$0xff]
  %v508 = vld [vmem:[%s0 + $0x10] sm:$0xf]
  %v512 = vcombine.high %v506, %v506
  %v513 = vcombine.high %v507, %v507
  %514 = vrot.lane.b32.xlu0 %v506, 126
  %v515 = vpop.permute.xlu0 %514
  %516 = vrot.lane.b32.xlu0 %v512, 126
  %v517 = vpop.permute.xlu0 %516
  %518 = vrot.lane.b32.xlu0 %v507, 126
  %v519 = vpop.permute.xlu0 %518
  %520 = vrot.lane.b32.xlu0 %v513, 126
  %v521 = vpop.permute.xlu0 %520
  %522 = vrot.lane.b32.xlu0 %v508, 126
  %v523 = vpop.permute.xlu0 %522
  %vm524 = vcmask 1031168
  %v525 = vsel %vm524, %v515, %v517
  %v526 = vsel %vm524, %v517, %v519
  %v527 = vsel %vm524, %v519, %v521
  %v528 = vsel %vm524, %v521, %v523
  %v530 = vsel %vm52, %v505, 0
  %v532 = vsel %vm56, %v525, 0
  %v534 = vsel %vm56, %v526, 0
  %v536 = vsel %vm56, %v527, 0
  %v538 = vsel %vm56, %v528, 0
  %v540 = vsel %vm56, %v523, 0
  %542 = vmatprep.subr.mxu0 %v534
  %543 = vmatpush1.msra.mxu0 %v532
  %544 = vmatprep.subr.mxu0 0.0
  %545 = vmatpush1.msra.mxu0 0.0
  %546 = vmatprep.subr.mxu0 0.0
  %547 = vmatpush1.msra.mxu0 0.0
  %548 = vmatprep.subr.mxu0 0.0
  %549 = vmatpush1.msra.mxu0 0.0
  %550 = vmatprep.subr.mxu0 0.0
  %551 = vmatpush1.msra.mxu0 0.0
  %552 = vmatprep.subr.mxu0 0.0
  %553 = vmatpush1.msra.mxu0 0.0
  %554 = vmatprep.subr.mxu0 0.0
  %555 = vmatpush1.msra.mxu0 0.0
  %556 = vmatprep.subr.mxu0 0.0
  %557 = vmatpush1.msra.mxu0 0.0
  %558 = vmatprep.subr.mxu0 0.0
  %559 = vmatpush1.msra.mxu0 0.0
  %560 = vmatprep.subr.mxu0 0.0
  %561 = vmatpush1.msra.mxu0 0.0
  %562 = vmatprep.subr.mxu0 0.0
  %563 = vmatpush1.msra.mxu0 0.0
  %564 = vmatprep.subr.mxu0 0.0
  %565 = vmatpush1.msra.mxu0 0.0
  %566 = vmatprep.subr.mxu0 0.0
  %567 = vmatpush1.msra.mxu0 0.0
  %568 = vmatprep.subr.mxu0 0.0
  %569 = vmatpush1.msra.mxu0 0.0
  %570 = vmatprep.subr.mxu0 0.0
  %571 = vmatpush1.msra.mxu0 0.0
  %572 = vmatprep.subr.mxu0 0.0
  %573 = vmatpush1.msra.mxu0 0.0
  %574 = vmatprep.subr.mxu0 0.0
  %575 = vmatpush1.msra.mxu0 0.0
  %576 = vmatprep.subr.mxu0 0.0
  %577 = vmatpush1.msra.mxu0 0.0
  %578 = vmatprep.subr.mxu0 0.0
  %579 = vmatpush1.msra.mxu0 0.0
  %580 = vmatprep.subr.mxu0 0.0
  %581 = vmatpush1.msra.mxu0 0.0
  %582 = vmatprep.subr.mxu0 0.0
  %583 = vmatpush1.msra.mxu0 0.0
  %584 = vmatprep.subr.mxu0 0.0
  %585 = vmatpush1.msra.mxu0 0.0
  %586 = vmatprep.subr.mxu0 0.0
  %587 = vmatpush1.msra.mxu0 0.0
  %588 = vmatprep.subr.mxu0 0.0
  %589 = vmatpush1.msra.mxu0 0.0
  %590 = vmatprep.subr.mxu0 0.0
  %591 = vmatpush1.msra.mxu0 0.0
  %592 = vmatprep.subr.mxu0 0.0
  %593 = vmatpush1.msra.mxu0 0.0
  %594 = vmatprep.subr.mxu0 0.0
  %595 = vmatpush1.msra.mxu0 0.0
  %596 = vmatprep.subr.mxu0 0.0
  %597 = vmatpush1.msra.mxu0 0.0
  %598 = vmatprep.subr.mxu0 0.0
  %599 = vmatpush1.msra.mxu0 0.0
  %600 = vmatprep.subr.mxu0 0.0
  %601 = vmatpush1.msra.mxu0 0.0
  %602 = vmatprep.subr.mxu0 0.0
  %603 = vmatpush1.msra.mxu0 0.0
  %604 = vmatprep.subr.mxu0 0.0
  %605 = vmatpush1.msra.mxu0 0.0
  %606 = vmatprep.mubr.f32.mxu0 0.0
  %607 = vmatmul.mubr.f32.gmra.mrb[0].mxu0 %v530
  %v608 = vpop.f32.mrb[0].mxu0
  %v609 = vadd.f32 0.0, %v608
  %v610 = vpop.f32.mrb[0].mxu0
  %v611 = vadd.f32 0.0, %v610
  %612 = vdwg.mxu0
  %613 = vmatprep.subr.mxu0 %v538
  %614 = vmatpush1.msra.mxu0 %v536
  %615 = vmatprep.subr.mxu0 0.0
  %616 = vmatpush1.msra.mxu0 0.0
  %617 = vmatprep.subr.mxu0 0.0
  %618 = vmatpush1.msra.mxu0 0.0
  %619 = vmatprep.subr.mxu0 0.0
  %620 = vmatpush1.msra.mxu0 0.0
  %621 = vmatprep.subr.mxu0 0.0
  %622 = vmatpush1.msra.mxu0 0.0
  %623 = vmatprep.subr.mxu0 0.0
  %624 = vmatpush1.msra.mxu0 0.0
  %625 = vmatprep.subr.mxu0 0.0
  %626 = vmatpush1.msra.mxu0 0.0
  %627 = vmatprep.subr.mxu0 0.0
  %628 = vmatpush1.msra.mxu0 0.0
  %629 = vmatprep.subr.mxu0 0.0
  %630 = vmatpush1.msra.mxu0 0.0
  %631 = vmatprep.subr.mxu0 0.0
  %632 = vmatpush1.msra.mxu0 0.0
  %633 = vmatprep.subr.mxu0 0.0
  %634 = vmatpush1.msra.mxu0 0.0
  %635 = vmatprep.subr.mxu0 0.0
  %636 = vmatpush1.msra.mxu0 0.0
  %637 = vmatprep.subr.mxu0 0.0
  %638 = vmatpush1.msra.mxu0 0.0
  %639 = vmatprep.subr.mxu0 0.0
  %640 = vmatpush1.msra.mxu0 0.0
  %641 = vmatprep.subr.mxu0 0.0
  %642 = vmatpush1.msra.mxu0 0.0
  %643 = vmatprep.subr.mxu0 0.0
  %644 = vmatpush1.msra.mxu0 0.0
  %645 = vmatprep.subr.mxu0 0.0
  %646 = vmatpush1.msra.mxu0 0.0
  %647 = vmatprep.subr.mxu0 0.0
  %648 = vmatpush1.msra.mxu0 0.0
  %649 = vmatprep.subr.mxu0 0.0
  %650 = vmatpush1.msra.mxu0 0.0
  %651 = vmatprep.subr.mxu0 0.0
  %652 = vmatpush1.msra.mxu0 0.0
  %653 = vmatprep.subr.mxu0 0.0
  %654 = vmatpush1.msra.mxu0 0.0
  %655 = vmatprep.subr.mxu0 0.0
  %656 = vmatpush1.msra.mxu0 0.0
  %657 = vmatprep.subr.mxu0 0.0
  %658 = vmatpush1.msra.mxu0 0.0
  %659 = vmatprep.subr.mxu0 0.0
  %660 = vmatpush1.msra.mxu0 0.0
  %661 = vmatprep.subr.mxu0 0.0
  %662 = vmatpush1.msra.mxu0 0.0
  %663 = vmatprep.subr.mxu0 0.0
  %664 = vmatpush1.msra.mxu0 0.0
  %665 = vmatprep.subr.mxu0 0.0
  %666 = vmatpush1.msra.mxu0 0.0
  %667 = vmatprep.subr.mxu0 0.0
  %668 = vmatpush1.msra.mxu0 0.0
  %669 = vmatprep.subr.mxu0 0.0
  %670 = vmatpush1.msra.mxu0 0.0
  %671 = vmatprep.subr.mxu0 0.0
  %672 = vmatpush1.msra.mxu0 0.0
  %673 = vmatprep.subr.mxu0 0.0
  %674 = vmatpush1.msra.mxu0 0.0
  %675 = vmatprep.subr.mxu0 0.0
  %676 = vmatpush1.msra.mxu0 0.0
  %677 = vmatprep.mubr.f32.mxu0 0.0
  %678 = vmatmul.mubr.f32.gmra.mrb[0].mxu0 %v530
  %v679 = vpop.f32.mrb[0].mxu0
  %v680 = vadd.f32 0.0, %v679
  %v681 = vpop.f32.mrb[0].mxu0
  %v682 = vadd.f32 0.0, %v681
  %683 = vdwg.mxu0
  %684 = vmatprep.subr.mxu0 0.0
  %685 = vmatpush1.msra.mxu0 %v540
  %686 = vmatprep.subr.mxu0 0.0
  %687 = vmatpush1.msra.mxu0 0.0
  %688 = vmatprep.subr.mxu0 0.0
  %689 = vmatpush1.msra.mxu0 0.0
  %690 = vmatprep.subr.mxu0 0.0
  %691 = vmatpush1.msra.mxu0 0.0
  %692 = vmatprep.subr.mxu0 0.0
  %693 = vmatpush1.msra.mxu0 0.0
  %694 = vmatprep.subr.mxu0 0.0
  %695 = vmatpush1.msra.mxu0 0.0
  %696 = vmatprep.subr.mxu0 0.0
  %697 = vmatpush1.msra.mxu0 0.0
  %698 = vmatprep.subr.mxu0 0.0
  %699 = vmatpush1.msra.mxu0 0.0
  %700 = vmatprep.subr.mxu0 0.0
  %701 = vmatpush1.msra.mxu0 0.0
  %702 = vmatprep.subr.mxu0 0.0
  %703 = vmatpush1.msra.mxu0 0.0
  %704 = vmatprep.subr.mxu0 0.0
  %705 = vmatpush1.msra.mxu0 0.0
  %706 = vmatprep.subr.mxu0 0.0
  %707 = vmatpush1.msra.mxu0 0.0
  %708 = vmatprep.subr.mxu0 0.0
  %709 = vmatpush1.msra.mxu0 0.0
  %710 = vmatprep.subr.mxu0 0.0
  %711 = vmatpush1.msra.mxu0 0.0
  %712 = vmatprep.subr.mxu0 0.0
  %713 = vmatpush1.msra.mxu0 0.0
  %714 = vmatprep.subr.mxu0 0.0
  %715 = vmatpush1.msra.mxu0 0.0
  %716 = vmatprep.subr.mxu0 0.0
  %717 = vmatpush1.msra.mxu0 0.0
  %718 = vmatprep.subr.mxu0 0.0
  %719 = vmatpush1.msra.mxu0 0.0
  %720 = vmatprep.subr.mxu0 0.0
  %721 = vmatpush1.msra.mxu0 0.0
  %722 = vmatprep.subr.mxu0 0.0
  %723 = vmatpush1.msra.mxu0 0.0
  %724 = vmatprep.subr.mxu0 0.0
  %725 = vmatpush1.msra.mxu0 0.0
  %726 = vmatprep.subr.mxu0 0.0
  %727 = vmatpush1.msra.mxu0 0.0
  %728 = vmatprep.subr.mxu0 0.0
  %729 = vmatpush1.msra.mxu0 0.0
  %730 = vmatprep.subr.mxu0 0.0
  %731 = vmatpush1.msra.mxu0 0.0
  %732 = vmatprep.subr.mxu0 0.0
  %733 = vmatpush1.msra.mxu0 0.0
  %734 = vmatprep.subr.mxu0 0.0
  %735 = vmatpush1.msra.mxu0 0.0
  %736 = vmatprep.subr.mxu0 0.0
  %737 = vmatpush1.msra.mxu0 0.0
  %738 = vmatprep.subr.mxu0 0.0
  %739 = vmatpush1.msra.mxu0 0.0
  %740 = vmatprep.subr.mxu0 0.0
  %741 = vmatpush1.msra.mxu0 0.0
  %742 = vmatprep.subr.mxu0 0.0
  %743 = vmatpush1.msra.mxu0 0.0
  %744 = vmatprep.subr.mxu0 0.0
  %745 = vmatpush1.msra.mxu0 0.0
  %746 = vmatprep.subr.mxu0 0.0
  %747 = vmatpush1.msra.mxu0 0.0
  %748 = vmatprep.mubr.f32.mxu0 0.0
  %749 = vmatmul.mubr.f32.gmra.mrb[0].mxu0 %v530
  %v750 = vpop.f32.mrb[0].mxu0
  %v751 = vadd.f32 0.0, %v750
  %v752 = vpop.f32.mrb[0].mxu0
  %753 = vdwg.mxu0
  %v754 = vadd.f32 %v359, %v609
  %v755 = vadd.f32 %v361, %v611
  %v756 = vadd.f32 %v430, %v680
  %v757 = vadd.f32 %v432, %v682
  %v758 = vadd.f32 %v501, %v751
  %s759 = scalar_lea.vmem %s1, 24
  %v760 = vld [vmem:[%s759] sm:$0xff]
  %v761 = vld [vmem:[%s0] sm:$0xff]
  %v762 = vld [vmem:[%s0 + $0x8] sm:$0xff]
  %v763 = vld [vmem:[%s0 + $0x10] sm:$0xf]
  %v767 = vcombine.high %v761, %v761
  %v768 = vcombine.high %v762, %v762
  %769 = vrot.lane.b32.xlu0 %v761, 110
  %v770 = vpop.permute.xlu0 %769
  %771 = vrot.lane.b32.xlu0 %v767, 110
  %v772 = vpop.permute.xlu0 %771
  %773 = vrot.lane.b32.xlu0 %v762, 110
  %v774 = vpop.permute.xlu0 %773
  %775 = vrot.lane.b32.xlu0 %v768, 110
  %v776 = vpop.permute.xlu0 %775
  %777 = vrot.lane.b32.xlu0 %v763, 110
  %v778 = vpop.permute.xlu0 %777
  %vm779 = vcmask 900096
  %v780 = vsel %vm779, %v770, %v772
  %v781 = vsel %vm779, %v772, %v774
  %v782 = vsel %vm779, %v774, %v776
  %v783 = vsel %vm779, %v776, %v778
  %v785 = vsel %vm52, %v760, 0
  %v787 = vsel %vm56, %v780, 0
  %v789 = vsel %vm56, %v781, 0
  %v791 = vsel %vm56, %v782, 0
  %v793 = vsel %vm56, %v783, 0
  %v795 = vsel %vm56, %v778, 0
  %797 = vmatprep.subr.mxu0 %v789
  %798 = vmatpush1.msra.mxu0 %v787
  %799 = vmatprep.subr.mxu0 0.0
  %800 = vmatpush1.msra.mxu0 0.0
  %801 = vmatprep.subr.mxu0 0.0
  %802 = vmatpush1.msra.mxu0 0.0
  %803 = vmatprep.subr.mxu0 0.0
  %804 = vmatpush1.msra.mxu0 0.0
  %805 = vmatprep.subr.mxu0 0.0
  %806 = vmatpush1.msra.mxu0 0.0
  %807 = vmatprep.subr.mxu0 0.0
  %808 = vmatpush1.msra.mxu0 0.0
  %809 = vmatprep.subr.mxu0 0.0
  %810 = vmatpush1.msra.mxu0 0.0
  %811 = vmatprep.subr.mxu0 0.0
  %812 = vmatpush1.msra.mxu0 0.0
  %813 = vmatprep.subr.mxu0 0.0
  %814 = vmatpush1.msra.mxu0 0.0
  %815 = vmatprep.subr.mxu0 0.0
  %816 = vmatpush1.msra.mxu0 0.0
  %817 = vmatprep.subr.mxu0 0.0
  %818 = vmatpush1.msra.mxu0 0.0
  %819 = vmatprep.subr.mxu0 0.0
  %820 = vmatpush1.msra.mxu0 0.0
  %821 = vmatprep.subr.mxu0 0.0
  %822 = vmatpush1.msra.mxu0 0.0
  %823 = vmatprep.subr.mxu0 0.0
  %824 = vmatpush1.msra.mxu0 0.0
  %825 = vmatprep.subr.mxu0 0.0
  %826 = vmatpush1.msra.mxu0 0.0
  %827 = vmatprep.subr.mxu0 0.0
  %828 = vmatpush1.msra.mxu0 0.0
  %829 = vmatprep.subr.mxu0 0.0
  %830 = vmatpush1.msra.mxu0 0.0
  %831 = vmatprep.subr.mxu0 0.0
  %832 = vmatpush1.msra.mxu0 0.0
  %833 = vmatprep.subr.mxu0 0.0
  %834 = vmatpush1.msra.mxu0 0.0
  %835 = vmatprep.subr.mxu0 0.0
  %836 = vmatpush1.msra.mxu0 0.0
  %837 = vmatprep.subr.mxu0 0.0
  %838 = vmatpush1.msra.mxu0 0.0
  %839 = vmatprep.subr.mxu0 0.0
  %840 = vmatpush1.msra.mxu0 0.0
  %841 = vmatprep.subr.mxu0 0.0
  %842 = vmatpush1.msra.mxu0 0.0
  %843 = vmatprep.subr.mxu0 0.0
  %844 = vmatpush1.msra.mxu0 0.0
  %845 = vmatprep.subr.mxu0 0.0
  %846 = vmatpush1.msra.mxu0 0.0
  %847 = vmatprep.subr.mxu0 0.0
  %848 = vmatpush1.msra.mxu0 0.0
  %849 = vmatprep.subr.mxu0 0.0
  %850 = vmatpush1.msra.mxu0 0.0
  %851 = vmatprep.subr.mxu0 0.0
  %852 = vmatpush1.msra.mxu0 0.0
  %853 = vmatprep.subr.mxu0 0.0
  %854 = vmatpush1.msra.mxu0 0.0
  %855 = vmatprep.subr.mxu0 0.0
  %856 = vmatpush1.msra.mxu0 0.0
  %857 = vmatprep.subr.mxu0 0.0
  %858 = vmatpush1.msra.mxu0 0.0
  %859 = vmatprep.subr.mxu0 0.0
  %860 = vmatpush1.msra.mxu0 0.0
  %861 = vmatprep.mubr.f32.mxu0 0.0
  %862 = vmatmul.mubr.f32.gmra.mrb[0].mxu0 %v785
  %v863 = vpop.f32.mrb[0].mxu0
  %v864 = vadd.f32 0.0, %v863
  %v865 = vpop.f32.mrb[0].mxu0
  %v866 = vadd.f32 0.0, %v865
  %867 = vdwg.mxu0
  %868 = vmatprep.subr.mxu0 %v793
  %869 = vmatpush1.msra.mxu0 %v791
  %870 = vmatprep.subr.mxu0 0.0
  %871 = vmatpush1.msra.mxu0 0.0
  %872 = vmatprep.subr.mxu0 0.0
  %873 = vmatpush1.msra.mxu0 0.0
  %874 = vmatprep.subr.mxu0 0.0
  %875 = vmatpush1.msra.mxu0 0.0
  %876 = vmatprep.subr.mxu0 0.0
  %877 = vmatpush1.msra.mxu0 0.0
  %878 = vmatprep.subr.mxu0 0.0
  %879 = vmatpush1.msra.mxu0 0.0
  %880 = vmatprep.subr.mxu0 0.0
  %881 = vmatpush1.msra.mxu0 0.0
  %882 = vmatprep.subr.mxu0 0.0
  %883 = vmatpush1.msra.mxu0 0.0
  %884 = vmatprep.subr.mxu0 0.0
  %885 = vmatpush1.msra.mxu0 0.0
  %886 = vmatprep.subr.mxu0 0.0
  %887 = vmatpush1.msra.mxu0 0.0
  %888 = vmatprep.subr.mxu0 0.0
  %889 = vmatpush1.msra.mxu0 0.0
  %890 = vmatprep.subr.mxu0 0.0
  %891 = vmatpush1.msra.mxu0 0.0
  %892 = vmatprep.subr.mxu0 0.0
  %893 = vmatpush1.msra.mxu0 0.0
  %894 = vmatprep.subr.mxu0 0.0
  %895 = vmatpush1.msra.mxu0 0.0
  %896 = vmatprep.subr.mxu0 0.0
  %897 = vmatpush1.msra.mxu0 0.0
  %898 = vmatprep.subr.mxu0 0.0
  %899 = vmatpush1.msra.mxu0 0.0
  %900 = vmatprep.subr.mxu0 0.0
  %901 = vmatpush1.msra.mxu0 0.0
  %902 = vmatprep.subr.mxu0 0.0
  %903 = vmatpush1.msra.mxu0 0.0
  %904 = vmatprep.subr.mxu0 0.0
  %905 = vmatpush1.msra.mxu0 0.0
  %906 = vmatprep.subr.mxu0 0.0
  %907 = vmatpush1.msra.mxu0 0.0
  %908 = vmatprep.subr.mxu0 0.0
  %909 = vmatpush1.msra.mxu0 0.0
  %910 = vmatprep.subr.mxu0 0.0
  %911 = vmatpush1.msra.mxu0 0.0
  %912 = vmatprep.subr.mxu0 0.0
  %913 = vmatpush1.msra.mxu0 0.0
  %914 = vmatprep.subr.mxu0 0.0
  %915 = vmatpush1.msra.mxu0 0.0
  %916 = vmatprep.subr.mxu0 0.0
  %917 = vmatpush1.msra.mxu0 0.0
  %918 = vmatprep.subr.mxu0 0.0
  %919 = vmatpush1.msra.mxu0 0.0
  %920 = vmatprep.subr.mxu0 0.0
  %921 = vmatpush1.msra.mxu0 0.0
  %922 = vmatprep.subr.mxu0 0.0
  %923 = vmatpush1.msra.mxu0 0.0
  %924 = vmatprep.subr.mxu0 0.0
  %925 = vmatpush1.msra.mxu0 0.0
  %926 = vmatprep.subr.mxu0 0.0
  %927 = vmatpush1.msra.mxu0 0.0
  %928 = vmatprep.subr.mxu0 0.0
  %929 = vmatpush1.msra.mxu0 0.0
  %930 = vmatprep.subr.mxu0 0.0
  %931 = vmatpush1.msra.mxu0 0.0
  %932 = vmatprep.mubr.f32.mxu0 0.0
  %933 = vmatmul.mubr.f32.gmra.mrb[0].mxu0 %v785
  %v934 = vpop.f32.mrb[0].mxu0
  %v935 = vadd.f32 0.0, %v934
  %v936 = vpop.f32.mrb[0].mxu0
  %v937 = vadd.f32 0.0, %v936
  %938 = vdwg.mxu0
  %939 = vmatprep.subr.mxu0 0.0
  %940 = vmatpush1.msra.mxu0 %v795
  %941 = vmatprep.subr.mxu0 0.0
  %942 = vmatpush1.msra.mxu0 0.0
  %943 = vmatprep.subr.mxu0 0.0
  %944 = vmatpush1.msra.mxu0 0.0
  %945 = vmatprep.subr.mxu0 0.0
  %946 = vmatpush1.msra.mxu0 0.0
  %947 = vmatprep.subr.mxu0 0.0
  %948 = vmatpush1.msra.mxu0 0.0
  %949 = vmatprep.subr.mxu0 0.0
  %950 = vmatpush1.msra.mxu0 0.0
  %951 = vmatprep.subr.mxu0 0.0
  %952 = vmatpush1.msra.mxu0 0.0
  %953 = vmatprep.subr.mxu0 0.0
  %954 = vmatpush1.msra.mxu0 0.0
  %955 = vmatprep.subr.mxu0 0.0
  %956 = vmatpush1.msra.mxu0 0.0
  %957 = vmatprep.subr.mxu0 0.0
  %958 = vmatpush1.msra.mxu0 0.0
  %959 = vmatprep.subr.mxu0 0.0
  %960 = vmatpush1.msra.mxu0 0.0
  %961 = vmatprep.subr.mxu0 0.0
  %962 = vmatpush1.msra.mxu0 0.0
  %963 = vmatprep.subr.mxu0 0.0
  %964 = vmatpush1.msra.mxu0 0.0
  %965 = vmatprep.subr.mxu0 0.0
  %966 = vmatpush1.msra.mxu0 0.0
  %967 = vmatprep.subr.mxu0 0.0
  %968 = vmatpush1.msra.mxu0 0.0
  %969 = vmatprep.subr.mxu0 0.0
  %970 = vmatpush1.msra.mxu0 0.0
  %971 = vmatprep.subr.mxu0 0.0
  %972 = vmatpush1.msra.mxu0 0.0
  %973 = vmatprep.subr.mxu0 0.0
  %974 = vmatpush1.msra.mxu0 0.0
  %975 = vmatprep.subr.mxu0 0.0
  %976 = vmatpush1.msra.mxu0 0.0
  %977 = vmatprep.subr.mxu0 0.0
  %978 = vmatpush1.msra.mxu0 0.0
  %979 = vmatprep.subr.mxu0 0.0
  %980 = vmatpush1.msra.mxu0 0.0
  %981 = vmatprep.subr.mxu0 0.0
  %982 = vmatpush1.msra.mxu0 0.0
  %983 = vmatprep.subr.mxu0 0.0
  %984 = vmatpush1.msra.mxu0 0.0
  %985 = vmatprep.subr.mxu0 0.0
  %986 = vmatpush1.msra.mxu0 0.0
  %987 = vmatprep.subr.mxu0 0.0
  %988 = vmatpush1.msra.mxu0 0.0
  %989 = vmatprep.subr.mxu0 0.0
  %990 = vmatpush1.msra.mxu0 0.0
  %991 = vmatprep.subr.mxu0 0.0
  %992 = vmatpush1.msra.mxu0 0.0
  %993 = vmatprep.subr.mxu0 0.0
  %994 = vmatpush1.msra.mxu0 0.0
  %995 = vmatprep.subr.mxu0 0.0
  %996 = vmatpush1.msra.mxu0 0.0
  %997 = vmatprep.subr.mxu0 0.0
  %998 = vmatpush1.msra.mxu0 0.0
  %999 = vmatprep.subr.mxu0 0.0
  %1000 = vmatpush1.msra.mxu0 0.0
  %1001 = vmatprep.subr.mxu0 0.0
  %1002 = vmatpush1.msra.mxu0 0.0
  %1003 = vmatprep.mubr.f32.mxu0 0.0
  %1004 = vmatmul.mubr.f32.gmra.mrb[0].mxu0 %v785
  %v1005 = vpop.f32.mrb[0].mxu0
  %v1006 = vadd.f32 0.0, %v1005
  %v1007 = vpop.f32.mrb[0].mxu0
  %1008 = vdwg.mxu0
  %v1009 = vadd.f32 %v754, %v864
  %v1010 = vadd.f32 %v755, %v866
  %v1011 = vadd.f32 %v756, %v935
  %v1012 = vadd.f32 %v757, %v937
  %v1013 = vadd.f32 %v758, %v1006
  %s1014 = scalar_lea.vmem %s1, 32
  %v1015 = vld [vmem:[%s1014] sm:$0xff]
  %v1016 = vld [vmem:[%s0] sm:$0xff]
  %v1017 = vld [vmem:[%s0 + $0x8] sm:$0xff]
  %v1018 = vld [vmem:[%s0 + $0x10] sm:$0xf]
  %v1022 = vcombine.high %v1016, %v1016
  %v1023 = vcombine.high %v1017, %v1017
  %1024 = vrot.lane.b32.xlu0 %v1016, 109
  %v1025 = vpop.permute.xlu0 %1024
  %1026 = vrot.lane.b32.xlu0 %v1022, 109
  %v1027 = vpop.permute.xlu0 %1026
  %1028 = vrot.lane.b32.xlu0 %v1017, 109
  %v1029 = vpop.permute.xlu0 %1028
  %1030 = vrot.lane.b32.xlu0 %v1023, 109
  %v1031 = vpop.permute.xlu0 %1030
  %1032 = vrot.lane.b32.xlu0 %v1018, 109
  %v1033 = vpop.permute.xlu0 %1032
  %vm1034 = vcmask 891904
  %v1035 = vsel %vm1034, %v1025, %v1027
  %v1036 = vsel %vm1034, %v1027, %v1029
  %v1037 = vsel %vm1034, %v1029, %v1031
  %v1038 = vsel %vm1034, %v1031, %v1033
  %v1040 = vsel %vm52, %v1015, 0
  %v1042 = vsel %vm56, %v1035, 0
  %v1044 = vsel %vm56, %v1036, 0
  %v1046 = vsel %vm56, %v1037, 0
  %v1048 = vsel %vm56, %v1038, 0
  %v1050 = vsel %vm56, %v1033, 0
  %1052 = vmatprep.subr.mxu0 %v1044
  %1053 = vmatpush1.msra.mxu0 %v1042
  %1054 = vmatprep.subr.mxu0 0.0
  %1055 = vmatpush1.msra.mxu0 0.0
  %1056 = vmatprep.subr.mxu0 0.0
  %1057 = vmatpush1.msra.mxu0 0.0
  %1058 = vmatprep.subr.mxu0 0.0
  %1059 = vmatpush1.msra.mxu0 0.0
  %1060 = vmatprep.subr.mxu0 0.0
  %1061 = vmatpush1.msra.mxu0 0.0
  %1062 = vmatprep.subr.mxu0 0.0
  %1063 = vmatpush1.msra.mxu0 0.0
  %1064 = vmatprep.subr.mxu0 0.0
  %1065 = vmatpush1.msra.mxu0 0.0
  %1066 = vmatprep.subr.mxu0 0.0
  %1067 = vmatpush1.msra.mxu0 0.0
  %1068 = vmatprep.subr.mxu0 0.0
  %1069 = vmatpush1.msra.mxu0 0.0
  %1070 = vmatprep.subr.mxu0 0.0
  %1071 = vmatpush1.msra.mxu0 0.0
  %1072 = vmatprep.subr.mxu0 0.0
  %1073 = vmatpush1.msra.mxu0 0.0
  %1074 = vmatprep.subr.mxu0 0.0
  %1075 = vmatpush1.msra.mxu0 0.0
  %1076 = vmatprep.subr.mxu0 0.0
  %1077 = vmatpush1.msra.mxu0 0.0
  %1078 = vmatprep.subr.mxu0 0.0
  %1079 = vmatpush1.msra.mxu0 0.0
  %1080 = vmatprep.subr.mxu0 0.0
  %1081 = vmatpush1.msra.mxu0 0.0
  %1082 = vmatprep.subr.mxu0 0.0
  %1083 = vmatpush1.msra.mxu0 0.0
  %1084 = vmatprep.subr.mxu0 0.0
  %1085 = vmatpush1.msra.mxu0 0.0
  %1086 = vmatprep.subr.mxu0 0.0
  %1087 = vmatpush1.msra.mxu0 0.0
  %1088 = vmatprep.subr.mxu0 0.0
  %1089 = vmatpush1.msra.mxu0 0.0
  %1090 = vmatprep.subr.mxu0 0.0
  %1091 = vmatpush1.msra.mxu0 0.0
  %1092 = vmatprep.subr.mxu0 0.0
  %1093 = vmatpush1.msra.mxu0 0.0
  %1094 = vmatprep.subr.mxu0 0.0
  %1095 = vmatpush1.msra.mxu0 0.0
  %1096 = vmatprep.subr.mxu0 0.0
  %1097 = vmatpush1.msra.mxu0 0.0
  %1098 = vmatprep.subr.mxu0 0.0
  %1099 = vmatpush1.msra.mxu0 0.0
  %1100 = vmatprep.subr.mxu0 0.0
  %1101 = vmatpush1.msra.mxu0 0.0
  %1102 = vmatprep.subr.mxu0 0.0
  %1103 = vmatpush1.msra.mxu0 0.0
  %1104 = vmatprep.subr.mxu0 0.0
  %1105 = vmatpush1.msra.mxu0 0.0
  %1106 = vmatprep.subr.mxu0 0.0
  %1107 = vmatpush1.msra.mxu0 0.0
  %1108 = vmatprep.subr.mxu0 0.0
  %1109 = vmatpush1.msra.mxu0 0.0
  %1110 = vmatprep.subr.mxu0 0.0
  %1111 = vmatpush1.msra.mxu0 0.0
  %1112 = vmatprep.subr.mxu0 0.0
  %1113 = vmatpush1.msra.mxu0 0.0
  %1114 = vmatprep.subr.mxu0 0.0
  %1115 = vmatpush1.msra.mxu0 0.0
  %1116 = vmatprep.mubr.f32.mxu0 0.0
  %1117 = vmatmul.mubr.f32.gmra.mrb[0].mxu0 %v1040
  %v1118 = vpop.f32.mrb[0].mxu0
  %v1119 = vadd.f32 0.0, %v1118
  %v1120 = vpop.f32.mrb[0].mxu0
  %v1121 = vadd.f32 0.0, %v1120
  %1122 = vdwg.mxu0
  %1123 = vmatprep.subr.mxu0 %v1048
  %1124 = vmatpush1.msra.mxu0 %v1046
  %1125 = vmatprep.subr.mxu0 0.0
  %1126 = vmatpush1.msra.mxu0 0.0
  %1127 = vmatprep.subr.mxu0 0.0
  %1128 = vmatpush1.msra.mxu0 0.0
  %1129 = vmatprep.subr.mxu0 0.0
  %1130 = vmatpush1.msra.mxu0 0.0
  %1131 = vmatprep.subr.mxu0 0.0
  %1132 = vmatpush1.msra.mxu0 0.0
  %1133 = vmatprep.subr.mxu0 0.0
  %1134 = vmatpush1.msra.mxu0 0.0
  %1135 = vmatprep.subr.mxu0 0.0
  %1136 = vmatpush1.msra.mxu0 0.0
  %1137 = vmatprep.subr.mxu0 0.0
  %1138 = vmatpush1.msra.mxu0 0.0
  %1139 = vmatprep.subr.mxu0 0.0
  %1140 = vmatpush1.msra.mxu0 0.0
  %1141 = vmatprep.subr.mxu0 0.0
  %1142 = vmatpush1.msra.mxu0 0.0
  %1143 = vmatprep.subr.mxu0 0.0
  %1144 = vmatpush1.msra.mxu0 0.0
  %1145 = vmatprep.subr.mxu0 0.0
  %1146 = vmatpush1.msra.mxu0 0.0
  %1147 = vmatprep.subr.mxu0 0.0
  %1148 = vmatpush1.msra.mxu0 0.0
  %1149 = vmatprep.subr.mxu0 0.0
  %1150 = vmatpush1.msra.mxu0 0.0
  %1151 = vmatprep.subr.mxu0 0.0
  %1152 = vmatpush1.msra.mxu0 0.0
  %1153 = vmatprep.subr.mxu0 0.0
  %1154 = vmatpush1.msra.mxu0 0.0
  %1155 = vmatprep.subr.mxu0 0.0
  %1156 = vmatpush1.msra.mxu0 0.0
  %1157 = vmatprep.subr.mxu0 0.0
  %1158 = vmatpush1.msra.mxu0 0.0
  %1159 = vmatprep.subr.mxu0 0.0
  %1160 = vmatpush1.msra.mxu0 0.0
  %1161 = vmatprep.subr.mxu0 0.0
  %1162 = vmatpush1.msra.mxu0 0.0
  %1163 = vmatprep.subr.mxu0 0.0
  %1164 = vmatpush1.msra.mxu0 0.0
  %1165 = vmatprep.subr.mxu0 0.0
  %1166 = vmatpush1.msra.mxu0 0.0
  %1167 = vmatprep.subr.mxu0 0.0
  %1168 = vmatpush1.msra.mxu0 0.0
  %1169 = vmatprep.subr.mxu0 0.0
  %1170 = vmatpush1.msra.mxu0 0.0
  %1171 = vmatprep.subr.mxu0 0.0
  %1172 = vmatpush1.msra.mxu0 0.0
  %1173 = vmatprep.subr.mxu0 0.0
  %1174 = vmatpush1.msra.mxu0 0.0
  %1175 = vmatprep.subr.mxu0 0.0
  %1176 = vmatpush1.msra.mxu0 0.0
  %1177 = vmatprep.subr.mxu0 0.0
  %1178 = vmatpush1.msra.mxu0 0.0
  %1179 = vmatprep.subr.mxu0 0.0
  %1180 = vmatpush1.msra.mxu0 0.0
  %1181 = vmatprep.subr.mxu0 0.0
  %1182 = vmatpush1.msra.mxu0 0.0
  %1183 = vmatprep.subr.mxu0 0.0
  %1184 = vmatpush1.msra.mxu0 0.0
  %1185 = vmatprep.subr.mxu0 0.0
  %1186 = vmatpush1.msra.mxu0 0.0
  %1187 = vmatprep.mubr.f32.mxu0 0.0
  %1188 = vmatmul.mubr.f32.gmra.mrb[0].mxu0 %v1040
  %v1189 = vpop.f32.mrb[0].mxu0
  %v1190 = vadd.f32 0.0, %v1189
  %v1191 = vpop.f32.mrb[0].mxu0
  %v1192 = vadd.f32 0.0, %v1191
  %1193 = vdwg.mxu0
  %1194 = vmatprep.subr.mxu0 0.0
  %1195 = vmatpush1.msra.mxu0 %v1050
  %1196 = vmatprep.subr.mxu0 0.0
  %1197 = vmatpush1.msra.mxu0 0.0
  %1198 = vmatprep.subr.mxu0 0.0
  %1199 = vmatpush1.msra.mxu0 0.0
  %1200 = vmatprep.subr.mxu0 0.0
  %1201 = vmatpush1.msra.mxu0 0.0
  %1202 = vmatprep.subr.mxu0 0.0
  %1203 = vmatpush1.msra.mxu0 0.0
  %1204 = vmatprep.subr.mxu0 0.0
  %1205 = vmatpush1.msra.mxu0 0.0
  %1206 = vmatprep.subr.mxu0 0.0
  %1207 = vmatpush1.msra.mxu0 0.0
  %1208 = vmatprep.subr.mxu0 0.0
  %1209 = vmatpush1.msra.mxu0 0.0
  %1210 = vmatprep.subr.mxu0 0.0
  %1211 = vmatpush1.msra.mxu0 0.0
  %1212 = vmatprep.subr.mxu0 0.0
  %1213 = vmatpush1.msra.mxu0 0.0
  %1214 = vmatprep.subr.mxu0 0.0
  %1215 = vmatpush1.msra.mxu0 0.0
  %1216 = vmatprep.subr.mxu0 0.0
  %1217 = vmatpush1.msra.mxu0 0.0
  %1218 = vmatprep.subr.mxu0 0.0
  %1219 = vmatpush1.msra.mxu0 0.0
  %1220 = vmatprep.subr.mxu0 0.0
  %1221 = vmatpush1.msra.mxu0 0.0
  %1222 = vmatprep.subr.mxu0 0.0
  %1223 = vmatpush1.msra.mxu0 0.0
  %1224 = vmatprep.subr.mxu0 0.0
  %1225 = vmatpush1.msra.mxu0 0.0
  %1226 = vmatprep.subr.mxu0 0.0
  %1227 = vmatpush1.msra.mxu0 0.0
  %1228 = vmatprep.subr.mxu0 0.0
  %1229 = vmatpush1.msra.mxu0 0.0
  %1230 = vmatprep.subr.mxu0 0.0
  %1231 = vmatpush1.msra.mxu0 0.0
  %1232 = vmatprep.subr.mxu0 0.0
  %1233 = vmatpush1.msra.mxu0 0.0
  %1234 = vmatprep.subr.mxu0 0.0
  %1235 = vmatpush1.msra.mxu0 0.0
  %1236 = vmatprep.subr.mxu0 0.0
  %1237 = vmatpush1.msra.mxu0 0.0
  %1238 = vmatprep.subr.mxu0 0.0
  %1239 = vmatpush1.msra.mxu0 0.0
  %1240 = vmatprep.subr.mxu0 0.0
  %1241 = vmatpush1.msra.mxu0 0.0
  %1242 = vmatprep.subr.mxu0 0.0
  %1243 = vmatpush1.msra.mxu0 0.0
  %1244 = vmatprep.subr.mxu0 0.0
  %1245 = vmatpush1.msra.mxu0 0.0
  %1246 = vmatprep.subr.mxu0 0.0
  %1247 = vmatpush1.msra.mxu0 0.0
  %1248 = vmatprep.subr.mxu0 0.0
  %1249 = vmatpush1.msra.mxu0 0.0
  %1250 = vmatprep.subr.mxu0 0.0
  %1251 = vmatpush1.msra.mxu0 0.0
  %1252 = vmatprep.subr.mxu0 0.0
  %1253 = vmatpush1.msra.mxu0 0.0
  %1254 = vmatprep.subr.mxu0 0.0
  %1255 = vmatpush1.msra.mxu0 0.0
  %1256 = vmatprep.subr.mxu0 0.0
  %1257 = vmatpush1.msra.mxu0 0.0
  %1258 = vmatprep.mubr.f32.mxu0 0.0
  %1259 = vmatmul.mubr.f32.gmra.mrb[0].mxu0 %v1040
  %v1260 = vpop.f32.mrb[0].mxu0
  %v1261 = vadd.f32 0.0, %v1260
  %v1262 = vpop.f32.mrb[0].mxu0
  %1263 = vdwg.mxu0
  %v1264 = vadd.f32 %v1009, %v1119
  %v1265 = vadd.f32 %v1010, %v1121
  %v1266 = vadd.f32 %v1011, %v1190
  %v1267 = vadd.f32 %v1012, %v1192
  %v1268 = vadd.f32 %v1013, %v1261
  %s1269 = scalar_lea.vmem %s1, 40
  %v1270 = vld [vmem:[%s1269] sm:$0xff]
  %v1271 = vld [vmem:[%s0] sm:$0xff]
  %v1272 = vld [vmem:[%s0 + $0x8] sm:$0xff]
  %v1273 = vld [vmem:[%s0 + $0x10] sm:$0xf]
  %v1277 = vcombine.high %v1271, %v1271
  %v1278 = vcombine.high %v1272, %v1272
  %1279 = vrot.lane.b32.xlu0 %v1271, 108
  %v1280 = vpop.permute.xlu0 %1279
  %1281 = vrot.lane.b32.xlu0 %v1277, 108
  %v1282 = vpop.permute.xlu0 %1281
  %1283 = vrot.lane.b32.xlu0 %v1272, 108
  %v1284 = vpop.permute.xlu0 %1283
  %1285 = vrot.lane.b32.xlu0 %v1278, 108
  %v1286 = vpop.permute.xlu0 %1285
  %1287 = vrot.lane.b32.xlu0 %v1273, 108
  %v1288 = vpop.permute.xlu0 %1287
  %vm1289 = vcmask 883712
  %v1290 = vsel %vm1289, %v1280, %v1282
  %v1291 = vsel %vm1289, %v1282, %v1284
  %v1292 = vsel %vm1289, %v1284, %v1286
  %v1293 = vsel %vm1289, %v1286, %v1288
  %v1295 = vsel %vm52, %v1270, 0
  %v1297 = vsel %vm56, %v1290, 0
  %v1299 = vsel %vm56, %v1291, 0
  %v1301 = vsel %vm56, %v1292, 0
  %v1303 = vsel %vm56, %v1293, 0
  %v1305 = vsel %vm56, %v1288, 0
  %1307 = vmatprep.subr.mxu0 %v1299
  %1308 = vmatpush1.msra.mxu0 %v1297
  %1309 = vmatprep.subr.mxu0 0.0
  %1310 = vmatpush1.msra.mxu0 0.0
  %1311 = vmatprep.subr.mxu0 0.0
  %1312 = vmatpush1.msra.mxu0 0.0
  %1313 = vmatprep.subr.mxu0 0.0
  %1314 = vmatpush1.msra.mxu0 0.0
  %1315 = vmatprep.subr.mxu0 0.0
  %1316 = vmatpush1.msra.mxu0 0.0
  %1317 = vmatprep.subr.mxu0 0.0
  %1318 = vmatpush1.msra.mxu0 0.0
  %1319 = vmatprep.subr.mxu0 0.0
  %1320 = vmatpush1.msra.mxu0 0.0
  %1321 = vmatprep.subr.mxu0 0.0
  %1322 = vmatpush1.msra.mxu0 0.0
  %1323 = vmatprep.subr.mxu0 0.0
  %1324 = vmatpush1.msra.mxu0 0.0
  %1325 = vmatprep.subr.mxu0 0.0
  %1326 = vmatpush1.msra.mxu0 0.0
  %1327 = vmatprep.subr.mxu0 0.0
  %1328 = vmatpush1.msra.mxu0 0.0
  %1329 = vmatprep.subr.mxu0 0.0
  %1330 = vmatpush1.msra.mxu0 0.0
  %1331 = vmatprep.subr.mxu0 0.0
  %1332 = vmatpush1.msra.mxu0 0.0
  %1333 = vmatprep.subr.mxu0 0.0
  %1334 = vmatpush1.msra.mxu0 0.0
  %1335 = vmatprep.subr.mxu0 0.0
  %1336 = vmatpush1.msra.mxu0 0.0
  %1337 = vmatprep.subr.mxu0 0.0
  %1338 = vmatpush1.msra.mxu0 0.0
  %1339 = vmatprep.subr.mxu0 0.0
  %1340 = vmatpush1.msra.mxu0 0.0
  %1341 = vmatprep.subr.mxu0 0.0
  %1342 = vmatpush1.msra.mxu0 0.0
  %1343 = vmatprep.subr.mxu0 0.0
  %1344 = vmatpush1.msra.mxu0 0.0
  %1345 = vmatprep.subr.mxu0 0.0
  %1346 = vmatpush1.msra.mxu0 0.0
  %1347 = vmatprep.subr.mxu0 0.0
  %1348 = vmatpush1.msra.mxu0 0.0
  %1349 = vmatprep.subr.mxu0 0.0
  %1350 = vmatpush1.msra.mxu0 0.0
  %1351 = vmatprep.subr.mxu0 0.0
  %1352 = vmatpush1.msra.mxu0 0.0
  %1353 = vmatprep.subr.mxu0 0.0
  %1354 = vmatpush1.msra.mxu0 0.0
  %1355 = vmatprep.subr.mxu0 0.0
  %1356 = vmatpush1.msra.mxu0 0.0
  %1357 = vmatprep.subr.mxu0 0.0
  %1358 = vmatpush1.msra.mxu0 0.0
  %1359 = vmatprep.subr.mxu0 0.0
  %1360 = vmatpush1.msra.mxu0 0.0
  %1361 = vmatprep.subr.mxu0 0.0
  %1362 = vmatpush1.msra.mxu0 0.0
  %1363 = vmatprep.subr.mxu0 0.0
  %1364 = vmatpush1.msra.mxu0 0.0
  %1365 = vmatprep.subr.mxu0 0.0
  %1366 = vmatpush1.msra.mxu0 0.0
  %1367 = vmatprep.subr.mxu0 0.0
  %1368 = vmatpush1.msra.mxu0 0.0
  %1369 = vmatprep.subr.mxu0 0.0
  %1370 = vmatpush1.msra.mxu0 0.0
  %1371 = vmatprep.mubr.f32.mxu0 0.0
  %1372 = vmatmul.mubr.f32.gmra.mrb[0].mxu0 %v1295
  %v1373 = vpop.f32.mrb[0].mxu0
  %v1374 = vadd.f32 0.0, %v1373
  %v1375 = vpop.f32.mrb[0].mxu0
  %v1376 = vadd.f32 0.0, %v1375
  %1377 = vdwg.mxu0
  %1378 = vmatprep.subr.mxu0 %v1303
  %1379 = vmatpush1.msra.mxu0 %v1301
  %1380 = vmatprep.subr.mxu0 0.0
  %1381 = vmatpush1.msra.mxu0 0.0
  %1382 = vmatprep.subr.mxu0 0.0
  %1383 = vmatpush1.msra.mxu0 0.0
  %1384 = vmatprep.subr.mxu0 0.0
  %1385 = vmatpush1.msra.mxu0 0.0
  %1386 = vmatprep.subr.mxu0 0.0
  %1387 = vmatpush1.msra.mxu0 0.0
  %1388 = vmatprep.subr.mxu0 0.0
  %1389 = vmatpush1.msra.mxu0 0.0
  %1390 = vmatprep.subr.mxu0 0.0
  %1391 = vmatpush1.msra.mxu0 0.0
  %1392 = vmatprep.subr.mxu0 0.0
  %1393 = vmatpush1.msra.mxu0 0.0
  %1394 = vmatprep.subr.mxu0 0.0
  %1395 = vmatpush1.msra.mxu0 0.0
  %1396 = vmatprep.subr.mxu0 0.0
  %1397 = vmatpush1.msra.mxu0 0.0
  %1398 = vmatprep.subr.mxu0 0.0
  %1399 = vmatpush1.msra.mxu0 0.0
  %1400 = vmatprep.subr.mxu0 0.0
  %1401 = vmatpush1.msra.mxu0 0.0
  %1402 = vmatprep.subr.mxu0 0.0
  %1403 = vmatpush1.msra.mxu0 0.0
  %1404 = vmatprep.subr.mxu0 0.0
  %1405 = vmatpush1.msra.mxu0 0.0
  %1406 = vmatprep.subr.mxu0 0.0
  %1407 = vmatpush1.msra.mxu0 0.0
  %1408 = vmatprep.subr.mxu0 0.0
  %1409 = vmatpush1.msra.mxu0 0.0
  %1410 = vmatprep.subr.mxu0 0.0
  %1411 = vmatpush1.msra.mxu0 0.0
  %1412 = vmatprep.subr.mxu0 0.0
  %1413 = vmatpush1.msra.mxu0 0.0
  %1414 = vmatprep.subr.mxu0 0.0
  %1415 = vmatpush1.msra.mxu0 0.0
  %1416 = vmatprep.subr.mxu0 0.0
  %1417 = vmatpush1.msra.mxu0 0.0
  %1418 = vmatprep.subr.mxu0 0.0
  %1419 = vmatpush1.msra.mxu0 0.0
  %1420 = vmatprep.subr.mxu0 0.0
  %1421 = vmatpush1.msra.mxu0 0.0
  %1422 = vmatprep.subr.mxu0 0.0
  %1423 = vmatpush1.msra.mxu0 0.0
  %1424 = vmatprep.subr.mxu0 0.0
  %1425 = vmatpush1.msra.mxu0 0.0
  %1426 = vmatprep.subr.mxu0 0.0
  %1427 = vmatpush1.msra.mxu0 0.0
  %1428 = vmatprep.subr.mxu0 0.0
  %1429 = vmatpush1.msra.mxu0 0.0
  %1430 = vmatprep.subr.mxu0 0.0
  %1431 = vmatpush1.msra.mxu0 0.0
  %1432 = vmatprep.subr.mxu0 0.0
  %1433 = vmatpush1.msra.mxu0 0.0
  %1434 = vmatprep.subr.mxu0 0.0
  %1435 = vmatpush1.msra.mxu0 0.0
  %1436 = vmatprep.subr.mxu0 0.0
  %1437 = vmatpush1.msra.mxu0 0.0
  %1438 = vmatprep.subr.mxu0 0.0
  %1439 = vmatpush1.msra.mxu0 0.0
  %1440 = vmatprep.subr.mxu0 0.0
  %1441 = vmatpush1.msra.mxu0 0.0
  %1442 = vmatprep.mubr.f32.mxu0 0.0
  %1443 = vmatmul.mubr.f32.gmra.mrb[0].mxu0 %v1295
  %v1444 = vpop.f32.mrb[0].mxu0
  %v1445 = vadd.f32 0.0, %v1444
  %v1446 = vpop.f32.mrb[0].mxu0
  %v1447 = vadd.f32 0.0, %v1446
  %1448 = vdwg.mxu0
  %1449 = vmatprep.subr.mxu0 0.0
  %1450 = vmatpush1.msra.mxu0 %v1305
  %1451 = vmatprep.subr.mxu0 0.0
  %1452 = vmatpush1.msra.mxu0 0.0
  %1453 = vmatprep.subr.mxu0 0.0
  %1454 = vmatpush1.msra.mxu0 0.0
  %1455 = vmatprep.subr.mxu0 0.0
  %1456 = vmatpush1.msra.mxu0 0.0
  %1457 = vmatprep.subr.mxu0 0.0
  %1458 = vmatpush1.msra.mxu0 0.0
  %1459 = vmatprep.subr.mxu0 0.0
  %1460 = vmatpush1.msra.mxu0 0.0
  %1461 = vmatprep.subr.mxu0 0.0
  %1462 = vmatpush1.msra.mxu0 0.0
  %1463 = vmatprep.subr.mxu0 0.0
  %1464 = vmatpush1.msra.mxu0 0.0
  %1465 = vmatprep.subr.mxu0 0.0
  %1466 = vmatpush1.msra.mxu0 0.0
  %1467 = vmatprep.subr.mxu0 0.0
  %1468 = vmatpush1.msra.mxu0 0.0
  %1469 = vmatprep.subr.mxu0 0.0
  %1470 = vmatpush1.msra.mxu0 0.0
  %1471 = vmatprep.subr.mxu0 0.0
  %1472 = vmatpush1.msra.mxu0 0.0
  %1473 = vmatprep.subr.mxu0 0.0
  %1474 = vmatpush1.msra.mxu0 0.0
  %1475 = vmatprep.subr.mxu0 0.0
  %1476 = vmatpush1.msra.mxu0 0.0
  %1477 = vmatprep.subr.mxu0 0.0
  %1478 = vmatpush1.msra.mxu0 0.0
  %1479 = vmatprep.subr.mxu0 0.0
  %1480 = vmatpush1.msra.mxu0 0.0
  %1481 = vmatprep.subr.mxu0 0.0
  %1482 = vmatpush1.msra.mxu0 0.0
  %1483 = vmatprep.subr.mxu0 0.0
  %1484 = vmatpush1.msra.mxu0 0.0
  %1485 = vmatprep.subr.mxu0 0.0
  %1486 = vmatpush1.msra.mxu0 0.0
  %1487 = vmatprep.subr.mxu0 0.0
  %1488 = vmatpush1.msra.mxu0 0.0
  %1489 = vmatprep.subr.mxu0 0.0
  %1490 = vmatpush1.msra.mxu0 0.0
  %1491 = vmatprep.subr.mxu0 0.0
  %1492 = vmatpush1.msra.mxu0 0.0
  %1493 = vmatprep.subr.mxu0 0.0
  %1494 = vmatpush1.msra.mxu0 0.0
  %1495 = vmatprep.subr.mxu0 0.0
  %1496 = vmatpush1.msra.mxu0 0.0
  %1497 = vmatprep.subr.mxu0 0.0
  %1498 = vmatpush1.msra.mxu0 0.0
  %1499 = vmatprep.subr.mxu0 0.0
  %1500 = vmatpush1.msra.mxu0 0.0
  %1501 = vmatprep.subr.mxu0 0.0
  %1502 = vmatpush1.msra.mxu0 0.0
  %1503 = vmatprep.subr.mxu0 0.0
  %1504 = vmatpush1.msra.mxu0 0.0
  %1505 = vmatprep.subr.mxu0 0.0
  %1506 = vmatpush1.msra.mxu0 0.0
  %1507 = vmatprep.subr.mxu0 0.0
  %1508 = vmatpush1.msra.mxu0 0.0
  %1509 = vmatprep.subr.mxu0 0.0
  %1510 = vmatpush1.msra.mxu0 0.0
  %1511 = vmatprep.subr.mxu0 0.0
  %1512 = vmatpush1.msra.mxu0 0.0
  %1513 = vmatprep.mubr.f32.mxu0 0.0
  %1514 = vmatmul.mubr.f32.gmra.mrb[0].mxu0 %v1295
  %v1515 = vpop.f32.mrb[0].mxu0
  %v1516 = vadd.f32 0.0, %v1515
  %v1517 = vpop.f32.mrb[0].mxu0
  %1518 = vdwg.mxu0
  %v1519 = vadd.f32 %v1264, %v1374
  %v1520 = vadd.f32 %v1265, %v1376
  %v1521 = vadd.f32 %v1266, %v1445
  %v1522 = vadd.f32 %v1267, %v1447
  %v1523 = vadd.f32 %v1268, %v1516
  %s1524 = scalar_lea.vmem %s1, 48
  %v1525 = vld [vmem:[%s1524] sm:$0xff]
  %v1526 = vld [vmem:[%s0] sm:$0xff]
  %v1527 = vld [vmem:[%s0 + $0x8] sm:$0xff]
  %v1528 = vld [vmem:[%s0 + $0x10] sm:$0xff]
  %v1532 = vcombine.high %v1526, %v1526
  %v1533 = vcombine.high %v1527, %v1527
  %v1534 = vcombine.high %v1528, %v1528
  %1535 = vrot.lane.b32.xlu0 %v1526, 92
  %v1536 = vpop.permute.xlu0 %1535
  %1537 = vrot.lane.b32.xlu0 %v1532, 92
  %v1538 = vpop.permute.xlu0 %1537
  %1539 = vrot.lane.b32.xlu0 %v1527, 92
  %v1540 = vpop.permute.xlu0 %1539
  %1541 = vrot.lane.b32.xlu0 %v1533, 92
  %v1542 = vpop.permute.xlu0 %1541
  %1543 = vrot.lane.b32.xlu0 %v1528, 92
  %v1544 = vpop.permute.xlu0 %1543
  %1545 = vrot.lane.b32.xlu0 %v1534, 92
  %v1546 = vpop.permute.xlu0 %1545
  %vm1547 = vcmask 752640
  %v1548 = vsel %vm1547, %v1536, %v1538
  %v1549 = vsel %vm1547, %v1538, %v1540
  %v1550 = vsel %vm1547, %v1540, %v1542
  %v1551 = vsel %vm1547, %v1542, %v1544
  %v1552 = vsel %vm1547, %v1544, %v1546
  %v1554 = vsel %vm52, %v1525, 0
  %v1556 = vsel %vm56, %v1548, 0
  %v1558 = vsel %vm56, %v1549, 0
  %v1560 = vsel %vm56, %v1550, 0
  %v1562 = vsel %vm56, %v1551, 0
  %v1564 = vsel %vm56, %v1552, 0
  %1566 = vmatprep.subr.mxu0 %v1558
  %1567 = vmatpush1.msra.mxu0 %v1556
  %1568 = vmatprep.subr.mxu0 0.0
  %1569 = vmatpush1.msra.mxu0 0.0
  %1570 = vmatprep.subr.mxu0 0.0
  %1571 = vmatpush1.msra.mxu0 0.0
  %1572 = vmatprep.subr.mxu0 0.0
  %1573 = vmatpush1.msra.mxu0 0.0
  %1574 = vmatprep.subr.mxu0 0.0
  %1575 = vmatpush1.msra.mxu0 0.0
  %1576 = vmatprep.subr.mxu0 0.0
  %1577 = vmatpush1.msra.mxu0 0.0
  %1578 = vmatprep.subr.mxu0 0.0
  %1579 = vmatpush1.msra.mxu0 0.0
  %1580 = vmatprep.subr.mxu0 0.0
  %1581 = vmatpush1.msra.mxu0 0.0
  %1582 = vmatprep.subr.mxu0 0.0
  %1583 = vmatpush1.msra.mxu0 0.0
  %1584 = vmatprep.subr.mxu0 0.0
  %1585 = vmatpush1.msra.mxu0 0.0
  %1586 = vmatprep.subr.mxu0 0.0
  %1587 = vmatpush1.msra.mxu0 0.0
  %1588 = vmatprep.subr.mxu0 0.0
  %1589 = vmatpush1.msra.mxu0 0.0
  %1590 = vmatprep.subr.mxu0 0.0
  %1591 = vmatpush1.msra.mxu0 0.0
  %1592 = vmatprep.subr.mxu0 0.0
  %1593 = vmatpush1.msra.mxu0 0.0
  %1594 = vmatprep.subr.mxu0 0.0
  %1595 = vmatpush1.msra.mxu0 0.0
  %1596 = vmatprep.subr.mxu0 0.0
  %1597 = vmatpush1.msra.mxu0 0.0
  %1598 = vmatprep.subr.mxu0 0.0
  %1599 = vmatpush1.msra.mxu0 0.0
  %1600 = vmatprep.subr.mxu0 0.0
  %1601 = vmatpush1.msra.mxu0 0.0
  %1602 = vmatprep.subr.mxu0 0.0
  %1603 = vmatpush1.msra.mxu0 0.0
  %1604 = vmatprep.subr.mxu0 0.0
  %1605 = vmatpush1.msra.mxu0 0.0
  %1606 = vmatprep.subr.mxu0 0.0
  %1607 = vmatpush1.msra.mxu0 0.0
  %1608 = vmatprep.subr.mxu0 0.0
  %1609 = vmatpush1.msra.mxu0 0.0
  %1610 = vmatprep.subr.mxu0 0.0
  %1611 = vmatpush1.msra.mxu0 0.0
  %1612 = vmatprep.subr.mxu0 0.0
  %1613 = vmatpush1.msra.mxu0 0.0
  %1614 = vmatprep.subr.mxu0 0.0
  %1615 = vmatpush1.msra.mxu0 0.0
  %1616 = vmatprep.subr.mxu0 0.0
  %1617 = vmatpush1.msra.mxu0 0.0
  %1618 = vmatprep.subr.mxu0 0.0
  %1619 = vmatpush1.msra.mxu0 0.0
  %1620 = vmatprep.subr.mxu0 0.0
  %1621 = vmatpush1.msra.mxu0 0.0
  %1622 = vmatprep.subr.mxu0 0.0
  %1623 = vmatpush1.msra.mxu0 0.0
  %1624 = vmatprep.subr.mxu0 0.0
  %1625 = vmatpush1.msra.mxu0 0.0
  %1626 = vmatprep.subr.mxu0 0.0
  %1627 = vmatpush1.msra.mxu0 0.0
  %1628 = vmatprep.subr.mxu0 0.0
  %1629 = vmatpush1.msra.mxu0 0.0
  %1630 = vmatprep.mubr.f32.mxu0 0.0
  %1631 = vmatmul.mubr.f32.gmra.mrb[0].mxu0 %v1554
  %v1632 = vpop.f32.mrb[0].mxu0
  %v1633 = vadd.f32 0.0, %v1632
  %v1634 = vpop.f32.mrb[0].mxu0
  %v1635 = vadd.f32 0.0, %v1634
  %1636 = vdwg.mxu0
  %1637 = vmatprep.subr.mxu0 %v1562
  %1638 = vmatpush1.msra.mxu0 %v1560
  %1639 = vmatprep.subr.mxu0 0.0
  %1640 = vmatpush1.msra.mxu0 0.0
  %1641 = vmatprep.subr.mxu0 0.0
  %1642 = vmatpush1.msra.mxu0 0.0
  %1643 = vmatprep.subr.mxu0 0.0
  %1644 = vmatpush1.msra.mxu0 0.0
  %1645 = vmatprep.subr.mxu0 0.0
  %1646 = vmatpush1.msra.mxu0 0.0
  %1647 = vmatprep.subr.mxu0 0.0
  %1648 = vmatpush1.msra.mxu0 0.0
  %1649 = vmatprep.subr.mxu0 0.0
  %1650 = vmatpush1.msra.mxu0 0.0
  %1651 = vmatprep.subr.mxu0 0.0
  %1652 = vmatpush1.msra.mxu0 0.0
  %1653 = vmatprep.subr.mxu0 0.0
  %1654 = vmatpush1.msra.mxu0 0.0
  %1655 = vmatprep.subr.mxu0 0.0
  %1656 = vmatpush1.msra.mxu0 0.0
  %1657 = vmatprep.subr.mxu0 0.0
  %1658 = vmatpush1.msra.mxu0 0.0
  %1659 = vmatprep.subr.mxu0 0.0
  %1660 = vmatpush1.msra.mxu0 0.0
  %1661 = vmatprep.subr.mxu0 0.0
  %1662 = vmatpush1.msra.mxu0 0.0
  %1663 = vmatprep.subr.mxu0 0.0
  %1664 = vmatpush1.msra.mxu0 0.0
  %1665 = vmatprep.subr.mxu0 0.0
  %1666 = vmatpush1.msra.mxu0 0.0
  %1667 = vmatprep.subr.mxu0 0.0
  %1668 = vmatpush1.msra.mxu0 0.0
  %1669 = vmatprep.subr.mxu0 0.0
  %1670 = vmatpush1.msra.mxu0 0.0
  %1671 = vmatprep.subr.mxu0 0.0
  %1672 = vmatpush1.msra.mxu0 0.0
  %1673 = vmatprep.subr.mxu0 0.0
  %1674 = vmatpush1.msra.mxu0 0.0
  %1675 = vmatprep.subr.mxu0 0.0
  %1676 = vmatpush1.msra.mxu0 0.0
  %1677 = vmatprep.subr.mxu0 0.0
  %1678 = vmatpush1.msra.mxu0 0.0
  %1679 = vmatprep.subr.mxu0 0.0
  %1680 = vmatpush1.msra.mxu0 0.0
  %1681 = vmatprep.subr.mxu0 0.0
  %1682 = vmatpush1.msra.mxu0 0.0
  %1683 = vmatprep.subr.mxu0 0.0
  %1684 = vmatpush1.msra.mxu0 0.0
  %1685 = vmatprep.subr.mxu0 0.0
  %1686 = vmatpush1.msra.mxu0 0.0
  %1687 = vmatprep.subr.mxu0 0.0
  %1688 = vmatpush1.msra.mxu0 0.0
  %1689 = vmatprep.subr.mxu0 0.0
  %1690 = vmatpush1.msra.mxu0 0.0
  %1691 = vmatprep.subr.mxu0 0.0
  %1692 = vmatpush1.msra.mxu0 0.0
  %1693 = vmatprep.subr.mxu0 0.0
  %1694 = vmatpush1.msra.mxu0 0.0
  %1695 = vmatprep.subr.mxu0 0.0
  %1696 = vmatpush1.msra.mxu0 0.0
  %1697 = vmatprep.subr.mxu0 0.0
  %1698 = vmatpush1.msra.mxu0 0.0
  %1699 = vmatprep.subr.mxu0 0.0
  %1700 = vmatpush1.msra.mxu0 0.0
  %1701 = vmatprep.mubr.f32.mxu0 0.0
  %1702 = vmatmul.mubr.f32.gmra.mrb[0].mxu0 %v1554
  %v1703 = vpop.f32.mrb[0].mxu0
  %v1704 = vadd.f32 0.0, %v1703
  %v1705 = vpop.f32.mrb[0].mxu0
  %v1706 = vadd.f32 0.0, %v1705
  %1707 = vdwg.mxu0
  %1708 = vmatprep.subr.mxu0 0.0
  %1709 = vmatpush1.msra.mxu0 %v1564
  %1710 = vmatprep.subr.mxu0 0.0
  %1711 = vmatpush1.msra.mxu0 0.0
  %1712 = vmatprep.subr.mxu0 0.0
  %1713 = vmatpush1.msra.mxu0 0.0
  %1714 = vmatprep.subr.mxu0 0.0
  %1715 = vmatpush1.msra.mxu0 0.0
  %1716 = vmatprep.subr.mxu0 0.0
  %1717 = vmatpush1.msra.mxu0 0.0
  %1718 = vmatprep.subr.mxu0 0.0
  %1719 = vmatpush1.msra.mxu0 0.0
  %1720 = vmatprep.subr.mxu0 0.0
  %1721 = vmatpush1.msra.mxu0 0.0
  %1722 = vmatprep.subr.mxu0 0.0
  %1723 = vmatpush1.msra.mxu0 0.0
  %1724 = vmatprep.subr.mxu0 0.0
  %1725 = vmatpush1.msra.mxu0 0.0
  %1726 = vmatprep.subr.mxu0 0.0
  %1727 = vmatpush1.msra.mxu0 0.0
  %1728 = vmatprep.subr.mxu0 0.0
  %1729 = vmatpush1.msra.mxu0 0.0
  %1730 = vmatprep.subr.mxu0 0.0
  %1731 = vmatpush1.msra.mxu0 0.0
  %1732 = vmatprep.subr.mxu0 0.0
  %1733 = vmatpush1.msra.mxu0 0.0
  %1734 = vmatprep.subr.mxu0 0.0
  %1735 = vmatpush1.msra.mxu0 0.0
  %1736 = vmatprep.subr.mxu0 0.0
  %1737 = vmatpush1.msra.mxu0 0.0
  %1738 = vmatprep.subr.mxu0 0.0
  %1739 = vmatpush1.msra.mxu0 0.0
  %1740 = vmatprep.subr.mxu0 0.0
  %1741 = vmatpush1.msra.mxu0 0.0
  %1742 = vmatprep.subr.mxu0 0.0
  %1743 = vmatpush1.msra.mxu0 0.0
  %1744 = vmatprep.subr.mxu0 0.0
  %1745 = vmatpush1.msra.mxu0 0.0
  %1746 = vmatprep.subr.mxu0 0.0
  %1747 = vmatpush1.msra.mxu0 0.0
  %1748 = vmatprep.subr.mxu0 0.0
  %1749 = vmatpush1.msra.mxu0 0.0
  %1750 = vmatprep.subr.mxu0 0.0
  %1751 = vmatpush1.msra.mxu0 0.0
  %1752 = vmatprep.subr.mxu0 0.0
  %1753 = vmatpush1.msra.mxu0 0.0
  %1754 = vmatprep.subr.mxu0 0.0
  %1755 = vmatpush1.msra.mxu0 0.0
  %1756 = vmatprep.subr.mxu0 0.0
  %1757 = vmatpush1.msra.mxu0 0.0
  %1758 = vmatprep.subr.mxu0 0.0
  %1759 = vmatpush1.msra.mxu0 0.0
  %1760 = vmatprep.subr.mxu0 0.0
  %1761 = vmatpush1.msra.mxu0 0.0
  %1762 = vmatprep.subr.mxu0 0.0
  %1763 = vmatpush1.msra.mxu0 0.0
  %1764 = vmatprep.subr.mxu0 0.0
  %1765 = vmatpush1.msra.mxu0 0.0
  %1766 = vmatprep.subr.mxu0 0.0
  %1767 = vmatpush1.msra.mxu0 0.0
  %1768 = vmatprep.subr.mxu0 0.0
  %1769 = vmatpush1.msra.mxu0 0.0
  %1770 = vmatprep.subr.mxu0 0.0
  %1771 = vmatpush1.msra.mxu0 0.0
  %1772 = vmatprep.mubr.f32.mxu0 0.0
  %1773 = vmatmul.mubr.f32.gmra.mrb[0].mxu0 %v1554
  %v1774 = vpop.f32.mrb[0].mxu0
  %v1775 = vadd.f32 0.0, %v1774
  %v1776 = vpop.f32.mrb[0].mxu0
  %1777 = vdwg.mxu0
  %v1778 = vadd.f32 %v1519, %v1633
  %v1779 = vadd.f32 %v1520, %v1635
  %v1780 = vadd.f32 %v1521, %v1704
  %v1781 = vadd.f32 %v1522, %v1706
  %v1782 = vadd.f32 %v1523, %v1775
  %s1783 = scalar_lea.vmem %s1, 56
  %v1784 = vld [vmem:[%s1783] sm:$0xff]
  %v1785 = vld [vmem:[%s0] sm:$0xff]
  %v1786 = vld [vmem:[%s0 + $0x8] sm:$0xff]
  %v1787 = vld [vmem:[%s0 + $0x10] sm:$0xff]
  %v1791 = vcombine.high %v1785, %v1785
  %v1792 = vcombine.high %v1786, %v1786
  %v1793 = vcombine.high %v1787, %v1787
  %1794 = vrot.lane.b32.xlu0 %v1785, 91
  %v1795 = vpop.permute.xlu0 %1794
  %1796 = vrot.lane.b32.xlu0 %v1791, 91
  %v1797 = vpop.permute.xlu0 %1796
  %1798 = vrot.lane.b32.xlu0 %v1786, 91
  %v1799 = vpop.permute.xlu0 %1798
  %1800 = vrot.lane.b32.xlu0 %v1792, 91
  %v1801 = vpop.permute.xlu0 %1800
  %1802 = vrot.lane.b32.xlu0 %v1787, 91
  %v1803 = vpop.permute.xlu0 %1802
  %1804 = vrot.lane.b32.xlu0 %v1793, 91
  %v1805 = vpop.permute.xlu0 %1804
  %vm1806 = vcmask 744448
  %v1807 = vsel %vm1806, %v1795, %v1797
  %v1808 = vsel %vm1806, %v1797, %v1799
  %v1809 = vsel %vm1806, %v1799, %v1801
  %v1810 = vsel %vm1806, %v1801, %v1803
  %v1811 = vsel %vm1806, %v1803, %v1805
  %v1813 = vsel %vm52, %v1784, 0
  %v1815 = vsel %vm56, %v1807, 0
  %v1817 = vsel %vm56, %v1808, 0
  %v1819 = vsel %vm56, %v1809, 0
  %v1821 = vsel %vm56, %v1810, 0
  %v1823 = vsel %vm56, %v1811, 0
  %1825 = vmatprep.subr.mxu0 %v1817
  %1826 = vmatpush1.msra.mxu0 %v1815
  %1827 = vmatprep.subr.mxu0 0.0
  %1828 = vmatpush1.msra.mxu0 0.0
  %1829 = vmatprep.subr.mxu0 0.0
  %1830 = vmatpush1.msra.mxu0 0.0
  %1831 = vmatprep.subr.mxu0 0.0
  %1832 = vmatpush1.msra.mxu0 0.0
  %1833 = vmatprep.subr.mxu0 0.0
  %1834 = vmatpush1.msra.mxu0 0.0
  %1835 = vmatprep.subr.mxu0 0.0
  %1836 = vmatpush1.msra.mxu0 0.0
  %1837 = vmatprep.subr.mxu0 0.0
  %1838 = vmatpush1.msra.mxu0 0.0
  %1839 = vmatprep.subr.mxu0 0.0
  %1840 = vmatpush1.msra.mxu0 0.0
  %1841 = vmatprep.subr.mxu0 0.0
  %1842 = vmatpush1.msra.mxu0 0.0
  %1843 = vmatprep.subr.mxu0 0.0
  %1844 = vmatpush1.msra.mxu0 0.0
  %1845 = vmatprep.subr.mxu0 0.0
  %1846 = vmatpush1.msra.mxu0 0.0
  %1847 = vmatprep.subr.mxu0 0.0
  %1848 = vmatpush1.msra.mxu0 0.0
  %1849 = vmatprep.subr.mxu0 0.0
  %1850 = vmatpush1.msra.mxu0 0.0
  %1851 = vmatprep.subr.mxu0 0.0
  %1852 = vmatpush1.msra.mxu0 0.0
  %1853 = vmatprep.subr.mxu0 0.0
  %1854 = vmatpush1.msra.mxu0 0.0
  %1855 = vmatprep.subr.mxu0 0.0
  %1856 = vmatpush1.msra.mxu0 0.0
  %1857 = vmatprep.subr.mxu0 0.0
  %1858 = vmatpush1.msra.mxu0 0.0
  %1859 = vmatprep.subr.mxu0 0.0
  %1860 = vmatpush1.msra.mxu0 0.0
  %1861 = vmatprep.subr.mxu0 0.0
  %1862 = vmatpush1.msra.mxu0 0.0
  %1863 = vmatprep.subr.mxu0 0.0
  %1864 = vmatpush1.msra.mxu0 0.0
  %1865 = vmatprep.subr.mxu0 0.0
  %1866 = vmatpush1.msra.mxu0 0.0
  %1867 = vmatprep.subr.mxu0 0.0
  %1868 = vmatpush1.msra.mxu0 0.0
  %1869 = vmatprep.subr.mxu0 0.0
  %1870 = vmatpush1.msra.mxu0 0.0
  %1871 = vmatprep.subr.mxu0 0.0
  %1872 = vmatpush1.msra.mxu0 0.0
  %1873 = vmatprep.subr.mxu0 0.0
  %1874 = vmatpush1.msra.mxu0 0.0
  %1875 = vmatprep.subr.mxu0 0.0
  %1876 = vmatpush1.msra.mxu0 0.0
  %1877 = vmatprep.subr.mxu0 0.0
  %1878 = vmatpush1.msra.mxu0 0.0
  %1879 = vmatprep.subr.mxu0 0.0
  %1880 = vmatpush1.msra.mxu0 0.0
  %1881 = vmatprep.subr.mxu0 0.0
  %1882 = vmatpush1.msra.mxu0 0.0
  %1883 = vmatprep.subr.mxu0 0.0
  %1884 = vmatpush1.msra.mxu0 0.0
  %1885 = vmatprep.subr.mxu0 0.0
  %1886 = vmatpush1.msra.mxu0 0.0
  %1887 = vmatprep.subr.mxu0 0.0
  %1888 = vmatpush1.msra.mxu0 0.0
  %1889 = vmatprep.mubr.f32.mxu0 0.0
  %1890 = vmatmul.mubr.f32.gmra.mrb[0].mxu0 %v1813
  %v1891 = vpop.f32.mrb[0].mxu0
  %v1892 = vadd.f32 0.0, %v1891
  %v1893 = vpop.f32.mrb[0].mxu0
  %v1894 = vadd.f32 0.0, %v1893
  %1895 = vdwg.mxu0
  %1896 = vmatprep.subr.mxu0 %v1821
  %1897 = vmatpush1.msra.mxu0 %v1819
  %1898 = vmatprep.subr.mxu0 0.0
  %1899 = vmatpush1.msra.mxu0 0.0
  %1900 = vmatprep.subr.mxu0 0.0
  %1901 = vmatpush1.msra.mxu0 0.0
  %1902 = vmatprep.subr.mxu0 0.0
  %1903 = vmatpush1.msra.mxu0 0.0
  %1904 = vmatprep.subr.mxu0 0.0
  %1905 = vmatpush1.msra.mxu0 0.0
  %1906 = vmatprep.subr.mxu0 0.0
  %1907 = vmatpush1.msra.mxu0 0.0
  %1908 = vmatprep.subr.mxu0 0.0
  %1909 = vmatpush1.msra.mxu0 0.0
  %1910 = vmatprep.subr.mxu0 0.0
  %1911 = vmatpush1.msra.mxu0 0.0
  %1912 = vmatprep.subr.mxu0 0.0
  %1913 = vmatpush1.msra.mxu0 0.0
  %1914 = vmatprep.subr.mxu0 0.0
  %1915 = vmatpush1.msra.mxu0 0.0
  %1916 = vmatprep.subr.mxu0 0.0
  %1917 = vmatpush1.msra.mxu0 0.0
  %1918 = vmatprep.subr.mxu0 0.0
  %1919 = vmatpush1.msra.mxu0 0.0
  %1920 = vmatprep.subr.mxu0 0.0
  %1921 = vmatpush1.msra.mxu0 0.0
  %1922 = vmatprep.subr.mxu0 0.0
  %1923 = vmatpush1.msra.mxu0 0.0
  %1924 = vmatprep.subr.mxu0 0.0
  %1925 = vmatpush1.msra.mxu0 0.0
  %1926 = vmatprep.subr.mxu0 0.0
  %1927 = vmatpush1.msra.mxu0 0.0
  %1928 = vmatprep.subr.mxu0 0.0
  %1929 = vmatpush1.msra.mxu0 0.0
  %1930 = vmatprep.subr.mxu0 0.0
  %1931 = vmatpush1.msra.mxu0 0.0
  %1932 = vmatprep.subr.mxu0 0.0
  %1933 = vmatpush1.msra.mxu0 0.0
  %1934 = vmatprep.subr.mxu0 0.0
  %1935 = vmatpush1.msra.mxu0 0.0
  %1936 = vmatprep.subr.mxu0 0.0
  %1937 = vmatpush1.msra.mxu0 0.0
  %1938 = vmatprep.subr.mxu0 0.0
  %1939 = vmatpush1.msra.mxu0 0.0
  %1940 = vmatprep.subr.mxu0 0.0
  %1941 = vmatpush1.msra.mxu0 0.0
  %1942 = vmatprep.subr.mxu0 0.0
  %1943 = vmatpush1.msra.mxu0 0.0
  %1944 = vmatprep.subr.mxu0 0.0
  %1945 = vmatpush1.msra.mxu0 0.0
  %1946 = vmatprep.subr.mxu0 0.0
  %1947 = vmatpush1.msra.mxu0 0.0
  %1948 = vmatprep.subr.mxu0 0.0
  %1949 = vmatpush1.msra.mxu0 0.0
  %1950 = vmatprep.subr.mxu0 0.0
  %1951 = vmatpush1.msra.mxu0 0.0
  %1952 = vmatprep.subr.mxu0 0.0
  %1953 = vmatpush1.msra.mxu0 0.0
  %1954 = vmatprep.subr.mxu0 0.0
  %1955 = vmatpush1.msra.mxu0 0.0
  %1956 = vmatprep.subr.mxu0 0.0
  %1957 = vmatpush1.msra.mxu0 0.0
  %1958 = vmatprep.subr.mxu0 0.0
  %1959 = vmatpush1.msra.mxu0 0.0
  %1960 = vmatprep.mubr.f32.mxu0 0.0
  %1961 = vmatmul.mubr.f32.gmra.mrb[0].mxu0 %v1813
  %v1962 = vpop.f32.mrb[0].mxu0
  %v1963 = vadd.f32 0.0, %v1962
  %v1964 = vpop.f32.mrb[0].mxu0
  %v1965 = vadd.f32 0.0, %v1964
  %1966 = vdwg.mxu0
  %1967 = vmatprep.subr.mxu0 0.0
  %1968 = vmatpush1.msra.mxu0 %v1823
  %1969 = vmatprep.subr.mxu0 0.0
  %1970 = vmatpush1.msra.mxu0 0.0
  %1971 = vmatprep.subr.mxu0 0.0
  %1972 = vmatpush1.msra.mxu0 0.0
  %1973 = vmatprep.subr.mxu0 0.0
  %1974 = vmatpush1.msra.mxu0 0.0
  %1975 = vmatprep.subr.mxu0 0.0
  %1976 = vmatpush1.msra.mxu0 0.0
  %1977 = vmatprep.subr.mxu0 0.0
  %1978 = vmatpush1.msra.mxu0 0.0
  %1979 = vmatprep.subr.mxu0 0.0
  %1980 = vmatpush1.msra.mxu0 0.0
  %1981 = vmatprep.subr.mxu0 0.0
  %1982 = vmatpush1.msra.mxu0 0.0
  %1983 = vmatprep.subr.mxu0 0.0
  %1984 = vmatpush1.msra.mxu0 0.0
  %1985 = vmatprep.subr.mxu0 0.0
  %1986 = vmatpush1.msra.mxu0 0.0
  %1987 = vmatprep.subr.mxu0 0.0
  %1988 = vmatpush1.msra.mxu0 0.0
  %1989 = vmatprep.subr.mxu0 0.0
  %1990 = vmatpush1.msra.mxu0 0.0
  %1991 = vmatprep.subr.mxu0 0.0
  %1992 = vmatpush1.msra.mxu0 0.0
  %1993 = vmatprep.subr.mxu0 0.0
  %1994 = vmatpush1.msra.mxu0 0.0
  %1995 = vmatprep.subr.mxu0 0.0
  %1996 = vmatpush1.msra.mxu0 0.0
  %1997 = vmatprep.subr.mxu0 0.0
  %1998 = vmatpush1.msra.mxu0 0.0
  %1999 = vmatprep.subr.mxu0 0.0
  %2000 = vmatpush1.msra.mxu0 0.0
  %2001 = vmatprep.subr.mxu0 0.0
  %2002 = vmatpush1.msra.mxu0 0.0
  %2003 = vmatprep.subr.mxu0 0.0
  %2004 = vmatpush1.msra.mxu0 0.0
  %2005 = vmatprep.subr.mxu0 0.0
  %2006 = vmatpush1.msra.mxu0 0.0
  %2007 = vmatprep.subr.mxu0 0.0
  %2008 = vmatpush1.msra.mxu0 0.0
  %2009 = vmatprep.subr.mxu0 0.0
  %2010 = vmatpush1.msra.mxu0 0.0
  %2011 = vmatprep.subr.mxu0 0.0
  %2012 = vmatpush1.msra.mxu0 0.0
  %2013 = vmatprep.subr.mxu0 0.0
  %2014 = vmatpush1.msra.mxu0 0.0
  %2015 = vmatprep.subr.mxu0 0.0
  %2016 = vmatpush1.msra.mxu0 0.0
  %2017 = vmatprep.subr.mxu0 0.0
  %2018 = vmatpush1.msra.mxu0 0.0
  %2019 = vmatprep.subr.mxu0 0.0
  %2020 = vmatpush1.msra.mxu0 0.0
  %2021 = vmatprep.subr.mxu0 0.0
  %2022 = vmatpush1.msra.mxu0 0.0
  %2023 = vmatprep.subr.mxu0 0.0
  %2024 = vmatpush1.msra.mxu0 0.0
  %2025 = vmatprep.subr.mxu0 0.0
  %2026 = vmatpush1.msra.mxu0 0.0
  %2027 = vmatprep.subr.mxu0 0.0
  %2028 = vmatpush1.msra.mxu0 0.0
  %2029 = vmatprep.subr.mxu0 0.0
  %2030 = vmatpush1.msra.mxu0 0.0
  %2031 = vmatprep.mubr.f32.mxu0 0.0
  %2032 = vmatmul.mubr.f32.gmra.mrb[0].mxu0 %v1813
  %v2033 = vpop.f32.mrb[0].mxu0
  %v2034 = vadd.f32 0.0, %v2033
  %v2035 = vpop.f32.mrb[0].mxu0
  %2036 = vdwg.mxu0
  %v2037 = vadd.f32 %v1778, %v1892
  %v2038 = vadd.f32 %v1779, %v1894
  %v2039 = vadd.f32 %v1780, %v1963
  %v2040 = vadd.f32 %v1781, %v1965
  %v2041 = vadd.f32 %v1782, %v2034
  %s2042 = scalar_lea.vmem %s1, 64
  %v2043 = vld [vmem:[%s2042] sm:$0xff]
  %v2044 = vld [vmem:[%s0] sm:$0xff]
  %v2045 = vld [vmem:[%s0 + $0x8] sm:$0xff]
  %v2046 = vld [vmem:[%s0 + $0x10] sm:$0xff]
  %v2050 = vcombine.high %v2044, %v2044
  %v2051 = vcombine.high %v2045, %v2045
  %v2052 = vcombine.high %v2046, %v2046
  %2053 = vrot.lane.b32.xlu0 %v2044, 90
  %v2054 = vpop.permute.xlu0 %2053
  %2055 = vrot.lane.b32.xlu0 %v2050, 90
  %v2056 = vpop.permute.xlu0 %2055
  %2057 = vrot.lane.b32.xlu0 %v2045, 90
  %v2058 = vpop.permute.xlu0 %2057
  %2059 = vrot.lane.b32.xlu0 %v2051, 90
  %v2060 = vpop.permute.xlu0 %2059
  %2061 = vrot.lane.b32.xlu0 %v2046, 90
  %v2062 = vpop.permute.xlu0 %2061
  %2063 = vrot.lane.b32.xlu0 %v2052, 90
  %v2064 = vpop.permute.xlu0 %2063
  %vm2065 = vcmask 736256
  %v2066 = vsel %vm2065, %v2054, %v2056
  %v2067 = vsel %vm2065, %v2056, %v2058
  %v2068 = vsel %vm2065, %v2058, %v2060
  %v2069 = vsel %vm2065, %v2060, %v2062
  %v2070 = vsel %vm2065, %v2062, %v2064
  %v2072 = vsel %vm52, %v2043, 0
  %v2074 = vsel %vm56, %v2066, 0
  %v2076 = vsel %vm56, %v2067, 0
  %v2078 = vsel %vm56, %v2068, 0
  %v2080 = vsel %vm56, %v2069, 0
  %v2082 = vsel %vm56, %v2070, 0
  %2084 = vmatprep.subr.mxu0 %v2076
  %2085 = vmatpush1.msra.mxu0 %v2074
  %2086 = vmatprep.subr.mxu0 0.0
  %2087 = vmatpush1.msra.mxu0 0.0
  %2088 = vmatprep.subr.mxu0 0.0
  %2089 = vmatpush1.msra.mxu0 0.0
  %2090 = vmatprep.subr.mxu0 0.0
  %2091 = vmatpush1.msra.mxu0 0.0
  %2092 = vmatprep.subr.mxu0 0.0
  %2093 = vmatpush1.msra.mxu0 0.0
  %2094 = vmatprep.subr.mxu0 0.0
  %2095 = vmatpush1.msra.mxu0 0.0
  %2096 = vmatprep.subr.mxu0 0.0
  %2097 = vmatpush1.msra.mxu0 0.0
  %2098 = vmatprep.subr.mxu0 0.0
  %2099 = vmatpush1.msra.mxu0 0.0
  %2100 = vmatprep.subr.mxu0 0.0
  %2101 = vmatpush1.msra.mxu0 0.0
  %2102 = vmatprep.subr.mxu0 0.0
  %2103 = vmatpush1.msra.mxu0 0.0
  %2104 = vmatprep.subr.mxu0 0.0
  %2105 = vmatpush1.msra.mxu0 0.0
  %2106 = vmatprep.subr.mxu0 0.0
  %2107 = vmatpush1.msra.mxu0 0.0
  %2108 = vmatprep.subr.mxu0 0.0
  %2109 = vmatpush1.msra.mxu0 0.0
  %2110 = vmatprep.subr.mxu0 0.0
  %2111 = vmatpush1.msra.mxu0 0.0
  %2112 = vmatprep.subr.mxu0 0.0
  %2113 = vmatpush1.msra.mxu0 0.0
  %2114 = vmatprep.subr.mxu0 0.0
  %2115 = vmatpush1.msra.mxu0 0.0
  %2116 = vmatprep.subr.mxu0 0.0
  %2117 = vmatpush1.msra.mxu0 0.0
  %2118 = vmatprep.subr.mxu0 0.0
  %2119 = vmatpush1.msra.mxu0 0.0
  %2120 = vmatprep.subr.mxu0 0.0
  %2121 = vmatpush1.msra.mxu0 0.0
  %2122 = vmatprep.subr.mxu0 0.0
  %2123 = vmatpush1.msra.mxu0 0.0
  %2124 = vmatprep.subr.mxu0 0.0
  %2125 = vmatpush1.msra.mxu0 0.0
  %2126 = vmatprep.subr.mxu0 0.0
  %2127 = vmatpush1.msra.mxu0 0.0
  %2128 = vmatprep.subr.mxu0 0.0
  %2129 = vmatpush1.msra.mxu0 0.0
  %2130 = vmatprep.subr.mxu0 0.0
  %2131 = vmatpush1.msra.mxu0 0.0
  %2132 = vmatprep.subr.mxu0 0.0
  %2133 = vmatpush1.msra.mxu0 0.0
  %2134 = vmatprep.subr.mxu0 0.0
  %2135 = vmatpush1.msra.mxu0 0.0
  %2136 = vmatprep.subr.mxu0 0.0
  %2137 = vmatpush1.msra.mxu0 0.0
  %2138 = vmatprep.subr.mxu0 0.0
  %2139 = vmatpush1.msra.mxu0 0.0
  %2140 = vmatprep.subr.mxu0 0.0
  %2141 = vmatpush1.msra.mxu0 0.0
  %2142 = vmatprep.subr.mxu0 0.0
  %2143 = vmatpush1.msra.mxu0 0.0
  %2144 = vmatprep.subr.mxu0 0.0
  %2145 = vmatpush1.msra.mxu0 0.0
  %2146 = vmatprep.subr.mxu0 0.0
  %2147 = vmatpush1.msra.mxu0 0.0
  %2148 = vmatprep.mubr.f32.mxu0 0.0
  %2149 = vmatmul.mubr.f32.gmra.mrb[0].mxu0 %v2072
  %v2150 = vpop.f32.mrb[0].mxu0
  %v2151 = vadd.f32 0.0, %v2150
  %v2152 = vpop.f32.mrb[0].mxu0
  %v2153 = vadd.f32 0.0, %v2152
  %2154 = vdwg.mxu0
  %2155 = vmatprep.subr.mxu0 %v2080
  %2156 = vmatpush1.msra.mxu0 %v2078
  %2157 = vmatprep.subr.mxu0 0.0
  %2158 = vmatpush1.msra.mxu0 0.0
  %2159 = vmatprep.subr.mxu0 0.0
  %2160 = vmatpush1.msra.mxu0 0.0
  %2161 = vmatprep.subr.mxu0 0.0
  %2162 = vmatpush1.msra.mxu0 0.0
  %2163 = vmatprep.subr.mxu0 0.0
  %2164 = vmatpush1.msra.mxu0 0.0
  %2165 = vmatprep.subr.mxu0 0.0
  %2166 = vmatpush1.msra.mxu0 0.0
  %2167 = vmatprep.subr.mxu0 0.0
  %2168 = vmatpush1.msra.mxu0 0.0
  %2169 = vmatprep.subr.mxu0 0.0
  %2170 = vmatpush1.msra.mxu0 0.0
  %2171 = vmatprep.subr.mxu0 0.0
  %2172 = vmatpush1.msra.mxu0 0.0
  %2173 = vmatprep.subr.mxu0 0.0
  %2174 = vmatpush1.msra.mxu0 0.0
  %2175 = vmatprep.subr.mxu0 0.0
  %2176 = vmatpush1.msra.mxu0 0.0
  %2177 = vmatprep.subr.mxu0 0.0
  %2178 = vmatpush1.msra.mxu0 0.0
  %2179 = vmatprep.subr.mxu0 0.0
  %2180 = vmatpush1.msra.mxu0 0.0
  %2181 = vmatprep.subr.mxu0 0.0
  %2182 = vmatpush1.msra.mxu0 0.0
  %2183 = vmatprep.subr.mxu0 0.0
  %2184 = vmatpush1.msra.mxu0 0.0
  %2185 = vmatprep.subr.mxu0 0.0
  %2186 = vmatpush1.msra.mxu0 0.0
  %2187 = vmatprep.subr.mxu0 0.0
  %2188 = vmatpush1.msra.mxu0 0.0
  %2189 = vmatprep.subr.mxu0 0.0
  %2190 = vmatpush1.msra.mxu0 0.0
  %2191 = vmatprep.subr.mxu0 0.0
  %2192 = vmatpush1.msra.mxu0 0.0
  %2193 = vmatprep.subr.mxu0 0.0
  %2194 = vmatpush1.msra.mxu0 0.0
  %2195 = vmatprep.subr.mxu0 0.0
  %2196 = vmatpush1.msra.mxu0 0.0
  %2197 = vmatprep.subr.mxu0 0.0
  %2198 = vmatpush1.msra.mxu0 0.0
  %2199 = vmatprep.subr.mxu0 0.0
  %2200 = vmatpush1.msra.mxu0 0.0
  %2201 = vmatprep.subr.mxu0 0.0
  %2202 = vmatpush1.msra.mxu0 0.0
  %2203 = vmatprep.subr.mxu0 0.0
  %2204 = vmatpush1.msra.mxu0 0.0
  %2205 = vmatprep.subr.mxu0 0.0
  %2206 = vmatpush1.msra.mxu0 0.0
  %2207 = vmatprep.subr.mxu0 0.0
  %2208 = vmatpush1.msra.mxu0 0.0
  %2209 = vmatprep.subr.mxu0 0.0
  %2210 = vmatpush1.msra.mxu0 0.0
  %2211 = vmatprep.subr.mxu0 0.0
  %2212 = vmatpush1.msra.mxu0 0.0
  %2213 = vmatprep.subr.mxu0 0.0
  %2214 = vmatpush1.msra.mxu0 0.0
  %2215 = vmatprep.subr.mxu0 0.0
  %2216 = vmatpush1.msra.mxu0 0.0
  %2217 = vmatprep.subr.mxu0 0.0
  %2218 = vmatpush1.msra.mxu0 0.0
  %2219 = vmatprep.mubr.f32.mxu0 0.0
  %2220 = vmatmul.mubr.f32.gmra.mrb[0].mxu0 %v2072
  %v2221 = vpop.f32.mrb[0].mxu0
  %v2222 = vadd.f32 0.0, %v2221
  %v2223 = vpop.f32.mrb[0].mxu0
  %v2224 = vadd.f32 0.0, %v2223
  %2225 = vdwg.mxu0
  %2226 = vmatprep.subr.mxu0 0.0
  %2227 = vmatpush1.msra.mxu0 %v2082
  %2228 = vmatprep.subr.mxu0 0.0
  %2229 = vmatpush1.msra.mxu0 0.0
  %2230 = vmatprep.subr.mxu0 0.0
  %2231 = vmatpush1.msra.mxu0 0.0
  %2232 = vmatprep.subr.mxu0 0.0
  %2233 = vmatpush1.msra.mxu0 0.0
  %2234 = vmatprep.subr.mxu0 0.0
  %2235 = vmatpush1.msra.mxu0 0.0
  %2236 = vmatprep.subr.mxu0 0.0
  %2237 = vmatpush1.msra.mxu0 0.0
  %2238 = vmatprep.subr.mxu0 0.0
  %2239 = vmatpush1.msra.mxu0 0.0
  %2240 = vmatprep.subr.mxu0 0.0
  %2241 = vmatpush1.msra.mxu0 0.0
  %2242 = vmatprep.subr.mxu0 0.0
  %2243 = vmatpush1.msra.mxu0 0.0
  %2244 = vmatprep.subr.mxu0 0.0
  %2245 = vmatpush1.msra.mxu0 0.0
  %2246 = vmatprep.subr.mxu0 0.0
  %2247 = vmatpush1.msra.mxu0 0.0
  %2248 = vmatprep.subr.mxu0 0.0
  %2249 = vmatpush1.msra.mxu0 0.0
  %2250 = vmatprep.subr.mxu0 0.0
  %2251 = vmatpush1.msra.mxu0 0.0
  %2252 = vmatprep.subr.mxu0 0.0
  %2253 = vmatpush1.msra.mxu0 0.0
  %2254 = vmatprep.subr.mxu0 0.0
  %2255 = vmatpush1.msra.mxu0 0.0
  %2256 = vmatprep.subr.mxu0 0.0
  %2257 = vmatpush1.msra.mxu0 0.0
  %2258 = vmatprep.subr.mxu0 0.0
  %2259 = vmatpush1.msra.mxu0 0.0
  %2260 = vmatprep.subr.mxu0 0.0
  %2261 = vmatpush1.msra.mxu0 0.0
  %2262 = vmatprep.subr.mxu0 0.0
  %2263 = vmatpush1.msra.mxu0 0.0
  %2264 = vmatprep.subr.mxu0 0.0
  %2265 = vmatpush1.msra.mxu0 0.0
  %2266 = vmatprep.subr.mxu0 0.0
  %2267 = vmatpush1.msra.mxu0 0.0
  %2268 = vmatprep.subr.mxu0 0.0
  %2269 = vmatpush1.msra.mxu0 0.0
  %2270 = vmatprep.subr.mxu0 0.0
  %2271 = vmatpush1.msra.mxu0 0.0
  %2272 = vmatprep.subr.mxu0 0.0
  %2273 = vmatpush1.msra.mxu0 0.0
  %2274 = vmatprep.subr.mxu0 0.0
  %2275 = vmatpush1.msra.mxu0 0.0
  %2276 = vmatprep.subr.mxu0 0.0
  %2277 = vmatpush1.msra.mxu0 0.0
  %2278 = vmatprep.subr.mxu0 0.0
  %2279 = vmatpush1.msra.mxu0 0.0
  %2280 = vmatprep.subr.mxu0 0.0
  %2281 = vmatpush1.msra.mxu0 0.0
  %2282 = vmatprep.subr.mxu0 0.0
  %2283 = vmatpush1.msra.mxu0 0.0
  %2284 = vmatprep.subr.mxu0 0.0
  %2285 = vmatpush1.msra.mxu0 0.0
  %2286 = vmatprep.subr.mxu0 0.0
  %2287 = vmatpush1.msra.mxu0 0.0
  %2288 = vmatprep.subr.mxu0 0.0
  %2289 = vmatpush1.msra.mxu0 0.0
  %2290 = vmatprep.mubr.f32.mxu0 0.0
  %2291 = vmatmul.mubr.f32.gmra.mrb[0].mxu0 %v2072
  %v2292 = vpop.f32.mrb[0].mxu0
  %v2293 = vadd.f32 0.0, %v2292
  %v2294 = vpop.f32.mrb[0].mxu0
  %2295 = vdwg.mxu0
  %v2296 = vadd.f32 %v2037, %v2151
  %v2297 = vadd.f32 %v2038, %v2153
  %v2298 = vadd.f32 %v2039, %v2222
  %v2299 = vadd.f32 %v2040, %v2224
  %v2300 = vadd.f32 %v2041, %v2293
  %v2301 = vld [vmem:[%s2] sm:$0xff]
  %2303 = vset.pattern.permute.xlu0 0
  %2304 = vperm.xlu0 %2303, %v2301
  %v2305 = vpop.permute.xlu0 %2304
  %v2307 = vadd.f32 %v2296, %v2305
  %v2308 = vadd.f32 %v2297, %v2305
  %v2309 = vadd.f32 %v2298, %v2305
  %v2310 = vadd.f32 %v2299, %v2305
  %v2311 = vadd.f32 %v2300, %v2305
  %v2312 = vmax.f32 %v2307, 0.0
  %v2313 = vmax.f32 %v2308, 0.0
  %v2314 = vmax.f32 %v2309, 0.0
  %v2315 = vmax.f32 %v2310, 0.0
  %v2316 = vmax.f32 %v2311, 0.0
  %v2317 = vld [vmem:[%s5] sm:$0x1f]
  %v2319 = vlaneseq
  %v2320 = vshrl.u32 %v2319, 7
  %v2321 = vsub.s32 0, %v2320
  %v2322 = vrot.slane %v2317, %v2321
  %v2323 = vlaneseq
  %v2324 = vshrl.u32 %v2323, 7
  %v2325 = vsub.s32 1, %v2324
  %v2326 = vrot.slane %v2317, %v2325
  %v2327 = vlaneseq
  %v2328 = vshrl.u32 %v2327, 7
  %v2329 = vsub.s32 2, %v2328
  %v2330 = vrot.slane %v2317, %v2329
  %v2331 = vlaneseq
  %v2332 = vshrl.u32 %v2331, 7
  %v2333 = vsub.s32 3, %v2332
  %v2334 = vrot.slane %v2317, %v2333
  %v2335 = vlaneseq
  %v2336 = vshrl.u32 %v2335, 7
  %v2337 = vsub.s32 4, %v2336
  %v2338 = vrot.slane %v2317, %v2337
  %v2344 = vmul.f32 %v2312, %v2322
  %v2345 = vmul.f32 %v2313, %v2326
  %v2346 = vmul.f32 %v2314, %v2330
  %v2347 = vmul.f32 %v2315, %v2334
  %v2348 = vmul.f32 %v2316, %v2338
  %2349 = vst [vmem:[#allocation2] sm:$0xff] 0.0
  %2350 = vst [vmem:[#allocation2 + $0x8] sm:$0xff] 0.0
  %2351 = vst [vmem:[#allocation2 + $0x10] sm:$0xff] 0.0
  %2352 = vst [vmem:[#allocation2 + $0x18] sm:$0xff] 0.0
  %2353 = vst [vmem:[#allocation2 + $0x20] sm:$0xff] 0.0
  %vm2354 = vcmask 64512
  %2355 = vst.msk [vmem:[#allocation2 + $0x28] sm:$0xff] %vm2354, 0.0
  %2361 = vrot.lane.b32.xlu0 %v2344, 19
  %v2362 = vpop.permute.xlu0 %2361
  %2363 = vrot.lane.b32.xlu0 %v2345, 19
  %v2364 = vpop.permute.xlu0 %2363
  %2365 = vrot.lane.b32.xlu0 %v2346, 19
  %v2366 = vpop.permute.xlu0 %2365
  %2367 = vrot.lane.b32.xlu0 %v2347, 19
  %v2368 = vpop.permute.xlu0 %2367
  %2369 = vrot.lane.b32.xlu0 %v2348, 19
  %v2370 = vpop.permute.xlu0 %2369
  %vm2371 = vcmask 154624
  %v2372 = vsel %vm2371, %v2362, %v2364
  %v2373 = vsel %vm2371, %v2364, %v2366
  %v2374 = vsel %vm2371, %v2366, %v2368
  %v2375 = vsel %vm2371, %v2368, %v2370
  %vm2381 = vcmask 1047704
  %2382 = vst.msk [vmem:[#allocation2] sm:$0xff] %vm2381, %v2362
  %2383 = vst [vmem:[#allocation2 + $0x8] sm:$0xff] %v2372
  %2384 = vst [vmem:[#allocation2 + $0x10] sm:$0xff] %v2373
  %2385 = vst [vmem:[#allocation2 + $0x18] sm:$0xff] %v2374
  %vm2386 = vcmask 957440
  %2387 = vst.msk [vmem:[#allocation2 + $0x20] sm:$0xff] %vm2386, %v2375
  %v2388 = vld [vmem:[%s3] sm:$0xf]
  %v2389 = vld [vmem:[#allocation2] sm:$0xff]
  %v2390 = vld [vmem:[#allocation2 + $0x8] sm:$0xff]
  %v2391 = vld [vmem:[#allocation2 + $0x10] sm:$0xff]
  %v2392 = vld [vmem:[#allocation2 + $0x18] sm:$0xff]
  %v2393 = vld [vmem:[#allocation2 + $0x20] sm:$0xff]
  %s2394 = scalar_lea.vmem %s3, 4
  %v2395 = vld [vmem:[%s2394] sm:$0xf]
  %2401 = vrot.lane.b32.xlu0 %v2389, 127
  %v2402 = vpop.permute.xlu0 %2401
  %2403 = vrot.lane.b32.xlu0 %v2390, 127
  %v2404 = vpop.permute.xlu0 %2403
  %2405 = vrot.lane.b32.xlu0 %v2391, 127
  %v2406 = vpop.permute.xlu0 %2405
  %2407 = vrot.lane.b32.xlu0 %v2392, 127
  %v2408 = vpop.permute.xlu0 %2407
  %2409 = vrot.lane.b32.xlu0 %v2393, 127
  %v2410 = vpop.permute.xlu0 %2409
  %v2411 = vsel %vm47, %v2402, %v2404
  %v2412 = vsel %vm47, %v2404, %v2406
  %v2413 = vsel %vm47, %v2406, %v2408
  %v2414 = vsel %vm47, %v2408, %v2410
  %v2421 = vsel %vm2354, %v2395, 0
  %2423 = vmatprep.subr.mxu0 %v2412
  %2424 = vmatpush1.msra.mxu0 %v2411
  %2425 = vmatprep.subr.mxu0 0.0
  %2426 = vmatpush1.msra.mxu0 0.0
  %2427 = vmatprep.subr.mxu0 0.0
  %2428 = vmatpush1.msra.mxu0 0.0
  %2429 = vmatprep.subr.mxu0 0.0
  %2430 = vmatpush1.msra.mxu0 0.0
  %2431 = vmatprep.subr.mxu0 0.0
  %2432 = vmatpush1.msra.mxu0 0.0
  %2433 = vmatprep.subr.mxu0 0.0
  %2434 = vmatpush1.msra.mxu0 0.0
  %2435 = vmatprep.subr.mxu0 0.0
  %2436 = vmatpush1.msra.mxu0 0.0
  %2437 = vmatprep.subr.mxu0 0.0
  %2438 = vmatpush1.msra.mxu0 0.0
  %2439 = vmatprep.subr.mxu0 0.0
  %2440 = vmatpush1.msra.mxu0 0.0
  %2441 = vmatprep.subr.mxu0 0.0
  %2442 = vmatpush1.msra.mxu0 0.0
  %2443 = vmatprep.subr.mxu0 0.0
  %2444 = vmatpush1.msra.mxu0 0.0
  %2445 = vmatprep.subr.mxu0 0.0
  %2446 = vmatpush1.msra.mxu0 0.0
  %2447 = vmatprep.subr.mxu0 0.0
  %2448 = vmatpush1.msra.mxu0 0.0
  %2449 = vmatprep.subr.mxu0 0.0
  %2450 = vmatpush1.msra.mxu0 0.0
  %2451 = vmatprep.subr.mxu0 0.0
  %2452 = vmatpush1.msra.mxu0 0.0
  %2453 = vmatprep.subr.mxu0 0.0
  %2454 = vmatpush1.msra.mxu0 0.0
  %2455 = vmatprep.subr.mxu0 0.0
  %2456 = vmatpush1.msra.mxu0 0.0
  %2457 = vmatprep.subr.mxu0 0.0
  %2458 = vmatpush1.msra.mxu0 0.0
  %2459 = vmatprep.subr.mxu0 0.0
  %2460 = vmatpush1.msra.mxu0 0.0
  %2461 = vmatprep.subr.mxu0 0.0
  %2462 = vmatpush1.msra.mxu0 0.0
  %2463 = vmatprep.subr.mxu0 0.0
  %2464 = vmatpush1.msra.mxu0 0.0
  %2465 = vmatprep.subr.mxu0 0.0
  %2466 = vmatpush1.msra.mxu0 0.0
  %2467 = vmatprep.subr.mxu0 0.0
  %2468 = vmatpush1.msra.mxu0 0.0
  %2469 = vmatprep.subr.mxu0 0.0
  %2470 = vmatpush1.msra.mxu0 0.0
  %2471 = vmatprep.subr.mxu0 0.0
  %2472 = vmatpush1.msra.mxu0 0.0
  %2473 = vmatprep.subr.mxu0 0.0
  %2474 = vmatpush1.msra.mxu0 0.0
  %2475 = vmatprep.subr.mxu0 0.0
  %2476 = vmatpush1.msra.mxu0 0.0
  %2477 = vmatprep.subr.mxu0 0.0
  %2478 = vmatpush1.msra.mxu0 0.0
  %2479 = vmatprep.subr.mxu0 0.0
  %2480 = vmatpush1.msra.mxu0 0.0
  %2481 = vmatprep.subr.mxu0 0.0
  %2482 = vmatpush1.msra.mxu0 0.0
  %2483 = vmatprep.subr.mxu0 0.0
  %2484 = vmatpush1.msra.mxu0 0.0
  %2485 = vmatprep.subr.mxu0 0.0
  %2486 = vmatpush1.msra.mxu0 0.0
  %2487 = vmatprep.mubr.f32.mxu0 0.0
  %2488 = vmatmul.mubr.f32.gmra.mrb[0].mxu0 %v2421
  %v2489 = vpop.f32.mrb[0].mxu0
  %v2490 = vadd.f32 0.0, %v2489
  %v2491 = vpop.f32.mrb[0].mxu0
  %v2492 = vadd.f32 0.0, %v2491
  %2493 = vdwg.mxu0
  %2494 = vmatprep.subr.mxu0 %v2414
  %2495 = vmatpush1.msra.mxu0 %v2413
  %2496 = vmatprep.subr.mxu0 0.0
  %2497 = vmatpush1.msra.mxu0 0.0
  %2498 = vmatprep.subr.mxu0 0.0
  %2499 = vmatpush1.msra.mxu0 0.0
  %2500 = vmatprep.subr.mxu0 0.0
  %2501 = vmatpush1.msra.mxu0 0.0
  %2502 = vmatprep.subr.mxu0 0.0
  %2503 = vmatpush1.msra.mxu0 0.0
  %2504 = vmatprep.subr.mxu0 0.0
  %2505 = vmatpush1.msra.mxu0 0.0
  %2506 = vmatprep.subr.mxu0 0.0
  %2507 = vmatpush1.msra.mxu0 0.0
  %2508 = vmatprep.subr.mxu0 0.0
  %2509 = vmatpush1.msra.mxu0 0.0
  %2510 = vmatprep.subr.mxu0 0.0
  %2511 = vmatpush1.msra.mxu0 0.0
  %2512 = vmatprep.subr.mxu0 0.0
  %2513 = vmatpush1.msra.mxu0 0.0
  %2514 = vmatprep.subr.mxu0 0.0
  %2515 = vmatpush1.msra.mxu0 0.0
  %2516 = vmatprep.subr.mxu0 0.0
  %2517 = vmatpush1.msra.mxu0 0.0
  %2518 = vmatprep.subr.mxu0 0.0
  %2519 = vmatpush1.msra.mxu0 0.0
  %2520 = vmatprep.subr.mxu0 0.0
  %2521 = vmatpush1.msra.mxu0 0.0
  %2522 = vmatprep.subr.mxu0 0.0
  %2523 = vmatpush1.msra.mxu0 0.0
  %2524 = vmatprep.subr.mxu0 0.0
  %2525 = vmatpush1.msra.mxu0 0.0
  %2526 = vmatprep.subr.mxu0 0.0
  %2527 = vmatpush1.msra.mxu0 0.0
  %2528 = vmatprep.subr.mxu0 0.0
  %2529 = vmatpush1.msra.mxu0 0.0
  %2530 = vmatprep.subr.mxu0 0.0
  %2531 = vmatpush1.msra.mxu0 0.0
  %2532 = vmatprep.subr.mxu0 0.0
  %2533 = vmatpush1.msra.mxu0 0.0
  %2534 = vmatprep.subr.mxu0 0.0
  %2535 = vmatpush1.msra.mxu0 0.0
  %2536 = vmatprep.subr.mxu0 0.0
  %2537 = vmatpush1.msra.mxu0 0.0
  %2538 = vmatprep.subr.mxu0 0.0
  %2539 = vmatpush1.msra.mxu0 0.0
  %2540 = vmatprep.subr.mxu0 0.0
  %2541 = vmatpush1.msra.mxu0 0.0
  %2542 = vmatprep.subr.mxu0 0.0
  %2543 = vmatpush1.msra.mxu0 0.0
  %2544 = vmatprep.subr.mxu0 0.0
  %2545 = vmatpush1.msra.mxu0 0.0
  %2546 = vmatprep.subr.mxu0 0.0
  %2547 = vmatpush1.msra.mxu0 0.0
  %2548 = vmatprep.subr.mxu0 0.0
  %2549 = vmatpush1.msra.mxu0 0.0
  %2550 = vmatprep.subr.mxu0 0.0
  %2551 = vmatpush1.msra.mxu0 0.0
  %2552 = vmatprep.subr.mxu0 0.0
  %2553 = vmatpush1.msra.mxu0 0.0
  %2554 = vmatprep.subr.mxu0 0.0
  %2555 = vmatpush1.msra.mxu0 0.0
  %2556 = vmatprep.subr.mxu0 0.0
  %2557 = vmatpush1.msra.mxu0 0.0
  %2558 = vmatprep.mubr.f32.mxu0 0.0
  %2559 = vmatmul.mubr.f32.gmra.mrb[0].mxu0 %v2421
  %v2560 = vpop.f32.mrb[0].mxu0
  %v2561 = vadd.f32 0.0, %v2560
  %v2562 = vpop.f32.mrb[0].mxu0
  %v2563 = vadd.f32 0.0, %v2562
  %2564 = vdwg.mxu0
  %2565 = vmatprep.subr.mxu0 0.0
  %2566 = vmatpush1.msra.mxu0 %v2410
  %2567 = vmatprep.subr.mxu0 0.0
  %2568 = vmatpush1.msra.mxu0 0.0
  %2569 = vmatprep.subr.mxu0 0.0
  %2570 = vmatpush1.msra.mxu0 0.0
  %2571 = vmatprep.subr.mxu0 0.0
  %2572 = vmatpush1.msra.mxu0 0.0
  %2573 = vmatprep.subr.mxu0 0.0
  %2574 = vmatpush1.msra.mxu0 0.0
  %2575 = vmatprep.subr.mxu0 0.0
  %2576 = vmatpush1.msra.mxu0 0.0
  %2577 = vmatprep.subr.mxu0 0.0
  %2578 = vmatpush1.msra.mxu0 0.0
  %2579 = vmatprep.subr.mxu0 0.0
  %2580 = vmatpush1.msra.mxu0 0.0
  %2581 = vmatprep.subr.mxu0 0.0
  %2582 = vmatpush1.msra.mxu0 0.0
  %2583 = vmatprep.subr.mxu0 0.0
  %2584 = vmatpush1.msra.mxu0 0.0
  %2585 = vmatprep.subr.mxu0 0.0
  %2586 = vmatpush1.msra.mxu0 0.0
  %2587 = vmatprep.subr.mxu0 0.0
  %2588 = vmatpush1.msra.mxu0 0.0
  %2589 = vmatprep.subr.mxu0 0.0
  %2590 = vmatpush1.msra.mxu0 0.0
  %2591 = vmatprep.subr.mxu0 0.0
  %2592 = vmatpush1.msra.mxu0 0.0
  %2593 = vmatprep.subr.mxu0 0.0
  %2594 = vmatpush1.msra.mxu0 0.0
  %2595 = vmatprep.subr.mxu0 0.0
  %2596 = vmatpush1.msra.mxu0 0.0
  %2597 = vmatprep.subr.mxu0 0.0
  %2598 = vmatpush1.msra.mxu0 0.0
  %2599 = vmatprep.subr.mxu0 0.0
  %2600 = vmatpush1.msra.mxu0 0.0
  %2601 = vmatprep.subr.mxu0 0.0
  %2602 = vmatpush1.msra.mxu0 0.0
  %2603 = vmatprep.subr.mxu0 0.0
  %2604 = vmatpush1.msra.mxu0 0.0
  %2605 = vmatprep.subr.mxu0 0.0
  %2606 = vmatpush1.msra.mxu0 0.0
  %2607 = vmatprep.subr.mxu0 0.0
  %2608 = vmatpush1.msra.mxu0 0.0
  %2609 = vmatprep.subr.mxu0 0.0
  %2610 = vmatpush1.msra.mxu0 0.0
  %2611 = vmatprep.subr.mxu0 0.0
  %2612 = vmatpush1.msra.mxu0 0.0
  %2613 = vmatprep.subr.mxu0 0.0
  %2614 = vmatpush1.msra.mxu0 0.0
  %2615 = vmatprep.subr.mxu0 0.0
  %2616 = vmatpush1.msra.mxu0 0.0
  %2617 = vmatprep.subr.mxu0 0.0
  %2618 = vmatpush1.msra.mxu0 0.0
  %2619 = vmatprep.subr.mxu0 0.0
  %2620 = vmatpush1.msra.mxu0 0.0
  %2621 = vmatprep.subr.mxu0 0.0
  %2622 = vmatpush1.msra.mxu0 0.0
  %2623 = vmatprep.subr.mxu0 0.0
  %2624 = vmatpush1.msra.mxu0 0.0
  %2625 = vmatprep.subr.mxu0 0.0
  %2626 = vmatpush1.msra.mxu0 0.0
  %2627 = vmatprep.subr.mxu0 0.0
  %2628 = vmatpush1.msra.mxu0 0.0
  %2629 = vmatprep.mubr.f32.mxu0 0.0
  %2630 = vmatmul.mubr.f32.gmra.mrb[0].mxu0 %v2421
  %v2631 = vpop.f32.mrb[0].mxu0
  %v2632 = vadd.f32 0.0, %v2631
  %v2633 = vpop.f32.mrb[0].mxu0
  %2634 = vdwg.mxu0
  %v2636 = vsel %vm2354, %v2388, 0
  %2638 = vmatprep.subr.mxu0 %v2390
  %2639 = vmatpush1.msra.mxu0 %v2389
  %2640 = vmatprep.subr.mxu0 0.0
  %2641 = vmatpush1.msra.mxu0 0.0
  %2642 = vmatprep.subr.mxu0 0.0
  %2643 = vmatpush1.msra.mxu0 0.0
  %2644 = vmatprep.subr.mxu0 0.0
  %2645 = vmatpush1.msra.mxu0 0.0
  %2646 = vmatprep.subr.mxu0 0.0
  %2647 = vmatpush1.msra.mxu0 0.0
  %2648 = vmatprep.subr.mxu0 0.0
  %2649 = vmatpush1.msra.mxu0 0.0
  %2650 = vmatprep.subr.mxu0 0.0
  %2651 = vmatpush1.msra.mxu0 0.0
  %2652 = vmatprep.subr.mxu0 0.0
  %2653 = vmatpush1.msra.mxu0 0.0
  %2654 = vmatprep.subr.mxu0 0.0
  %2655 = vmatpush1.msra.mxu0 0.0
  %2656 = vmatprep.subr.mxu0 0.0
  %2657 = vmatpush1.msra.mxu0 0.0
  %2658 = vmatprep.subr.mxu0 0.0
  %2659 = vmatpush1.msra.mxu0 0.0
  %2660 = vmatprep.subr.mxu0 0.0
  %2661 = vmatpush1.msra.mxu0 0.0
  %2662 = vmatprep.subr.mxu0 0.0
  %2663 = vmatpush1.msra.mxu0 0.0
  %2664 = vmatprep.subr.mxu0 0.0
  %2665 = vmatpush1.msra.mxu0 0.0
  %2666 = vmatprep.subr.mxu0 0.0
  %2667 = vmatpush1.msra.mxu0 0.0
  %2668 = vmatprep.subr.mxu0 0.0
  %2669 = vmatpush1.msra.mxu0 0.0
  %2670 = vmatprep.subr.mxu0 0.0
  %2671 = vmatpush1.msra.mxu0 0.0
  %2672 = vmatprep.subr.mxu0 0.0
  %2673 = vmatpush1.msra.mxu0 0.0
  %2674 = vmatprep.subr.mxu0 0.0
  %2675 = vmatpush1.msra.mxu0 0.0
  %2676 = vmatprep.subr.mxu0 0.0
  %2677 = vmatpush1.msra.mxu0 0.0
  %2678 = vmatprep.subr.mxu0 0.0
  %2679 = vmatpush1.msra.mxu0 0.0
  %2680 = vmatprep.subr.mxu0 0.0
  %2681 = vmatpush1.msra.mxu0 0.0
  %2682 = vmatprep.subr.mxu0 0.0
  %2683 = vmatpush1.msra.mxu0 0.0
  %2684 = vmatprep.subr.mxu0 0.0
  %2685 = vmatpush1.msra.mxu0 0.0
  %2686 = vmatprep.subr.mxu0 0.0
  %2687 = vmatpush1.msra.mxu0 0.0
  %2688 = vmatprep.subr.mxu0 0.0
  %2689 = vmatpush1.msra.mxu0 0.0
  %2690 = vmatprep.subr.mxu0 0.0
  %2691 = vmatpush1.msra.mxu0 0.0
  %2692 = vmatprep.subr.mxu0 0.0
  %2693 = vmatpush1.msra.mxu0 0.0
  %2694 = vmatprep.subr.mxu0 0.0
  %2695 = vmatpush1.msra.mxu0 0.0
  %2696 = vmatprep.subr.mxu0 0.0
  %2697 = vmatpush1.msra.mxu0 0.0
  %2698 = vmatprep.subr.mxu0 0.0
  %2699 = vmatpush1.msra.mxu0 0.0
  %2700 = vmatprep.subr.mxu0 0.0
  %2701 = vmatpush1.msra.mxu0 0.0
  %2702 = vmatprep.mubr.f32.mxu0 0.0
  %2703 = vmatmul.mubr.f32.gmra.mrb[0].mxu0 %v2636
  %v2704 = vpop.f32.mrb[0].mxu0
  %v2705 = vadd.f32 %v2490, %v2704
  %v2706 = vpop.f32.mrb[0].mxu0
  %v2707 = vadd.f32 %v2492, %v2706
  %2708 = vdwg.mxu0
  %2709 = vmatprep.subr.mxu0 %v2392
  %2710 = vmatpush1.msra.mxu0 %v2391
  %2711 = vmatprep.subr.mxu0 0.0
  %2712 = vmatpush1.msra.mxu0 0.0
  %2713 = vmatprep.subr.mxu0 0.0
  %2714 = vmatpush1.msra.mxu0 0.0
  %2715 = vmatprep.subr.mxu0 0.0
  %2716 = vmatpush1.msra.mxu0 0.0
  %2717 = vmatprep.subr.mxu0 0.0
  %2718 = vmatpush1.msra.mxu0 0.0
  %2719 = vmatprep.subr.mxu0 0.0
  %2720 = vmatpush1.msra.mxu0 0.0
  %2721 = vmatprep.subr.mxu0 0.0
  %2722 = vmatpush1.msra.mxu0 0.0
  %2723 = vmatprep.subr.mxu0 0.0
  %2724 = vmatpush1.msra.mxu0 0.0
  %2725 = vmatprep.subr.mxu0 0.0
  %2726 = vmatpush1.msra.mxu0 0.0
  %2727 = vmatprep.subr.mxu0 0.0
  %2728 = vmatpush1.msra.mxu0 0.0
  %2729 = vmatprep.subr.mxu0 0.0
  %2730 = vmatpush1.msra.mxu0 0.0
  %2731 = vmatprep.subr.mxu0 0.0
  %2732 = vmatpush1.msra.mxu0 0.0
  %2733 = vmatprep.subr.mxu0 0.0
  %2734 = vmatpush1.msra.mxu0 0.0
  %2735 = vmatprep.subr.mxu0 0.0
  %2736 = vmatpush1.msra.mxu0 0.0
  %2737 = vmatprep.subr.mxu0 0.0
  %2738 = vmatpush1.msra.mxu0 0.0
  %2739 = vmatprep.subr.mxu0 0.0
  %2740 = vmatpush1.msra.mxu0 0.0
  %2741 = vmatprep.subr.mxu0 0.0
  %2742 = vmatpush1.msra.mxu0 0.0
  %2743 = vmatprep.subr.mxu0 0.0
  %2744 = vmatpush1.msra.mxu0 0.0
  %2745 = vmatprep.subr.mxu0 0.0
  %2746 = vmatpush1.msra.mxu0 0.0
  %2747 = vmatprep.subr.mxu0 0.0
  %2748 = vmatpush1.msra.mxu0 0.0
  %2749 = vmatprep.subr.mxu0 0.0
  %2750 = vmatpush1.msra.mxu0 0.0
  %2751 = vmatprep.subr.mxu0 0.0
  %2752 = vmatpush1.msra.mxu0 0.0
  %2753 = vmatprep.subr.mxu0 0.0
  %2754 = vmatpush1.msra.mxu0 0.0
  %2755 = vmatprep.subr.mxu0 0.0
  %2756 = vmatpush1.msra.mxu0 0.0
  %2757 = vmatprep.subr.mxu0 0.0
  %2758 = vmatpush1.msra.mxu0 0.0
  %2759 = vmatprep.subr.mxu0 0.0
  %2760 = vmatpush1.msra.mxu0 0.0
  %2761 = vmatprep.subr.mxu0 0.0
  %2762 = vmatpush1.msra.mxu0 0.0
  %2763 = vmatprep.subr.mxu0 0.0
  %2764 = vmatpush1.msra.mxu0 0.0
  %2765 = vmatprep.subr.mxu0 0.0
  %2766 = vmatpush1.msra.mxu0 0.0
  %2767 = vmatprep.subr.mxu0 0.0
  %2768 = vmatpush1.msra.mxu0 0.0
  %2769 = vmatprep.subr.mxu0 0.0
  %2770 = vmatpush1.msra.mxu0 0.0
  %2771 = vmatprep.subr.mxu0 0.0
  %2772 = vmatpush1.msra.mxu0 0.0
  %2773 = vmatprep.mubr.f32.mxu0 0.0
  %2774 = vmatmul.mubr.f32.gmra.mrb[0].mxu0 %v2636
  %v2775 = vpop.f32.mrb[0].mxu0
  %v2776 = vadd.f32 %v2561, %v2775
  %v2777 = vpop.f32.mrb[0].mxu0
  %v2778 = vadd.f32 %v2563, %v2777
  %2779 = vdwg.mxu0
  %2780 = vmatprep.subr.mxu0 0.0
  %2781 = vmatpush1.msra.mxu0 %v2393
  %2782 = vmatprep.subr.mxu0 0.0
  %2783 = vmatpush1.msra.mxu0 0.0
  %2784 = vmatprep.subr.mxu0 0.0
  %2785 = vmatpush1.msra.mxu0 0.0
  %2786 = vmatprep.subr.mxu0 0.0
  %2787 = vmatpush1.msra.mxu0 0.0
  %2788 = vmatprep.subr.mxu0 0.0
  %2789 = vmatpush1.msra.mxu0 0.0
  %2790 = vmatprep.subr.mxu0 0.0
  %2791 = vmatpush1.msra.mxu0 0.0
  %2792 = vmatprep.subr.mxu0 0.0
  %2793 = vmatpush1.msra.mxu0 0.0
  %2794 = vmatprep.subr.mxu0 0.0
  %2795 = vmatpush1.msra.mxu0 0.0
  %2796 = vmatprep.subr.mxu0 0.0
  %2797 = vmatpush1.msra.mxu0 0.0
  %2798 = vmatprep.subr.mxu0 0.0
  %2799 = vmatpush1.msra.mxu0 0.0
  %2800 = vmatprep.subr.mxu0 0.0
  %2801 = vmatpush1.msra.mxu0 0.0
  %2802 = vmatprep.subr.mxu0 0.0
  %2803 = vmatpush1.msra.mxu0 0.0
  %2804 = vmatprep.subr.mxu0 0.0
  %2805 = vmatpush1.msra.mxu0 0.0
  %2806 = vmatprep.subr.mxu0 0.0
  %2807 = vmatpush1.msra.mxu0 0.0
  %2808 = vmatprep.subr.mxu0 0.0
  %2809 = vmatpush1.msra.mxu0 0.0
  %2810 = vmatprep.subr.mxu0 0.0
  %2811 = vmatpush1.msra.mxu0 0.0
  %2812 = vmatprep.subr.mxu0 0.0
  %2813 = vmatpush1.msra.mxu0 0.0
  %2814 = vmatprep.subr.mxu0 0.0
  %2815 = vmatpush1.msra.mxu0 0.0
  %2816 = vmatprep.subr.mxu0 0.0
  %2817 = vmatpush1.msra.mxu0 0.0
  %2818 = vmatprep.subr.mxu0 0.0
  %2819 = vmatpush1.msra.mxu0 0.0
  %2820 = vmatprep.subr.mxu0 0.0
  %2821 = vmatpush1.msra.mxu0 0.0
  %2822 = vmatprep.subr.mxu0 0.0
  %2823 = vmatpush1.msra.mxu0 0.0
  %2824 = vmatprep.subr.mxu0 0.0
  %2825 = vmatpush1.msra.mxu0 0.0
  %2826 = vmatprep.subr.mxu0 0.0
  %2827 = vmatpush1.msra.mxu0 0.0
  %2828 = vmatprep.subr.mxu0 0.0
  %2829 = vmatpush1.msra.mxu0 0.0
  %2830 = vmatprep.subr.mxu0 0.0
  %2831 = vmatpush1.msra.mxu0 0.0
  %2832 = vmatprep.subr.mxu0 0.0
  %2833 = vmatpush1.msra.mxu0 0.0
  %2834 = vmatprep.subr.mxu0 0.0
  %2835 = vmatpush1.msra.mxu0 0.0
  %2836 = vmatprep.subr.mxu0 0.0
  %2837 = vmatpush1.msra.mxu0 0.0
  %2838 = vmatprep.subr.mxu0 0.0
  %2839 = vmatpush1.msra.mxu0 0.0
  %2840 = vmatprep.subr.mxu0 0.0
  %2841 = vmatpush1.msra.mxu0 0.0
  %2842 = vmatprep.subr.mxu0 0.0
  %2843 = vmatpush1.msra.mxu0 0.0
  %2844 = vmatprep.mubr.f32.mxu0 0.0
  %2845 = vmatmul.mubr.f32.gmra.mrb[0].mxu0 %v2636
  %v2846 = vpop.f32.mrb[0].mxu0
  %v2847 = vadd.f32 %v2632, %v2846
  %v2848 = vpop.f32.mrb[0].mxu0
  %2849 = vdwg.mxu0
  %s2850 = scalar_lea.vmem %s3, 8
  %v2851 = vld [vmem:[%s2850] sm:$0xf]
  %2852 = vrot.lane.b32.xlu0 %v2389, 126
  %v2853 = vpop.permute.xlu0 %2852
  %2854 = vrot.lane.b32.xlu0 %v2390, 126
  %v2855 = vpop.permute.xlu0 %2854
  %2856 = vrot.lane.b32.xlu0 %v2391, 126
  %v2857 = vpop.permute.xlu0 %2856
  %2858 = vrot.lane.b32.xlu0 %v2392, 126
  %v2859 = vpop.permute.xlu0 %2858
  %2860 = vrot.lane.b32.xlu0 %v2393, 126
  %v2861 = vpop.permute.xlu0 %2860
  %v2862 = vsel %vm524, %v2853, %v2855
  %v2863 = vsel %vm524, %v2855, %v2857
  %v2864 = vsel %vm524, %v2857, %v2859
  %v2865 = vsel %vm524, %v2859, %v2861
  %v2872 = vsel %vm2354, %v2851, 0
  %2874 = vmatprep.subr.mxu0 %v2863
  %2875 = vmatpush1.msra.mxu0 %v2862
  %2876 = vmatprep.subr.mxu0 0.0
  %2877 = vmatpush1.msra.mxu0 0.0
  %2878 = vmatprep.subr.mxu0 0.0
  %2879 = vmatpush1.msra.mxu0 0.0
  %2880 = vmatprep.subr.mxu0 0.0
  %2881 = vmatpush1.msra.mxu0 0.0
  %2882 = vmatprep.subr.mxu0 0.0
  %2883 = vmatpush1.msra.mxu0 0.0
  %2884 = vmatprep.subr.mxu0 0.0
  %2885 = vmatpush1.msra.mxu0 0.0
  %2886 = vmatprep.subr.mxu0 0.0
  %2887 = vmatpush1.msra.mxu0 0.0
  %2888 = vmatprep.subr.mxu0 0.0
  %2889 = vmatpush1.msra.mxu0 0.0
  %2890 = vmatprep.subr.mxu0 0.0
  %2891 = vmatpush1.msra.mxu0 0.0
  %2892 = vmatprep.subr.mxu0 0.0
  %2893 = vmatpush1.msra.mxu0 0.0
  %2894 = vmatprep.subr.mxu0 0.0
  %2895 = vmatpush1.msra.mxu0 0.0
  %2896 = vmatprep.subr.mxu0 0.0
  %2897 = vmatpush1.msra.mxu0 0.0
  %2898 = vmatprep.subr.mxu0 0.0
  %2899 = vmatpush1.msra.mxu0 0.0
  %2900 = vmatprep.subr.mxu0 0.0
  %2901 = vmatpush1.msra.mxu0 0.0
  %2902 = vmatprep.subr.mxu0 0.0
  %2903 = vmatpush1.msra.mxu0 0.0
  %2904 = vmatprep.subr.mxu0 0.0
  %2905 = vmatpush1.msra.mxu0 0.0
  %2906 = vmatprep.subr.mxu0 0.0
  %2907 = vmatpush1.msra.mxu0 0.0
  %2908 = vmatprep.subr.mxu0 0.0
  %2909 = vmatpush1.msra.mxu0 0.0
  %2910 = vmatprep.subr.mxu0 0.0
  %2911 = vmatpush1.msra.mxu0 0.0
  %2912 = vmatprep.subr.mxu0 0.0
  %2913 = vmatpush1.msra.mxu0 0.0
  %2914 = vmatprep.subr.mxu0 0.0
  %2915 = vmatpush1.msra.mxu0 0.0
  %2916 = vmatprep.subr.mxu0 0.0
  %2917 = vmatpush1.msra.mxu0 0.0
  %2918 = vmatprep.subr.mxu0 0.0
  %2919 = vmatpush1.msra.mxu0 0.0
  %2920 = vmatprep.subr.mxu0 0.0
  %2921 = vmatpush1.msra.mxu0 0.0
  %2922 = vmatprep.subr.mxu0 0.0
  %2923 = vmatpush1.msra.mxu0 0.0
  %2924 = vmatprep.subr.mxu0 0.0
  %2925 = vmatpush1.msra.mxu0 0.0
  %2926 = vmatprep.subr.mxu0 0.0
  %2927 = vmatpush1.msra.mxu0 0.0
  %2928 = vmatprep.subr.mxu0 0.0
  %2929 = vmatpush1.msra.mxu0 0.0
  %2930 = vmatprep.subr.mxu0 0.0
  %2931 = vmatpush1.msra.mxu0 0.0
  %2932 = vmatprep.subr.mxu0 0.0
  %2933 = vmatpush1.msra.mxu0 0.0
  %2934 = vmatprep.subr.mxu0 0.0
  %2935 = vmatpush1.msra.mxu0 0.0
  %2936 = vmatprep.subr.mxu0 0.0
  %2937 = vmatpush1.msra.mxu0 0.0
  %2938 = vmatprep.mubr.f32.mxu0 0.0
  %2939 = vmatmul.mubr.f32.gmra.mrb[0].mxu0 %v2872
  %v2940 = vpop.f32.mrb[0].mxu0
  %v2941 = vadd.f32 0.0, %v2940
  %v2942 = vpop.f32.mrb[0].mxu0
  %v2943 = vadd.f32 0.0, %v2942
  %2944 = vdwg.mxu0
  %2945 = vmatprep.subr.mxu0 %v2865
  %2946 = vmatpush1.msra.mxu0 %v2864
  %2947 = vmatprep.subr.mxu0 0.0
  %2948 = vmatpush1.msra.mxu0 0.0
  %2949 = vmatprep.subr.mxu0 0.0
  %2950 = vmatpush1.msra.mxu0 0.0
  %2951 = vmatprep.subr.mxu0 0.0
  %2952 = vmatpush1.msra.mxu0 0.0
  %2953 = vmatprep.subr.mxu0 0.0
  %2954 = vmatpush1.msra.mxu0 0.0
  %2955 = vmatprep.subr.mxu0 0.0
  %2956 = vmatpush1.msra.mxu0 0.0
  %2957 = vmatprep.subr.mxu0 0.0
  %2958 = vmatpush1.msra.mxu0 0.0
  %2959 = vmatprep.subr.mxu0 0.0
  %2960 = vmatpush1.msra.mxu0 0.0
  %2961 = vmatprep.subr.mxu0 0.0
  %2962 = vmatpush1.msra.mxu0 0.0
  %2963 = vmatprep.subr.mxu0 0.0
  %2964 = vmatpush1.msra.mxu0 0.0
  %2965 = vmatprep.subr.mxu0 0.0
  %2966 = vmatpush1.msra.mxu0 0.0
  %2967 = vmatprep.subr.mxu0 0.0
  %2968 = vmatpush1.msra.mxu0 0.0
  %2969 = vmatprep.subr.mxu0 0.0
  %2970 = vmatpush1.msra.mxu0 0.0
  %2971 = vmatprep.subr.mxu0 0.0
  %2972 = vmatpush1.msra.mxu0 0.0
  %2973 = vmatprep.subr.mxu0 0.0
  %2974 = vmatpush1.msra.mxu0 0.0
  %2975 = vmatprep.subr.mxu0 0.0
  %2976 = vmatpush1.msra.mxu0 0.0
  %2977 = vmatprep.subr.mxu0 0.0
  %2978 = vmatpush1.msra.mxu0 0.0
  %2979 = vmatprep.subr.mxu0 0.0
  %2980 = vmatpush1.msra.mxu0 0.0
  %2981 = vmatprep.subr.mxu0 0.0
  %2982 = vmatpush1.msra.mxu0 0.0
  %2983 = vmatprep.subr.mxu0 0.0
  %2984 = vmatpush1.msra.mxu0 0.0
  %2985 = vmatprep.subr.mxu0 0.0
  %2986 = vmatpush1.msra.mxu0 0.0
  %2987 = vmatprep.subr.mxu0 0.0
  %2988 = vmatpush1.msra.mxu0 0.0
  %2989 = vmatprep.subr.mxu0 0.0
  %2990 = vmatpush1.msra.mxu0 0.0
  %2991 = vmatprep.subr.mxu0 0.0
  %2992 = vmatpush1.msra.mxu0 0.0
  %2993 = vmatprep.subr.mxu0 0.0
  %2994 = vmatpush1.msra.mxu0 0.0
  %2995 = vmatprep.subr.mxu0 0.0
  %2996 = vmatpush1.msra.mxu0 0.0
  %2997 = vmatprep.subr.mxu0 0.0
  %2998 = vmatpush1.msra.mxu0 0.0
  %2999 = vmatprep.subr.mxu0 0.0
  %3000 = vmatpush1.msra.mxu0 0.0
  %3001 = vmatprep.subr.mxu0 0.0
  %3002 = vmatpush1.msra.mxu0 0.0
  %3003 = vmatprep.subr.mxu0 0.0
  %3004 = vmatpush1.msra.mxu0 0.0
  %3005 = vmatprep.subr.mxu0 0.0
  %3006 = vmatpush1.msra.mxu0 0.0
  %3007 = vmatprep.subr.mxu0 0.0
  %3008 = vmatpush1.msra.mxu0 0.0
  %3009 = vmatprep.mubr.f32.mxu0 0.0
  %3010 = vmatmul.mubr.f32.gmra.mrb[0].mxu0 %v2872
  %v3011 = vpop.f32.mrb[0].mxu0
  %v3012 = vadd.f32 0.0, %v3011
  %v3013 = vpop.f32.mrb[0].mxu0
  %v3014 = vadd.f32 0.0, %v3013
  %3015 = vdwg.mxu0
  %3016 = vmatprep.subr.mxu0 0.0
  %3017 = vmatpush1.msra.mxu0 %v2861
  %3018 = vmatprep.subr.mxu0 0.0
  %3019 = vmatpush1.msra.mxu0 0.0
  %3020 = vmatprep.subr.mxu0 0.0
  %3021 = vmatpush1.msra.mxu0 0.0
  %3022 = vmatprep.subr.mxu0 0.0
  %3023 = vmatpush1.msra.mxu0 0.0
  %3024 = vmatprep.subr.mxu0 0.0
  %3025 = vmatpush1.msra.mxu0 0.0
  %3026 = vmatprep.subr.mxu0 0.0
  %3027 = vmatpush1.msra.mxu0 0.0
  %3028 = vmatprep.subr.mxu0 0.0
  %3029 = vmatpush1.msra.mxu0 0.0
  %3030 = vmatprep.subr.mxu0 0.0
  %3031 = vmatpush1.msra.mxu0 0.0
  %3032 = vmatprep.subr.mxu0 0.0
  %3033 = vmatpush1.msra.mxu0 0.0
  %3034 = vmatprep.subr.mxu0 0.0
  %3035 = vmatpush1.msra.mxu0 0.0
  %3036 = vmatprep.subr.mxu0 0.0
  %3037 = vmatpush1.msra.mxu0 0.0
  %3038 = vmatprep.subr.mxu0 0.0
  %3039 = vmatpush1.msra.mxu0 0.0
  %3040 = vmatprep.subr.mxu0 0.0
  %3041 = vmatpush1.msra.mxu0 0.0
  %3042 = vmatprep.subr.mxu0 0.0
  %3043 = vmatpush1.msra.mxu0 0.0
  %3044 = vmatprep.subr.mxu0 0.0
  %3045 = vmatpush1.msra.mxu0 0.0
  %3046 = vmatprep.subr.mxu0 0.0
  %3047 = vmatpush1.msra.mxu0 0.0
  %3048 = vmatprep.subr.mxu0 0.0
  %3049 = vmatpush1.msra.mxu0 0.0
  %3050 = vmatprep.subr.mxu0 0.0
  %3051 = vmatpush1.msra.mxu0 0.0
  %3052 = vmatprep.subr.mxu0 0.0
  %3053 = vmatpush1.msra.mxu0 0.0
  %3054 = vmatprep.subr.mxu0 0.0
  %3055 = vmatpush1.msra.mxu0 0.0
  %3056 = vmatprep.subr.mxu0 0.0
  %3057 = vmatpush1.msra.mxu0 0.0
  %3058 = vmatprep.subr.mxu0 0.0
  %3059 = vmatpush1.msra.mxu0 0.0
  %3060 = vmatprep.subr.mxu0 0.0
  %3061 = vmatpush1.msra.mxu0 0.0
  %3062 = vmatprep.subr.mxu0 0.0
  %3063 = vmatpush1.msra.mxu0 0.0
  %3064 = vmatprep.subr.mxu0 0.0
  %3065 = vmatpush1.msra.mxu0 0.0
  %3066 = vmatprep.subr.mxu0 0.0
  %3067 = vmatpush1.msra.mxu0 0.0
  %3068 = vmatprep.subr.mxu0 0.0
  %3069 = vmatpush1.msra.mxu0 0.0
  %3070 = vmatprep.subr.mxu0 0.0
  %3071 = vmatpush1.msra.mxu0 0.0
  %3072 = vmatprep.subr.mxu0 0.0
  %3073 = vmatpush1.msra.mxu0 0.0
  %3074 = vmatprep.subr.mxu0 0.0
  %3075 = vmatpush1.msra.mxu0 0.0
  %3076 = vmatprep.subr.mxu0 0.0
  %3077 = vmatpush1.msra.mxu0 0.0
  %3078 = vmatprep.subr.mxu0 0.0
  %3079 = vmatpush1.msra.mxu0 0.0
  %3080 = vmatprep.mubr.f32.mxu0 0.0
  %3081 = vmatmul.mubr.f32.gmra.mrb[0].mxu0 %v2872
  %v3082 = vpop.f32.mrb[0].mxu0
  %v3083 = vadd.f32 0.0, %v3082
  %v3084 = vpop.f32.mrb[0].mxu0
  %3085 = vdwg.mxu0
  %v3086 = vadd.f32 %v2705, %v2941
  %v3087 = vadd.f32 %v2707, %v2943
  %v3088 = vadd.f32 %v2776, %v3012
  %v3089 = vadd.f32 %v2778, %v3014
  %v3090 = vadd.f32 %v2847, %v3083
  %s3091 = scalar_lea.vmem %s3, 12
  %v3092 = vld [vmem:[%s3091] sm:$0xf]
  %3093 = vrot.lane.b32.xlu0 %v2389, 110
  %v3094 = vpop.permute.xlu0 %3093
  %3095 = vrot.lane.b32.xlu0 %v2390, 110
  %v3096 = vpop.permute.xlu0 %3095
  %3097 = vrot.lane.b32.xlu0 %v2391, 110
  %v3098 = vpop.permute.xlu0 %3097
  %3099 = vrot.lane.b32.xlu0 %v2392, 110
  %v3100 = vpop.permute.xlu0 %3099
  %3101 = vrot.lane.b32.xlu0 %v2393, 110
  %v3102 = vpop.permute.xlu0 %3101
  %v3103 = vsel %vm779, %v3094, %v3096
  %v3104 = vsel %vm779, %v3096, %v3098
  %v3105 = vsel %vm779, %v3098, %v3100
  %v3106 = vsel %vm779, %v3100, %v3102
  %v3113 = vsel %vm2354, %v3092, 0
  %3115 = vmatprep.subr.mxu0 %v3104
  %3116 = vmatpush1.msra.mxu0 %v3103
  %3117 = vmatprep.subr.mxu0 0.0
  %3118 = vmatpush1.msra.mxu0 0.0
  %3119 = vmatprep.subr.mxu0 0.0
  %3120 = vmatpush1.msra.mxu0 0.0
  %3121 = vmatprep.subr.mxu0 0.0
  %3122 = vmatpush1.msra.mxu0 0.0
  %3123 = vmatprep.subr.mxu0 0.0
  %3124 = vmatpush1.msra.mxu0 0.0
  %3125 = vmatprep.subr.mxu0 0.0
  %3126 = vmatpush1.msra.mxu0 0.0
  %3127 = vmatprep.subr.mxu0 0.0
  %3128 = vmatpush1.msra.mxu0 0.0
  %3129 = vmatprep.subr.mxu0 0.0
  %3130 = vmatpush1.msra.mxu0 0.0
  %3131 = vmatprep.subr.mxu0 0.0
  %3132 = vmatpush1.msra.mxu0 0.0
  %3133 = vmatprep.subr.mxu0 0.0
  %3134 = vmatpush1.msra.mxu0 0.0
  %3135 = vmatprep.subr.mxu0 0.0
  %3136 = vmatpush1.msra.mxu0 0.0
  %3137 = vmatprep.subr.mxu0 0.0
  %3138 = vmatpush1.msra.mxu0 0.0
  %3139 = vmatprep.subr.mxu0 0.0
  %3140 = vmatpush1.msra.mxu0 0.0
  %3141 = vmatprep.subr.mxu0 0.0
  %3142 = vmatpush1.msra.mxu0 0.0
  %3143 = vmatprep.subr.mxu0 0.0
  %3144 = vmatpush1.msra.mxu0 0.0
  %3145 = vmatprep.subr.mxu0 0.0
  %3146 = vmatpush1.msra.mxu0 0.0
  %3147 = vmatprep.subr.mxu0 0.0
  %3148 = vmatpush1.msra.mxu0 0.0
  %3149 = vmatprep.subr.mxu0 0.0
  %3150 = vmatpush1.msra.mxu0 0.0
  %3151 = vmatprep.subr.mxu0 0.0
  %3152 = vmatpush1.msra.mxu0 0.0
  %3153 = vmatprep.subr.mxu0 0.0
  %3154 = vmatpush1.msra.mxu0 0.0
  %3155 = vmatprep.subr.mxu0 0.0
  %3156 = vmatpush1.msra.mxu0 0.0
  %3157 = vmatprep.subr.mxu0 0.0
  %3158 = vmatpush1.msra.mxu0 0.0
  %3159 = vmatprep.subr.mxu0 0.0
  %3160 = vmatpush1.msra.mxu0 0.0
  %3161 = vmatprep.subr.mxu0 0.0
  %3162 = vmatpush1.msra.mxu0 0.0
  %3163 = vmatprep.subr.mxu0 0.0
  %3164 = vmatpush1.msra.mxu0 0.0
  %3165 = vmatprep.subr.mxu0 0.0
  %3166 = vmatpush1.msra.mxu0 0.0
  %3167 = vmatprep.subr.mxu0 0.0
  %3168 = vmatpush1.msra.mxu0 0.0
  %3169 = vmatprep.subr.mxu0 0.0
  %3170 = vmatpush1.msra.mxu0 0.0
  %3171 = vmatprep.subr.mxu0 0.0
  %3172 = vmatpush1.msra.mxu0 0.0
  %3173 = vmatprep.subr.mxu0 0.0
  %3174 = vmatpush1.msra.mxu0 0.0
  %3175 = vmatprep.subr.mxu0 0.0
  %3176 = vmatpush1.msra.mxu0 0.0
  %3177 = vmatprep.subr.mxu0 0.0
  %3178 = vmatpush1.msra.mxu0 0.0
  %3179 = vmatprep.mubr.f32.mxu0 0.0
  %3180 = vmatmul.mubr.f32.gmra.mrb[0].mxu0 %v3113
  %v3181 = vpop.f32.mrb[0].mxu0
  %v3182 = vadd.f32 0.0, %v3181
  %v3183 = vpop.f32.mrb[0].mxu0
  %v3184 = vadd.f32 0.0, %v3183
  %3185 = vdwg.mxu0
  %3186 = vmatprep.subr.mxu0 %v3106
  %3187 = vmatpush1.msra.mxu0 %v3105
  %3188 = vmatprep.subr.mxu0 0.0
  %3189 = vmatpush1.msra.mxu0 0.0
  %3190 = vmatprep.subr.mxu0 0.0
  %3191 = vmatpush1.msra.mxu0 0.0
  %3192 = vmatprep.subr.mxu0 0.0
  %3193 = vmatpush1.msra.mxu0 0.0
  %3194 = vmatprep.subr.mxu0 0.0
  %3195 = vmatpush1.msra.mxu0 0.0
  %3196 = vmatprep.subr.mxu0 0.0
  %3197 = vmatpush1.msra.mxu0 0.0
  %3198 = vmatprep.subr.mxu0 0.0
  %3199 = vmatpush1.msra.mxu0 0.0
  %3200 = vmatprep.subr.mxu0 0.0
  %3201 = vmatpush1.msra.mxu0 0.0
  %3202 = vmatprep.subr.mxu0 0.0
  %3203 = vmatpush1.msra.mxu0 0.0
  %3204 = vmatprep.subr.mxu0 0.0
  %3205 = vmatpush1.msra.mxu0 0.0
  %3206 = vmatprep.subr.mxu0 0.0
  %3207 = vmatpush1.msra.mxu0 0.0
  %3208 = vmatprep.subr.mxu0 0.0
  %3209 = vmatpush1.msra.mxu0 0.0
  %3210 = vmatprep.subr.mxu0 0.0
  %3211 = vmatpush1.msra.mxu0 0.0
  %3212 = vmatprep.subr.mxu0 0.0
  %3213 = vmatpush1.msra.mxu0 0.0
  %3214 = vmatprep.subr.mxu0 0.0
  %3215 = vmatpush1.msra.mxu0 0.0
  %3216 = vmatprep.subr.mxu0 0.0
  %3217 = vmatpush1.msra.mxu0 0.0
  %3218 = vmatprep.subr.mxu0 0.0
  %3219 = vmatpush1.msra.mxu0 0.0
  %3220 = vmatprep.subr.mxu0 0.0
  %3221 = vmatpush1.msra.mxu0 0.0
  %3222 = vmatprep.subr.mxu0 0.0
  %3223 = vmatpush1.msra.mxu0 0.0
  %3224 = vmatprep.subr.mxu0 0.0
  %3225 = vmatpush1.msra.mxu0 0.0
  %3226 = vmatprep.subr.mxu0 0.0
  %3227 = vmatpush1.msra.mxu0 0.0
  %3228 = vmatprep.subr.mxu0 0.0
  %3229 = vmatpush1.msra.mxu0 0.0
  %3230 = vmatprep.subr.mxu0 0.0
  %3231 = vmatpush1.msra.mxu0 0.0
  %3232 = vmatprep.subr.mxu0 0.0
  %3233 = vmatpush1.msra.mxu0 0.0
  %3234 = vmatprep.subr.mxu0 0.0
  %3235 = vmatpush1.msra.mxu0 0.0
  %3236 = vmatprep.subr.mxu0 0.0
  %3237 = vmatpush1.msra.mxu0 0.0
  %3238 = vmatprep.subr.mxu0 0.0
  %3239 = vmatpush1.msra.mxu0 0.0
  %3240 = vmatprep.subr.mxu0 0.0
  %3241 = vmatpush1.msra.mxu0 0.0
  %3242 = vmatprep.subr.mxu0 0.0
  %3243 = vmatpush1.msra.mxu0 0.0
  %3244 = vmatprep.subr.mxu0 0.0
  %3245 = vmatpush1.msra.mxu0 0.0
  %3246 = vmatprep.subr.mxu0 0.0
  %3247 = vmatpush1.msra.mxu0 0.0
  %3248 = vmatprep.subr.mxu0 0.0
  %3249 = vmatpush1.msra.mxu0 0.0
  %3250 = vmatprep.mubr.f32.mxu0 0.0
  %3251 = vmatmul.mubr.f32.gmra.mrb[0].mxu0 %v3113
  %v3252 = vpop.f32.mrb[0].mxu0
  %v3253 = vadd.f32 0.0, %v3252
  %v3254 = vpop.f32.mrb[0].mxu0
  %v3255 = vadd.f32 0.0, %v3254
  %3256 = vdwg.mxu0
  %3257 = vmatprep.subr.mxu0 0.0
  %3258 = vmatpush1.msra.mxu0 %v3102
  %3259 = vmatprep.subr.mxu0 0.0
  %3260 = vmatpush1.msra.mxu0 0.0
  %3261 = vmatprep.subr.mxu0 0.0
  %3262 = vmatpush1.msra.mxu0 0.0
  %3263 = vmatprep.subr.mxu0 0.0
  %3264 = vmatpush1.msra.mxu0 0.0
  %3265 = vmatprep.subr.mxu0 0.0
  %3266 = vmatpush1.msra.mxu0 0.0
  %3267 = vmatprep.subr.mxu0 0.0
  %3268 = vmatpush1.msra.mxu0 0.0
  %3269 = vmatprep.subr.mxu0 0.0
  %3270 = vmatpush1.msra.mxu0 0.0
  %3271 = vmatprep.subr.mxu0 0.0
  %3272 = vmatpush1.msra.mxu0 0.0
  %3273 = vmatprep.subr.mxu0 0.0
  %3274 = vmatpush1.msra.mxu0 0.0
  %3275 = vmatprep.subr.mxu0 0.0
  %3276 = vmatpush1.msra.mxu0 0.0
  %3277 = vmatprep.subr.mxu0 0.0
  %3278 = vmatpush1.msra.mxu0 0.0
  %3279 = vmatprep.subr.mxu0 0.0
  %3280 = vmatpush1.msra.mxu0 0.0
  %3281 = vmatprep.subr.mxu0 0.0
  %3282 = vmatpush1.msra.mxu0 0.0
  %3283 = vmatprep.subr.mxu0 0.0
  %3284 = vmatpush1.msra.mxu0 0.0
  %3285 = vmatprep.subr.mxu0 0.0
  %3286 = vmatpush1.msra.mxu0 0.0
  %3287 = vmatprep.subr.mxu0 0.0
  %3288 = vmatpush1.msra.mxu0 0.0
  %3289 = vmatprep.subr.mxu0 0.0
  %3290 = vmatpush1.msra.mxu0 0.0
  %3291 = vmatprep.subr.mxu0 0.0
  %3292 = vmatpush1.msra.mxu0 0.0
  %3293 = vmatprep.subr.mxu0 0.0
  %3294 = vmatpush1.msra.mxu0 0.0
  %3295 = vmatprep.subr.mxu0 0.0
  %3296 = vmatpush1.msra.mxu0 0.0
  %3297 = vmatprep.subr.mxu0 0.0
  %3298 = vmatpush1.msra.mxu0 0.0
  %3299 = vmatprep.subr.mxu0 0.0
  %3300 = vmatpush1.msra.mxu0 0.0
  %3301 = vmatprep.subr.mxu0 0.0
  %3302 = vmatpush1.msra.mxu0 0.0
  %3303 = vmatprep.subr.mxu0 0.0
  %3304 = vmatpush1.msra.mxu0 0.0
  %3305 = vmatprep.subr.mxu0 0.0
  %3306 = vmatpush1.msra.mxu0 0.0
  %3307 = vmatprep.subr.mxu0 0.0
  %3308 = vmatpush1.msra.mxu0 0.0
  %3309 = vmatprep.subr.mxu0 0.0
  %3310 = vmatpush1.msra.mxu0 0.0
  %3311 = vmatprep.subr.mxu0 0.0
  %3312 = vmatpush1.msra.mxu0 0.0
  %3313 = vmatprep.subr.mxu0 0.0
  %3314 = vmatpush1.msra.mxu0 0.0
  %3315 = vmatprep.subr.mxu0 0.0
  %3316 = vmatpush1.msra.mxu0 0.0
  %3317 = vmatprep.subr.mxu0 0.0
  %3318 = vmatpush1.msra.mxu0 0.0
  %3319 = vmatprep.subr.mxu0 0.0
  %3320 = vmatpush1.msra.mxu0 0.0
  %3321 = vmatprep.mubr.f32.mxu0 0.0
  %3322 = vmatmul.mubr.f32.gmra.mrb[0].mxu0 %v3113
  %v3323 = vpop.f32.mrb[0].mxu0
  %v3324 = vadd.f32 0.0, %v3323
  %v3325 = vpop.f32.mrb[0].mxu0
  %3326 = vdwg.mxu0
  %v3327 = vadd.f32 %v3086, %v3182
  %v3328 = vadd.f32 %v3087, %v3184
  %v3329 = vadd.f32 %v3088, %v3253
  %v3330 = vadd.f32 %v3089, %v3255
  %v3331 = vadd.f32 %v3090, %v3324
  %s3332 = scalar_lea.vmem %s3, 16
  %v3333 = vld [vmem:[%s3332] sm:$0xf]
  %3334 = vrot.lane.b32.xlu0 %v2389, 109
  %v3335 = vpop.permute.xlu0 %3334
  %3336 = vrot.lane.b32.xlu0 %v2390, 109
  %v3337 = vpop.permute.xlu0 %3336
  %3338 = vrot.lane.b32.xlu0 %v2391, 109
  %v3339 = vpop.permute.xlu0 %3338
  %3340 = vrot.lane.b32.xlu0 %v2392, 109
  %v3341 = vpop.permute.xlu0 %3340
  %3342 = vrot.lane.b32.xlu0 %v2393, 109
  %v3343 = vpop.permute.xlu0 %3342
  %v3344 = vsel %vm1034, %v3335, %v3337
  %v3345 = vsel %vm1034, %v3337, %v3339
  %v3346 = vsel %vm1034, %v3339, %v3341
  %v3347 = vsel %vm1034, %v3341, %v3343
  %v3354 = vsel %vm2354, %v3333, 0
  %3356 = vmatprep.subr.mxu0 %v3345
  %3357 = vmatpush1.msra.mxu0 %v3344
  %3358 = vmatprep.subr.mxu0 0.0
  %3359 = vmatpush1.msra.mxu0 0.0
  %3360 = vmatprep.subr.mxu0 0.0
  %3361 = vmatpush1.msra.mxu0 0.0
  %3362 = vmatprep.subr.mxu0 0.0
  %3363 = vmatpush1.msra.mxu0 0.0
  %3364 = vmatprep.subr.mxu0 0.0
  %3365 = vmatpush1.msra.mxu0 0.0
  %3366 = vmatprep.subr.mxu0 0.0
  %3367 = vmatpush1.msra.mxu0 0.0
  %3368 = vmatprep.subr.mxu0 0.0
  %3369 = vmatpush1.msra.mxu0 0.0
  %3370 = vmatprep.subr.mxu0 0.0
  %3371 = vmatpush1.msra.mxu0 0.0
  %3372 = vmatprep.subr.mxu0 0.0
  %3373 = vmatpush1.msra.mxu0 0.0
  %3374 = vmatprep.subr.mxu0 0.0
  %3375 = vmatpush1.msra.mxu0 0.0
  %3376 = vmatprep.subr.mxu0 0.0
  %3377 = vmatpush1.msra.mxu0 0.0
  %3378 = vmatprep.subr.mxu0 0.0
  %3379 = vmatpush1.msra.mxu0 0.0
  %3380 = vmatprep.subr.mxu0 0.0
  %3381 = vmatpush1.msra.mxu0 0.0
  %3382 = vmatprep.subr.mxu0 0.0
  %3383 = vmatpush1.msra.mxu0 0.0
  %3384 = vmatprep.subr.mxu0 0.0
  %3385 = vmatpush1.msra.mxu0 0.0
  %3386 = vmatprep.subr.mxu0 0.0
  %3387 = vmatpush1.msra.mxu0 0.0
  %3388 = vmatprep.subr.mxu0 0.0
  %3389 = vmatpush1.msra.mxu0 0.0
  %3390 = vmatprep.subr.mxu0 0.0
  %3391 = vmatpush1.msra.mxu0 0.0
  %3392 = vmatprep.subr.mxu0 0.0
  %3393 = vmatpush1.msra.mxu0 0.0
  %3394 = vmatprep.subr.mxu0 0.0
  %3395 = vmatpush1.msra.mxu0 0.0
  %3396 = vmatprep.subr.mxu0 0.0
  %3397 = vmatpush1.msra.mxu0 0.0
  %3398 = vmatprep.subr.mxu0 0.0
  %3399 = vmatpush1.msra.mxu0 0.0
  %3400 = vmatprep.subr.mxu0 0.0
  %3401 = vmatpush1.msra.mxu0 0.0
  %3402 = vmatprep.subr.mxu0 0.0
  %3403 = vmatpush1.msra.mxu0 0.0
  %3404 = vmatprep.subr.mxu0 0.0
  %3405 = vmatpush1.msra.mxu0 0.0
  %3406 = vmatprep.subr.mxu0 0.0
  %3407 = vmatpush1.msra.mxu0 0.0
  %3408 = vmatprep.subr.mxu0 0.0
  %3409 = vmatpush1.msra.mxu0 0.0
  %3410 = vmatprep.subr.mxu0 0.0
  %3411 = vmatpush1.msra.mxu0 0.0
  %3412 = vmatprep.subr.mxu0 0.0
  %3413 = vmatpush1.msra.mxu0 0.0
  %3414 = vmatprep.subr.mxu0 0.0
  %3415 = vmatpush1.msra.mxu0 0.0
  %3416 = vmatprep.subr.mxu0 0.0
  %3417 = vmatpush1.msra.mxu0 0.0
  %3418 = vmatprep.subr.mxu0 0.0
  %3419 = vmatpush1.msra.mxu0 0.0
  %3420 = vmatprep.mubr.f32.mxu0 0.0
  %3421 = vmatmul.mubr.f32.gmra.mrb[0].mxu0 %v3354
  %v3422 = vpop.f32.mrb[0].mxu0
  %v3423 = vadd.f32 0.0, %v3422
  %v3424 = vpop.f32.mrb[0].mxu0
  %v3425 = vadd.f32 0.0, %v3424
  %3426 = vdwg.mxu0
  %3427 = vmatprep.subr.mxu0 %v3347
  %3428 = vmatpush1.msra.mxu0 %v3346
  %3429 = vmatprep.subr.mxu0 0.0
  %3430 = vmatpush1.msra.mxu0 0.0
  %3431 = vmatprep.subr.mxu0 0.0
  %3432 = vmatpush1.msra.mxu0 0.0
  %3433 = vmatprep.subr.mxu0 0.0
  %3434 = vmatpush1.msra.mxu0 0.0
  %3435 = vmatprep.subr.mxu0 0.0
  %3436 = vmatpush1.msra.mxu0 0.0
  %3437 = vmatprep.subr.mxu0 0.0
  %3438 = vmatpush1.msra.mxu0 0.0
  %3439 = vmatprep.subr.mxu0 0.0
  %3440 = vmatpush1.msra.mxu0 0.0
  %3441 = vmatprep.subr.mxu0 0.0
  %3442 = vmatpush1.msra.mxu0 0.0
  %3443 = vmatprep.subr.mxu0 0.0
  %3444 = vmatpush1.msra.mxu0 0.0
  %3445 = vmatprep.subr.mxu0 0.0
  %3446 = vmatpush1.msra.mxu0 0.0
  %3447 = vmatprep.subr.mxu0 0.0
  %3448 = vmatpush1.msra.mxu0 0.0
  %3449 = vmatprep.subr.mxu0 0.0
  %3450 = vmatpush1.msra.mxu0 0.0
  %3451 = vmatprep.subr.mxu0 0.0
  %3452 = vmatpush1.msra.mxu0 0.0
  %3453 = vmatprep.subr.mxu0 0.0
  %3454 = vmatpush1.msra.mxu0 0.0
  %3455 = vmatprep.subr.mxu0 0.0
  %3456 = vmatpush1.msra.mxu0 0.0
  %3457 = vmatprep.subr.mxu0 0.0
  %3458 = vmatpush1.msra.mxu0 0.0
  %3459 = vmatprep.subr.mxu0 0.0
  %3460 = vmatpush1.msra.mxu0 0.0
  %3461 = vmatprep.subr.mxu0 0.0
  %3462 = vmatpush1.msra.mxu0 0.0
  %3463 = vmatprep.subr.mxu0 0.0
  %3464 = vmatpush1.msra.mxu0 0.0
  %3465 = vmatprep.subr.mxu0 0.0
  %3466 = vmatpush1.msra.mxu0 0.0
  %3467 = vmatprep.subr.mxu0 0.0
  %3468 = vmatpush1.msra.mxu0 0.0
  %3469 = vmatprep.subr.mxu0 0.0
  %3470 = vmatpush1.msra.mxu0 0.0
  %3471 = vmatprep.subr.mxu0 0.0
  %3472 = vmatpush1.msra.mxu0 0.0
  %3473 = vmatprep.subr.mxu0 0.0
  %3474 = vmatpush1.msra.mxu0 0.0
  %3475 = vmatprep.subr.mxu0 0.0
  %3476 = vmatpush1.msra.mxu0 0.0
  %3477 = vmatprep.subr.mxu0 0.0
  %3478 = vmatpush1.msra.mxu0 0.0
  %3479 = vmatprep.subr.mxu0 0.0
  %3480 = vmatpush1.msra.mxu0 0.0
  %3481 = vmatprep.subr.mxu0 0.0
  %3482 = vmatpush1.msra.mxu0 0.0
  %3483 = vmatprep.subr.mxu0 0.0
  %3484 = vmatpush1.msra.mxu0 0.0
  %3485 = vmatprep.subr.mxu0 0.0
  %3486 = vmatpush1.msra.mxu0 0.0
  %3487 = vmatprep.subr.mxu0 0.0
  %3488 = vmatpush1.msra.mxu0 0.0
  %3489 = vmatprep.subr.mxu0 0.0
  %3490 = vmatpush1.msra.mxu0 0.0
  %3491 = vmatprep.mubr.f32.mxu0 0.0
  %3492 = vmatmul.mubr.f32.gmra.mrb[0].mxu0 %v3354
  %v3493 = vpop.f32.mrb[0].mxu0
  %v3494 = vadd.f32 0.0, %v3493
  %v3495 = vpop.f32.mrb[0].mxu0
  %v3496 = vadd.f32 0.0, %v3495
  %3497 = vdwg.mxu0
  %3498 = vmatprep.subr.mxu0 0.0
  %3499 = vmatpush1.msra.mxu0 %v3343
  %3500 = vmatprep.subr.mxu0 0.0
  %3501 = vmatpush1.msra.mxu0 0.0
  %3502 = vmatprep.subr.mxu0 0.0
  %3503 = vmatpush1.msra.mxu0 0.0
  %3504 = vmatprep.subr.mxu0 0.0
  %3505 = vmatpush1.msra.mxu0 0.0
  %3506 = vmatprep.subr.mxu0 0.0
  %3507 = vmatpush1.msra.mxu0 0.0
  %3508 = vmatprep.subr.mxu0 0.0
  %3509 = vmatpush1.msra.mxu0 0.0
  %3510 = vmatprep.subr.mxu0 0.0
  %3511 = vmatpush1.msra.mxu0 0.0
  %3512 = vmatprep.subr.mxu0 0.0
  %3513 = vmatpush1.msra.mxu0 0.0
  %3514 = vmatprep.subr.mxu0 0.0
  %3515 = vmatpush1.msra.mxu0 0.0
  %3516 = vmatprep.subr.mxu0 0.0
  %3517 = vmatpush1.msra.mxu0 0.0
  %3518 = vmatprep.subr.mxu0 0.0
  %3519 = vmatpush1.msra.mxu0 0.0
  %3520 = vmatprep.subr.mxu0 0.0
  %3521 = vmatpush1.msra.mxu0 0.0
  %3522 = vmatprep.subr.mxu0 0.0
  %3523 = vmatpush1.msra.mxu0 0.0
  %3524 = vmatprep.subr.mxu0 0.0
  %3525 = vmatpush1.msra.mxu0 0.0
  %3526 = vmatprep.subr.mxu0 0.0
  %3527 = vmatpush1.msra.mxu0 0.0
  %3528 = vmatprep.subr.mxu0 0.0
  %3529 = vmatpush1.msra.mxu0 0.0
  %3530 = vmatprep.subr.mxu0 0.0
  %3531 = vmatpush1.msra.mxu0 0.0
  %3532 = vmatprep.subr.mxu0 0.0
  %3533 = vmatpush1.msra.mxu0 0.0
  %3534 = vmatprep.subr.mxu0 0.0
  %3535 = vmatpush1.msra.mxu0 0.0
  %3536 = vmatprep.subr.mxu0 0.0
  %3537 = vmatpush1.msra.mxu0 0.0
  %3538 = vmatprep.subr.mxu0 0.0
  %3539 = vmatpush1.msra.mxu0 0.0
  %3540 = vmatprep.subr.mxu0 0.0
  %3541 = vmatpush1.msra.mxu0 0.0
  %3542 = vmatprep.subr.mxu0 0.0
  %3543 = vmatpush1.msra.mxu0 0.0
  %3544 = vmatprep.subr.mxu0 0.0
  %3545 = vmatpush1.msra.mxu0 0.0
  %3546 = vmatprep.subr.mxu0 0.0
  %3547 = vmatpush1.msra.mxu0 0.0
  %3548 = vmatprep.subr.mxu0 0.0
  %3549 = vmatpush1.msra.mxu0 0.0
  %3550 = vmatprep.subr.mxu0 0.0
  %3551 = vmatpush1.msra.mxu0 0.0
  %3552 = vmatprep.subr.mxu0 0.0
  %3553 = vmatpush1.msra.mxu0 0.0
  %3554 = vmatprep.subr.mxu0 0.0
  %3555 = vmatpush1.msra.mxu0 0.0
  %3556 = vmatprep.subr.mxu0 0.0
  %3557 = vmatpush1.msra.mxu0 0.0
  %3558 = vmatprep.subr.mxu0 0.0
  %3559 = vmatpush1.msra.mxu0 0.0
  %3560 = vmatprep.subr.mxu0 0.0
  %3561 = vmatpush1.msra.mxu0 0.0
  %3562 = vmatprep.mubr.f32.mxu0 0.0
  %3563 = vmatmul.mubr.f32.gmra.mrb[0].mxu0 %v3354
  %v3564 = vpop.f32.mrb[0].mxu0
  %v3565 = vadd.f32 0.0, %v3564
  %v3566 = vpop.f32.mrb[0].mxu0
  %3567 = vdwg.mxu0
  %v3568 = vadd.f32 %v3327, %v3423
  %v3569 = vadd.f32 %v3328, %v3425
  %v3570 = vadd.f32 %v3329, %v3494
  %v3571 = vadd.f32 %v3330, %v3496
  %v3572 = vadd.f32 %v3331, %v3565
  %s3573 = scalar_lea.vmem %s3, 20
  %v3574 = vld [vmem:[%s3573] sm:$0xf]
  %3575 = vrot.lane.b32.xlu0 %v2389, 108
  %v3576 = vpop.permute.xlu0 %3575
  %3577 = vrot.lane.b32.xlu0 %v2390, 108
  %v3578 = vpop.permute.xlu0 %3577
  %3579 = vrot.lane.b32.xlu0 %v2391, 108
  %v3580 = vpop.permute.xlu0 %3579
  %3581 = vrot.lane.b32.xlu0 %v2392, 108
  %v3582 = vpop.permute.xlu0 %3581
  %3583 = vrot.lane.b32.xlu0 %v2393, 108
  %v3584 = vpop.permute.xlu0 %3583
  %v3585 = vsel %vm1289, %v3576, %v3578
  %v3586 = vsel %vm1289, %v3578, %v3580
  %v3587 = vsel %vm1289, %v3580, %v3582
  %v3588 = vsel %vm1289, %v3582, %v3584
  %v3595 = vsel %vm2354, %v3574, 0
  %3597 = vmatprep.subr.mxu0 %v3586
  %3598 = vmatpush1.msra.mxu0 %v3585
  %3599 = vmatprep.subr.mxu0 0.0
  %3600 = vmatpush1.msra.mxu0 0.0
  %3601 = vmatprep.subr.mxu0 0.0
  %3602 = vmatpush1.msra.mxu0 0.0
  %3603 = vmatprep.subr.mxu0 0.0
  %3604 = vmatpush1.msra.mxu0 0.0
  %3605 = vmatprep.subr.mxu0 0.0
  %3606 = vmatpush1.msra.mxu0 0.0
  %3607 = vmatprep.subr.mxu0 0.0
  %3608 = vmatpush1.msra.mxu0 0.0
  %3609 = vmatprep.subr.mxu0 0.0
  %3610 = vmatpush1.msra.mxu0 0.0
  %3611 = vmatprep.subr.mxu0 0.0
  %3612 = vmatpush1.msra.mxu0 0.0
  %3613 = vmatprep.subr.mxu0 0.0
  %3614 = vmatpush1.msra.mxu0 0.0
  %3615 = vmatprep.subr.mxu0 0.0
  %3616 = vmatpush1.msra.mxu0 0.0
  %3617 = vmatprep.subr.mxu0 0.0
  %3618 = vmatpush1.msra.mxu0 0.0
  %3619 = vmatprep.subr.mxu0 0.0
  %3620 = vmatpush1.msra.mxu0 0.0
  %3621 = vmatprep.subr.mxu0 0.0
  %3622 = vmatpush1.msra.mxu0 0.0
  %3623 = vmatprep.subr.mxu0 0.0
  %3624 = vmatpush1.msra.mxu0 0.0
  %3625 = vmatprep.subr.mxu0 0.0
  %3626 = vmatpush1.msra.mxu0 0.0
  %3627 = vmatprep.subr.mxu0 0.0
  %3628 = vmatpush1.msra.mxu0 0.0
  %3629 = vmatprep.subr.mxu0 0.0
  %3630 = vmatpush1.msra.mxu0 0.0
  %3631 = vmatprep.subr.mxu0 0.0
  %3632 = vmatpush1.msra.mxu0 0.0
  %3633 = vmatprep.subr.mxu0 0.0
  %3634 = vmatpush1.msra.mxu0 0.0
  %3635 = vmatprep.subr.mxu0 0.0
  %3636 = vmatpush1.msra.mxu0 0.0
  %3637 = vmatprep.subr.mxu0 0.0
  %3638 = vmatpush1.msra.mxu0 0.0
  %3639 = vmatprep.subr.mxu0 0.0
  %3640 = vmatpush1.msra.mxu0 0.0
  %3641 = vmatprep.subr.mxu0 0.0
  %3642 = vmatpush1.msra.mxu0 0.0
  %3643 = vmatprep.subr.mxu0 0.0
  %3644 = vmatpush1.msra.mxu0 0.0
  %3645 = vmatprep.subr.mxu0 0.0
  %3646 = vmatpush1.msra.mxu0 0.0
  %3647 = vmatprep.subr.mxu0 0.0
  %3648 = vmatpush1.msra.mxu0 0.0
  %3649 = vmatprep.subr.mxu0 0.0
  %3650 = vmatpush1.msra.mxu0 0.0
  %3651 = vmatprep.subr.mxu0 0.0
  %3652 = vmatpush1.msra.mxu0 0.0
  %3653 = vmatprep.subr.mxu0 0.0
  %3654 = vmatpush1.msra.mxu0 0.0
  %3655 = vmatprep.subr.mxu0 0.0
  %3656 = vmatpush1.msra.mxu0 0.0
  %3657 = vmatprep.subr.mxu0 0.0
  %3658 = vmatpush1.msra.mxu0 0.0
  %3659 = vmatprep.subr.mxu0 0.0
  %3660 = vmatpush1.msra.mxu0 0.0
  %3661 = vmatprep.mubr.f32.mxu0 0.0
  %3662 = vmatmul.mubr.f32.gmra.mrb[0].mxu0 %v3595
  %v3663 = vpop.f32.mrb[0].mxu0
  %v3664 = vadd.f32 0.0, %v3663
  %v3665 = vpop.f32.mrb[0].mxu0
  %v3666 = vadd.f32 0.0, %v3665
  %3667 = vdwg.mxu0
  %3668 = vmatprep.subr.mxu0 %v3588
  %3669 = vmatpush1.msra.mxu0 %v3587
  %3670 = vmatprep.subr.mxu0 0.0
  %3671 = vmatpush1.msra.mxu0 0.0
  %3672 = vmatprep.subr.mxu0 0.0
  %3673 = vmatpush1.msra.mxu0 0.0
  %3674 = vmatprep.subr.mxu0 0.0
  %3675 = vmatpush1.msra.mxu0 0.0
  %3676 = vmatprep.subr.mxu0 0.0
  %3677 = vmatpush1.msra.mxu0 0.0
  %3678 = vmatprep.subr.mxu0 0.0
  %3679 = vmatpush1.msra.mxu0 0.0
  %3680 = vmatprep.subr.mxu0 0.0
  %3681 = vmatpush1.msra.mxu0 0.0
  %3682 = vmatprep.subr.mxu0 0.0
  %3683 = vmatpush1.msra.mxu0 0.0
  %3684 = vmatprep.subr.mxu0 0.0
  %3685 = vmatpush1.msra.mxu0 0.0
  %3686 = vmatprep.subr.mxu0 0.0
  %3687 = vmatpush1.msra.mxu0 0.0
  %3688 = vmatprep.subr.mxu0 0.0
  %3689 = vmatpush1.msra.mxu0 0.0
  %3690 = vmatprep.subr.mxu0 0.0
  %3691 = vmatpush1.msra.mxu0 0.0
  %3692 = vmatprep.subr.mxu0 0.0
  %3693 = vmatpush1.msra.mxu0 0.0
  %3694 = vmatprep.subr.mxu0 0.0
  %3695 = vmatpush1.msra.mxu0 0.0
  %3696 = vmatprep.subr.mxu0 0.0
  %3697 = vmatpush1.msra.mxu0 0.0
  %3698 = vmatprep.subr.mxu0 0.0
  %3699 = vmatpush1.msra.mxu0 0.0
  %3700 = vmatprep.subr.mxu0 0.0
  %3701 = vmatpush1.msra.mxu0 0.0
  %3702 = vmatprep.subr.mxu0 0.0
  %3703 = vmatpush1.msra.mxu0 0.0
  %3704 = vmatprep.subr.mxu0 0.0
  %3705 = vmatpush1.msra.mxu0 0.0
  %3706 = vmatprep.subr.mxu0 0.0
  %3707 = vmatpush1.msra.mxu0 0.0
  %3708 = vmatprep.subr.mxu0 0.0
  %3709 = vmatpush1.msra.mxu0 0.0
  %3710 = vmatprep.subr.mxu0 0.0
  %3711 = vmatpush1.msra.mxu0 0.0
  %3712 = vmatprep.subr.mxu0 0.0
  %3713 = vmatpush1.msra.mxu0 0.0
  %3714 = vmatprep.subr.mxu0 0.0
  %3715 = vmatpush1.msra.mxu0 0.0
  %3716 = vmatprep.subr.mxu0 0.0
  %3717 = vmatpush1.msra.mxu0 0.0
  %3718 = vmatprep.subr.mxu0 0.0
  %3719 = vmatpush1.msra.mxu0 0.0
  %3720 = vmatprep.subr.mxu0 0.0
  %3721 = vmatpush1.msra.mxu0 0.0
  %3722 = vmatprep.subr.mxu0 0.0
  %3723 = vmatpush1.msra.mxu0 0.0
  %3724 = vmatprep.subr.mxu0 0.0
  %3725 = vmatpush1.msra.mxu0 0.0
  %3726 = vmatprep.subr.mxu0 0.0
  %3727 = vmatpush1.msra.mxu0 0.0
  %3728 = vmatprep.subr.mxu0 0.0
  %3729 = vmatpush1.msra.mxu0 0.0
  %3730 = vmatprep.subr.mxu0 0.0
  %3731 = vmatpush1.msra.mxu0 0.0
  %3732 = vmatprep.mubr.f32.mxu0 0.0
  %3733 = vmatmul.mubr.f32.gmra.mrb[0].mxu0 %v3595
  %v3734 = vpop.f32.mrb[0].mxu0
  %v3735 = vadd.f32 0.0, %v3734
  %v3736 = vpop.f32.mrb[0].mxu0
  %v3737 = vadd.f32 0.0, %v3736
  %3738 = vdwg.mxu0
  %3739 = vmatprep.subr.mxu0 0.0
  %3740 = vmatpush1.msra.mxu0 %v3584
  %3741 = vmatprep.subr.mxu0 0.0
  %3742 = vmatpush1.msra.mxu0 0.0
  %3743 = vmatprep.subr.mxu0 0.0
  %3744 = vmatpush1.msra.mxu0 0.0
  %3745 = vmatprep.subr.mxu0 0.0
  %3746 = vmatpush1.msra.mxu0 0.0
  %3747 = vmatprep.subr.mxu0 0.0
  %3748 = vmatpush1.msra.mxu0 0.0
  %3749 = vmatprep.subr.mxu0 0.0
  %3750 = vmatpush1.msra.mxu0 0.0
  %3751 = vmatprep.subr.mxu0 0.0
  %3752 = vmatpush1.msra.mxu0 0.0
  %3753 = vmatprep.subr.mxu0 0.0
  %3754 = vmatpush1.msra.mxu0 0.0
  %3755 = vmatprep.subr.mxu0 0.0
  %3756 = vmatpush1.msra.mxu0 0.0
  %3757 = vmatprep.subr.mxu0 0.0
  %3758 = vmatpush1.msra.mxu0 0.0
  %3759 = vmatprep.subr.mxu0 0.0
  %3760 = vmatpush1.msra.mxu0 0.0
  %3761 = vmatprep.subr.mxu0 0.0
  %3762 = vmatpush1.msra.mxu0 0.0
  %3763 = vmatprep.subr.mxu0 0.0
  %3764 = vmatpush1.msra.mxu0 0.0
  %3765 = vmatprep.subr.mxu0 0.0
  %3766 = vmatpush1.msra.mxu0 0.0
  %3767 = vmatprep.subr.mxu0 0.0
  %3768 = vmatpush1.msra.mxu0 0.0
  %3769 = vmatprep.subr.mxu0 0.0
  %3770 = vmatpush1.msra.mxu0 0.0
  %3771 = vmatprep.subr.mxu0 0.0
  %3772 = vmatpush1.msra.mxu0 0.0
  %3773 = vmatprep.subr.mxu0 0.0
  %3774 = vmatpush1.msra.mxu0 0.0
  %3775 = vmatprep.subr.mxu0 0.0
  %3776 = vmatpush1.msra.mxu0 0.0
  %3777 = vmatprep.subr.mxu0 0.0
  %3778 = vmatpush1.msra.mxu0 0.0
  %3779 = vmatprep.subr.mxu0 0.0
  %3780 = vmatpush1.msra.mxu0 0.0
  %3781 = vmatprep.subr.mxu0 0.0
  %3782 = vmatpush1.msra.mxu0 0.0
  %3783 = vmatprep.subr.mxu0 0.0
  %3784 = vmatpush1.msra.mxu0 0.0
  %3785 = vmatprep.subr.mxu0 0.0
  %3786 = vmatpush1.msra.mxu0 0.0
  %3787 = vmatprep.subr.mxu0 0.0
  %3788 = vmatpush1.msra.mxu0 0.0
  %3789 = vmatprep.subr.mxu0 0.0
  %3790 = vmatpush1.msra.mxu0 0.0
  %3791 = vmatprep.subr.mxu0 0.0
  %3792 = vmatpush1.msra.mxu0 0.0
  %3793 = vmatprep.subr.mxu0 0.0
  %3794 = vmatpush1.msra.mxu0 0.0
  %3795 = vmatprep.subr.mxu0 0.0
  %3796 = vmatpush1.msra.mxu0 0.0
  %3797 = vmatprep.subr.mxu0 0.0
  %3798 = vmatpush1.msra.mxu0 0.0
  %3799 = vmatprep.subr.mxu0 0.0
  %3800 = vmatpush1.msra.mxu0 0.0
  %3801 = vmatprep.subr.mxu0 0.0
  %3802 = vmatpush1.msra.mxu0 0.0
  %3803 = vmatprep.mubr.f32.mxu0 0.0
  %3804 = vmatmul.mubr.f32.gmra.mrb[0].mxu0 %v3595
  %v3805 = vpop.f32.mrb[0].mxu0
  %v3806 = vadd.f32 0.0, %v3805
  %v3807 = vpop.f32.mrb[0].mxu0
  %3808 = vdwg.mxu0
  %v3809 = vadd.f32 %v3568, %v3664
  %v3810 = vadd.f32 %v3569, %v3666
  %v3811 = vadd.f32 %v3570, %v3735
  %v3812 = vadd.f32 %v3571, %v3737
  %v3813 = vadd.f32 %v3572, %v3806
  %s3814 = scalar_lea.vmem %s3, 24
  %v3815 = vld [vmem:[%s3814] sm:$0xf]
  %v3816 = vld [vmem:[#allocation2] sm:$0xff]
  %v3817 = vld [vmem:[#allocation2 + $0x8] sm:$0xff]
  %v3818 = vld [vmem:[#allocation2 + $0x10] sm:$0xff]
  %v3819 = vld [vmem:[#allocation2 + $0x18] sm:$0xff]
  %v3820 = vld [vmem:[#allocation2 + $0x20] sm:$0xff]
  %v3821 = vld [vmem:[#allocation2 + $0x28] sm:$0xff]
  %3828 = vrot.lane.b32.xlu0 %v3816, 92
  %v3829 = vpop.permute.xlu0 %3828
  %3830 = vrot.lane.b32.xlu0 %v3817, 92
  %v3831 = vpop.permute.xlu0 %3830
  %3832 = vrot.lane.b32.xlu0 %v3818, 92
  %v3833 = vpop.permute.xlu0 %3832
  %3834 = vrot.lane.b32.xlu0 %v3819, 92
  %v3835 = vpop.permute.xlu0 %3834
  %3836 = vrot.lane.b32.xlu0 %v3820, 92
  %v3837 = vpop.permute.xlu0 %3836
  %3838 = vrot.lane.b32.xlu0 %v3821, 92
  %v3839 = vpop.permute.xlu0 %3838
  %v3840 = vsel %vm1547, %v3829, %v3831
  %v3841 = vsel %vm1547, %v3831, %v3833
  %v3842 = vsel %vm1547, %v3833, %v3835
  %v3843 = vsel %vm1547, %v3835, %v3837
  %v3844 = vsel %vm1547, %v3837, %v3839
  %v3851 = vsel %vm2354, %v3815, 0
  %3853 = vmatprep.subr.mxu0 %v3841
  %3854 = vmatpush1.msra.mxu0 %v3840
  %3855 = vmatprep.subr.mxu0 0.0
  %3856 = vmatpush1.msra.mxu0 0.0
  %3857 = vmatprep.subr.mxu0 0.0
  %3858 = vmatpush1.msra.mxu0 0.0
  %3859 = vmatprep.subr.mxu0 0.0
  %3860 = vmatpush1.msra.mxu0 0.0
  %3861 = vmatprep.subr.mxu0 0.0
  %3862 = vmatpush1.msra.mxu0 0.0
  %3863 = vmatprep.subr.mxu0 0.0
  %3864 = vmatpush1.msra.mxu0 0.0
  %3865 = vmatprep.subr.mxu0 0.0
  %3866 = vmatpush1.msra.mxu0 0.0
  %3867 = vmatprep.subr.mxu0 0.0
  %3868 = vmatpush1.msra.mxu0 0.0
  %3869 = vmatprep.subr.mxu0 0.0
  %3870 = vmatpush1.msra.mxu0 0.0
  %3871 = vmatprep.subr.mxu0 0.0
  %3872 = vmatpush1.msra.mxu0 0.0
  %3873 = vmatprep.subr.mxu0 0.0
  %3874 = vmatpush1.msra.mxu0 0.0
  %3875 = vmatprep.subr.mxu0 0.0
  %3876 = vmatpush1.msra.mxu0 0.0
  %3877 = vmatprep.subr.mxu0 0.0
  %3878 = vmatpush1.msra.mxu0 0.0
  %3879 = vmatprep.subr.mxu0 0.0
  %3880 = vmatpush1.msra.mxu0 0.0
  %3881 = vmatprep.subr.mxu0 0.0
  %3882 = vmatpush1.msra.mxu0 0.0
  %3883 = vmatprep.subr.mxu0 0.0
  %3884 = vmatpush1.msra.mxu0 0.0
  %3885 = vmatprep.subr.mxu0 0.0
  %3886 = vmatpush1.msra.mxu0 0.0
  %3887 = vmatprep.subr.mxu0 0.0
  %3888 = vmatpush1.msra.mxu0 0.0
  %3889 = vmatprep.subr.mxu0 0.0
  %3890 = vmatpush1.msra.mxu0 0.0
  %3891 = vmatprep.subr.mxu0 0.0
  %3892 = vmatpush1.msra.mxu0 0.0
  %3893 = vmatprep.subr.mxu0 0.0
  %3894 = vmatpush1.msra.mxu0 0.0
  %3895 = vmatprep.subr.mxu0 0.0
  %3896 = vmatpush1.msra.mxu0 0.0
  %3897 = vmatprep.subr.mxu0 0.0
  %3898 = vmatpush1.msra.mxu0 0.0
  %3899 = vmatprep.subr.mxu0 0.0
  %3900 = vmatpush1.msra.mxu0 0.0
  %3901 = vmatprep.subr.mxu0 0.0
  %3902 = vmatpush1.msra.mxu0 0.0
  %3903 = vmatprep.subr.mxu0 0.0
  %3904 = vmatpush1.msra.mxu0 0.0
  %3905 = vmatprep.subr.mxu0 0.0
  %3906 = vmatpush1.msra.mxu0 0.0
  %3907 = vmatprep.subr.mxu0 0.0
  %3908 = vmatpush1.msra.mxu0 0.0
  %3909 = vmatprep.subr.mxu0 0.0
  %3910 = vmatpush1.msra.mxu0 0.0
  %3911 = vmatprep.subr.mxu0 0.0
  %3912 = vmatpush1.msra.mxu0 0.0
  %3913 = vmatprep.subr.mxu0 0.0
  %3914 = vmatpush1.msra.mxu0 0.0
  %3915 = vmatprep.subr.mxu0 0.0
  %3916 = vmatpush1.msra.mxu0 0.0
  %3917 = vmatprep.mubr.f32.mxu0 0.0
  %3918 = vmatmul.mubr.f32.gmra.mrb[0].mxu0 %v3851
  %v3919 = vpop.f32.mrb[0].mxu0
  %v3920 = vadd.f32 0.0, %v3919
  %v3921 = vpop.f32.mrb[0].mxu0
  %v3922 = vadd.f32 0.0, %v3921
  %3923 = vdwg.mxu0
  %3924 = vmatprep.subr.mxu0 %v3843
  %3925 = vmatpush1.msra.mxu0 %v3842
  %3926 = vmatprep.subr.mxu0 0.0
  %3927 = vmatpush1.msra.mxu0 0.0
  %3928 = vmatprep.subr.mxu0 0.0
  %3929 = vmatpush1.msra.mxu0 0.0
  %3930 = vmatprep.subr.mxu0 0.0
  %3931 = vmatpush1.msra.mxu0 0.0
  %3932 = vmatprep.subr.mxu0 0.0
  %3933 = vmatpush1.msra.mxu0 0.0
  %3934 = vmatprep.subr.mxu0 0.0
  %3935 = vmatpush1.msra.mxu0 0.0
  %3936 = vmatprep.subr.mxu0 0.0
  %3937 = vmatpush1.msra.mxu0 0.0
  %3938 = vmatprep.subr.mxu0 0.0
  %3939 = vmatpush1.msra.mxu0 0.0
  %3940 = vmatprep.subr.mxu0 0.0
  %3941 = vmatpush1.msra.mxu0 0.0
  %3942 = vmatprep.subr.mxu0 0.0
  %3943 = vmatpush1.msra.mxu0 0.0
  %3944 = vmatprep.subr.mxu0 0.0
  %3945 = vmatpush1.msra.mxu0 0.0
  %3946 = vmatprep.subr.mxu0 0.0
  %3947 = vmatpush1.msra.mxu0 0.0
  %3948 = vmatprep.subr.mxu0 0.0
  %3949 = vmatpush1.msra.mxu0 0.0
  %3950 = vmatprep.subr.mxu0 0.0
  %3951 = vmatpush1.msra.mxu0 0.0
  %3952 = vmatprep.subr.mxu0 0.0
  %3953 = vmatpush1.msra.mxu0 0.0
  %3954 = vmatprep.subr.mxu0 0.0
  %3955 = vmatpush1.msra.mxu0 0.0
  %3956 = vmatprep.subr.mxu0 0.0
  %3957 = vmatpush1.msra.mxu0 0.0
  %3958 = vmatprep.subr.mxu0 0.0
  %3959 = vmatpush1.msra.mxu0 0.0
  %3960 = vmatprep.subr.mxu0 0.0
  %3961 = vmatpush1.msra.mxu0 0.0
  %3962 = vmatprep.subr.mxu0 0.0
  %3963 = vmatpush1.msra.mxu0 0.0
  %3964 = vmatprep.subr.mxu0 0.0
  %3965 = vmatpush1.msra.mxu0 0.0
  %3966 = vmatprep.subr.mxu0 0.0
  %3967 = vmatpush1.msra.mxu0 0.0
  %3968 = vmatprep.subr.mxu0 0.0
  %3969 = vmatpush1.msra.mxu0 0.0
  %3970 = vmatprep.subr.mxu0 0.0
  %3971 = vmatpush1.msra.mxu0 0.0
  %3972 = vmatprep.subr.mxu0 0.0
  %3973 = vmatpush1.msra.mxu0 0.0
  %3974 = vmatprep.subr.mxu0 0.0
  %3975 = vmatpush1.msra.mxu0 0.0
  %3976 = vmatprep.subr.mxu0 0.0
  %3977 = vmatpush1.msra.mxu0 0.0
  %3978 = vmatprep.subr.mxu0 0.0
  %3979 = vmatpush1.msra.mxu0 0.0
  %3980 = vmatprep.subr.mxu0 0.0
  %3981 = vmatpush1.msra.mxu0 0.0
  %3982 = vmatprep.subr.mxu0 0.0
  %3983 = vmatpush1.msra.mxu0 0.0
  %3984 = vmatprep.subr.mxu0 0.0
  %3985 = vmatpush1.msra.mxu0 0.0
  %3986 = vmatprep.subr.mxu0 0.0
  %3987 = vmatpush1.msra.mxu0 0.0
  %3988 = vmatprep.mubr.f32.mxu0 0.0
  %3989 = vmatmul.mubr.f32.gmra.mrb[0].mxu0 %v3851
  %v3990 = vpop.f32.mrb[0].mxu0
  %v3991 = vadd.f32 0.0, %v3990
  %v3992 = vpop.f32.mrb[0].mxu0
  %v3993 = vadd.f32 0.0, %v3992
  %3994 = vdwg.mxu0
  %3995 = vmatprep.subr.mxu0 0.0
  %3996 = vmatpush1.msra.mxu0 %v3844
  %3997 = vmatprep.subr.mxu0 0.0
  %3998 = vmatpush1.msra.mxu0 0.0
  %3999 = vmatprep.subr.mxu0 0.0
  %4000 = vmatpush1.msra.mxu0 0.0
  %4001 = vmatprep.subr.mxu0 0.0
  %4002 = vmatpush1.msra.mxu0 0.0
  %4003 = vmatprep.subr.mxu0 0.0
  %4004 = vmatpush1.msra.mxu0 0.0
  %4005 = vmatprep.subr.mxu0 0.0
  %4006 = vmatpush1.msra.mxu0 0.0
  %4007 = vmatprep.subr.mxu0 0.0
  %4008 = vmatpush1.msra.mxu0 0.0
  %4009 = vmatprep.subr.mxu0 0.0
  %4010 = vmatpush1.msra.mxu0 0.0
  %4011 = vmatprep.subr.mxu0 0.0
  %4012 = vmatpush1.msra.mxu0 0.0
  %4013 = vmatprep.subr.mxu0 0.0
  %4014 = vmatpush1.msra.mxu0 0.0
  %4015 = vmatprep.subr.mxu0 0.0
  %4016 = vmatpush1.msra.mxu0 0.0
  %4017 = vmatprep.subr.mxu0 0.0
  %4018 = vmatpush1.msra.mxu0 0.0
  %4019 = vmatprep.subr.mxu0 0.0
  %4020 = vmatpush1.msra.mxu0 0.0
  %4021 = vmatprep.subr.mxu0 0.0
  %4022 = vmatpush1.msra.mxu0 0.0
  %4023 = vmatprep.subr.mxu0 0.0
  %4024 = vmatpush1.msra.mxu0 0.0
  %4025 = vmatprep.subr.mxu0 0.0
  %4026 = vmatpush1.msra.mxu0 0.0
  %4027 = vmatprep.subr.mxu0 0.0
  %4028 = vmatpush1.msra.mxu0 0.0
  %4029 = vmatprep.subr.mxu0 0.0
  %4030 = vmatpush1.msra.mxu0 0.0
  %4031 = vmatprep.subr.mxu0 0.0
  %4032 = vmatpush1.msra.mxu0 0.0
  %4033 = vmatprep.subr.mxu0 0.0
  %4034 = vmatpush1.msra.mxu0 0.0
  %4035 = vmatprep.subr.mxu0 0.0
  %4036 = vmatpush1.msra.mxu0 0.0
  %4037 = vmatprep.subr.mxu0 0.0
  %4038 = vmatpush1.msra.mxu0 0.0
  %4039 = vmatprep.subr.mxu0 0.0
  %4040 = vmatpush1.msra.mxu0 0.0
  %4041 = vmatprep.subr.mxu0 0.0
  %4042 = vmatpush1.msra.mxu0 0.0
  %4043 = vmatprep.subr.mxu0 0.0
  %4044 = vmatpush1.msra.mxu0 0.0
  %4045 = vmatprep.subr.mxu0 0.0
  %4046 = vmatpush1.msra.mxu0 0.0
  %4047 = vmatprep.subr.mxu0 0.0
  %4048 = vmatpush1.msra.mxu0 0.0
  %4049 = vmatprep.subr.mxu0 0.0
  %4050 = vmatpush1.msra.mxu0 0.0
  %4051 = vmatprep.subr.mxu0 0.0
  %4052 = vmatpush1.msra.mxu0 0.0
  %4053 = vmatprep.subr.mxu0 0.0
  %4054 = vmatpush1.msra.mxu0 0.0
  %4055 = vmatprep.subr.mxu0 0.0
  %4056 = vmatpush1.msra.mxu0 0.0
  %4057 = vmatprep.subr.mxu0 0.0
  %4058 = vmatpush1.msra.mxu0 0.0
  %4059 = vmatprep.mubr.f32.mxu0 0.0
  %4060 = vmatmul.mubr.f32.gmra.mrb[0].mxu0 %v3851
  %v4061 = vpop.f32.mrb[0].mxu0
  %v4062 = vadd.f32 0.0, %v4061
  %v4063 = vpop.f32.mrb[0].mxu0
  %4064 = vdwg.mxu0
  %v4065 = vadd.f32 %v3809, %v3920
  %v4066 = vadd.f32 %v3810, %v3922
  %v4067 = vadd.f32 %v3811, %v3991
  %v4068 = vadd.f32 %v3812, %v3993
  %v4069 = vadd.f32 %v3813, %v4062
  %s4070 = scalar_lea.vmem %s3, 28
  %v4071 = vld [vmem:[%s4070] sm:$0xf]
  %4072 = vrot.lane.b32.xlu0 %v3816, 91
  %v4073 = vpop.permute.xlu0 %4072
  %4074 = vrot.lane.b32.xlu0 %v3817, 91
  %v4075 = vpop.permute.xlu0 %4074
  %4076 = vrot.lane.b32.xlu0 %v3818, 91
  %v4077 = vpop.permute.xlu0 %4076
  %4078 = vrot.lane.b32.xlu0 %v3819, 91
  %v4079 = vpop.permute.xlu0 %4078
  %4080 = vrot.lane.b32.xlu0 %v3820, 91
  %v4081 = vpop.permute.xlu0 %4080
  %4082 = vrot.lane.b32.xlu0 %v3821, 91
  %v4083 = vpop.permute.xlu0 %4082
  %v4084 = vsel %vm1806, %v4073, %v4075
  %v4085 = vsel %vm1806, %v4075, %v4077
  %v4086 = vsel %vm1806, %v4077, %v4079
  %v4087 = vsel %vm1806, %v4079, %v4081
  %v4088 = vsel %vm1806, %v4081, %v4083
  %v4095 = vsel %vm2354, %v4071, 0
  %4097 = vmatprep.subr.mxu0 %v4085
  %4098 = vmatpush1.msra.mxu0 %v4084
  %4099 = vmatprep.subr.mxu0 0.0
  %4100 = vmatpush1.msra.mxu0 0.0
  %4101 = vmatprep.subr.mxu0 0.0
  %4102 = vmatpush1.msra.mxu0 0.0
  %4103 = vmatprep.subr.mxu0 0.0
  %4104 = vmatpush1.msra.mxu0 0.0
  %4105 = vmatprep.subr.mxu0 0.0
  %4106 = vmatpush1.msra.mxu0 0.0
  %4107 = vmatprep.subr.mxu0 0.0
  %4108 = vmatpush1.msra.mxu0 0.0
  %4109 = vmatprep.subr.mxu0 0.0
  %4110 = vmatpush1.msra.mxu0 0.0
  %4111 = vmatprep.subr.mxu0 0.0
  %4112 = vmatpush1.msra.mxu0 0.0
  %4113 = vmatprep.subr.mxu0 0.0
  %4114 = vmatpush1.msra.mxu0 0.0
  %4115 = vmatprep.subr.mxu0 0.0
  %4116 = vmatpush1.msra.mxu0 0.0
  %4117 = vmatprep.subr.mxu0 0.0
  %4118 = vmatpush1.msra.mxu0 0.0
  %4119 = vmatprep.subr.mxu0 0.0
  %4120 = vmatpush1.msra.mxu0 0.0
  %4121 = vmatprep.subr.mxu0 0.0
  %4122 = vmatpush1.msra.mxu0 0.0
  %4123 = vmatprep.subr.mxu0 0.0
  %4124 = vmatpush1.msra.mxu0 0.0
  %4125 = vmatprep.subr.mxu0 0.0
  %4126 = vmatpush1.msra.mxu0 0.0
  %4127 = vmatprep.subr.mxu0 0.0
  %4128 = vmatpush1.msra.mxu0 0.0
  %4129 = vmatprep.subr.mxu0 0.0
  %4130 = vmatpush1.msra.mxu0 0.0
  %4131 = vmatprep.subr.mxu0 0.0
  %4132 = vmatpush1.msra.mxu0 0.0
  %4133 = vmatprep.subr.mxu0 0.0
  %4134 = vmatpush1.msra.mxu0 0.0
  %4135 = vmatprep.subr.mxu0 0.0
  %4136 = vmatpush1.msra.mxu0 0.0
  %4137 = vmatprep.subr.mxu0 0.0
  %4138 = vmatpush1.msra.mxu0 0.0
  %4139 = vmatprep.subr.mxu0 0.0
  %4140 = vmatpush1.msra.mxu0 0.0
  %4141 = vmatprep.subr.mxu0 0.0
  %4142 = vmatpush1.msra.mxu0 0.0
  %4143 = vmatprep.subr.mxu0 0.0
  %4144 = vmatpush1.msra.mxu0 0.0
  %4145 = vmatprep.subr.mxu0 0.0
  %4146 = vmatpush1.msra.mxu0 0.0
  %4147 = vmatprep.subr.mxu0 0.0
  %4148 = vmatpush1.msra.mxu0 0.0
  %4149 = vmatprep.subr.mxu0 0.0
  %4150 = vmatpush1.msra.mxu0 0.0
  %4151 = vmatprep.subr.mxu0 0.0
  %4152 = vmatpush1.msra.mxu0 0.0
  %4153 = vmatprep.subr.mxu0 0.0
  %4154 = vmatpush1.msra.mxu0 0.0
  %4155 = vmatprep.subr.mxu0 0.0
  %4156 = vmatpush1.msra.mxu0 0.0
  %4157 = vmatprep.subr.mxu0 0.0
  %4158 = vmatpush1.msra.mxu0 0.0
  %4159 = vmatprep.subr.mxu0 0.0
  %4160 = vmatpush1.msra.mxu0 0.0
  %4161 = vmatprep.mubr.f32.mxu0 0.0
  %4162 = vmatmul.mubr.f32.gmra.mrb[0].mxu0 %v4095
  %v4163 = vpop.f32.mrb[0].mxu0
  %v4164 = vadd.f32 0.0, %v4163
  %v4165 = vpop.f32.mrb[0].mxu0
  %v4166 = vadd.f32 0.0, %v4165
  %4167 = vdwg.mxu0
  %4168 = vmatprep.subr.mxu0 %v4087
  %4169 = vmatpush1.msra.mxu0 %v4086
  %4170 = vmatprep.subr.mxu0 0.0
  %4171 = vmatpush1.msra.mxu0 0.0
  %4172 = vmatprep.subr.mxu0 0.0
  %4173 = vmatpush1.msra.mxu0 0.0
  %4174 = vmatprep.subr.mxu0 0.0
  %4175 = vmatpush1.msra.mxu0 0.0
  %4176 = vmatprep.subr.mxu0 0.0
  %4177 = vmatpush1.msra.mxu0 0.0
  %4178 = vmatprep.subr.mxu0 0.0
  %4179 = vmatpush1.msra.mxu0 0.0
  %4180 = vmatprep.subr.mxu0 0.0
  %4181 = vmatpush1.msra.mxu0 0.0
  %4182 = vmatprep.subr.mxu0 0.0
  %4183 = vmatpush1.msra.mxu0 0.0
  %4184 = vmatprep.subr.mxu0 0.0
  %4185 = vmatpush1.msra.mxu0 0.0
  %4186 = vmatprep.subr.mxu0 0.0
  %4187 = vmatpush1.msra.mxu0 0.0
  %4188 = vmatprep.subr.mxu0 0.0
  %4189 = vmatpush1.msra.mxu0 0.0
  %4190 = vmatprep.subr.mxu0 0.0
  %4191 = vmatpush1.msra.mxu0 0.0
  %4192 = vmatprep.subr.mxu0 0.0
  %4193 = vmatpush1.msra.mxu0 0.0
  %4194 = vmatprep.subr.mxu0 0.0
  %4195 = vmatpush1.msra.mxu0 0.0
  %4196 = vmatprep.subr.mxu0 0.0
  %4197 = vmatpush1.msra.mxu0 0.0
  %4198 = vmatprep.subr.mxu0 0.0
  %4199 = vmatpush1.msra.mxu0 0.0
  %4200 = vmatprep.subr.mxu0 0.0
  %4201 = vmatpush1.msra.mxu0 0.0
  %4202 = vmatprep.subr.mxu0 0.0
  %4203 = vmatpush1.msra.mxu0 0.0
  %4204 = vmatprep.subr.mxu0 0.0
  %4205 = vmatpush1.msra.mxu0 0.0
  %4206 = vmatprep.subr.mxu0 0.0
  %4207 = vmatpush1.msra.mxu0 0.0
  %4208 = vmatprep.subr.mxu0 0.0
  %4209 = vmatpush1.msra.mxu0 0.0
  %4210 = vmatprep.subr.mxu0 0.0
  %4211 = vmatpush1.msra.mxu0 0.0
  %4212 = vmatprep.subr.mxu0 0.0
  %4213 = vmatpush1.msra.mxu0 0.0
  %4214 = vmatprep.subr.mxu0 0.0
  %4215 = vmatpush1.msra.mxu0 0.0
  %4216 = vmatprep.subr.mxu0 0.0
  %4217 = vmatpush1.msra.mxu0 0.0
  %4218 = vmatprep.subr.mxu0 0.0
  %4219 = vmatpush1.msra.mxu0 0.0
  %4220 = vmatprep.subr.mxu0 0.0
  %4221 = vmatpush1.msra.mxu0 0.0
  %4222 = vmatprep.subr.mxu0 0.0
  %4223 = vmatpush1.msra.mxu0 0.0
  %4224 = vmatprep.subr.mxu0 0.0
  %4225 = vmatpush1.msra.mxu0 0.0
  %4226 = vmatprep.subr.mxu0 0.0
  %4227 = vmatpush1.msra.mxu0 0.0
  %4228 = vmatprep.subr.mxu0 0.0
  %4229 = vmatpush1.msra.mxu0 0.0
  %4230 = vmatprep.subr.mxu0 0.0
  %4231 = vmatpush1.msra.mxu0 0.0
  %4232 = vmatprep.mubr.f32.mxu0 0.0
  %4233 = vmatmul.mubr.f32.gmra.mrb[0].mxu0 %v4095
  %v4234 = vpop.f32.mrb[0].mxu0
  %v4235 = vadd.f32 0.0, %v4234
  %v4236 = vpop.f32.mrb[0].mxu0
  %v4237 = vadd.f32 0.0, %v4236
  %4238 = vdwg.mxu0
  %4239 = vmatprep.subr.mxu0 0.0
  %4240 = vmatpush1.msra.mxu0 %v4088
  %4241 = vmatprep.subr.mxu0 0.0
  %4242 = vmatpush1.msra.mxu0 0.0
  %4243 = vmatprep.subr.mxu0 0.0
  %4244 = vmatpush1.msra.mxu0 0.0
  %4245 = vmatprep.subr.mxu0 0.0
  %4246 = vmatpush1.msra.mxu0 0.0
  %4247 = vmatprep.subr.mxu0 0.0
  %4248 = vmatpush1.msra.mxu0 0.0
  %4249 = vmatprep.subr.mxu0 0.0
  %4250 = vmatpush1.msra.mxu0 0.0
  %4251 = vmatprep.subr.mxu0 0.0
  %4252 = vmatpush1.msra.mxu0 0.0
  %4253 = vmatprep.subr.mxu0 0.0
  %4254 = vmatpush1.msra.mxu0 0.0
  %4255 = vmatprep.subr.mxu0 0.0
  %4256 = vmatpush1.msra.mxu0 0.0
  %4257 = vmatprep.subr.mxu0 0.0
  %4258 = vmatpush1.msra.mxu0 0.0
  %4259 = vmatprep.subr.mxu0 0.0
  %4260 = vmatpush1.msra.mxu0 0.0
  %4261 = vmatprep.subr.mxu0 0.0
  %4262 = vmatpush1.msra.mxu0 0.0
  %4263 = vmatprep.subr.mxu0 0.0
  %4264 = vmatpush1.msra.mxu0 0.0
  %4265 = vmatprep.subr.mxu0 0.0
  %4266 = vmatpush1.msra.mxu0 0.0
  %4267 = vmatprep.subr.mxu0 0.0
  %4268 = vmatpush1.msra.mxu0 0.0
  %4269 = vmatprep.subr.mxu0 0.0
  %4270 = vmatpush1.msra.mxu0 0.0
  %4271 = vmatprep.subr.mxu0 0.0
  %4272 = vmatpush1.msra.mxu0 0.0
  %4273 = vmatprep.subr.mxu0 0.0
  %4274 = vmatpush1.msra.mxu0 0.0
  %4275 = vmatprep.subr.mxu0 0.0
  %4276 = vmatpush1.msra.mxu0 0.0
  %4277 = vmatprep.subr.mxu0 0.0
  %4278 = vmatpush1.msra.mxu0 0.0
  %4279 = vmatprep.subr.mxu0 0.0
  %4280 = vmatpush1.msra.mxu0 0.0
  %4281 = vmatprep.subr.mxu0 0.0
  %4282 = vmatpush1.msra.mxu0 0.0
  %4283 = vmatprep.subr.mxu0 0.0
  %4284 = vmatpush1.msra.mxu0 0.0
  %4285 = vmatprep.subr.mxu0 0.0
  %4286 = vmatpush1.msra.mxu0 0.0
  %4287 = vmatprep.subr.mxu0 0.0
  %4288 = vmatpush1.msra.mxu0 0.0
  %4289 = vmatprep.subr.mxu0 0.0
  %4290 = vmatpush1.msra.mxu0 0.0
  %4291 = vmatprep.subr.mxu0 0.0
  %4292 = vmatpush1.msra.mxu0 0.0
  %4293 = vmatprep.subr.mxu0 0.0
  %4294 = vmatpush1.msra.mxu0 0.0
  %4295 = vmatprep.subr.mxu0 0.0
  %4296 = vmatpush1.msra.mxu0 0.0
  %4297 = vmatprep.subr.mxu0 0.0
  %4298 = vmatpush1.msra.mxu0 0.0
  %4299 = vmatprep.subr.mxu0 0.0
  %4300 = vmatpush1.msra.mxu0 0.0
  %4301 = vmatprep.subr.mxu0 0.0
  %4302 = vmatpush1.msra.mxu0 0.0
  %4303 = vmatprep.mubr.f32.mxu0 0.0
  %4304 = vmatmul.mubr.f32.gmra.mrb[0].mxu0 %v4095
  %v4305 = vpop.f32.mrb[0].mxu0
  %v4306 = vadd.f32 0.0, %v4305
  %v4307 = vpop.f32.mrb[0].mxu0
  %4308 = vdwg.mxu0
  %v4309 = vadd.f32 %v4065, %v4164
  %v4310 = vadd.f32 %v4066, %v4166
  %v4311 = vadd.f32 %v4067, %v4235
  %v4312 = vadd.f32 %v4068, %v4237
  %v4313 = vadd.f32 %v4069, %v4306
  %s4314 = scalar_lea.vmem %s3, 32
  %v4315 = vld [vmem:[%s4314] sm:$0xf]
  %4316 = vrot.lane.b32.xlu0 %v3816, 90
  %v4317 = vpop.permute.xlu0 %4316
  %4318 = vrot.lane.b32.xlu0 %v3817, 90
  %v4319 = vpop.permute.xlu0 %4318
  %4320 = vrot.lane.b32.xlu0 %v3818, 90
  %v4321 = vpop.permute.xlu0 %4320
  %4322 = vrot.lane.b32.xlu0 %v3819, 90
  %v4323 = vpop.permute.xlu0 %4322
  %4324 = vrot.lane.b32.xlu0 %v3820, 90
  %v4325 = vpop.permute.xlu0 %4324
  %4326 = vrot.lane.b32.xlu0 %v3821, 90
  %v4327 = vpop.permute.xlu0 %4326
  %v4328 = vsel %vm2065, %v4317, %v4319
  %v4329 = vsel %vm2065, %v4319, %v4321
  %v4330 = vsel %vm2065, %v4321, %v4323
  %v4331 = vsel %vm2065, %v4323, %v4325
  %v4332 = vsel %vm2065, %v4325, %v4327
  %v4339 = vsel %vm2354, %v4315, 0
  %4341 = vmatprep.subr.mxu0 %v4329
  %4342 = vmatpush1.msra.mxu0 %v4328
  %4343 = vmatprep.subr.mxu0 0.0
  %4344 = vmatpush1.msra.mxu0 0.0
  %4345 = vmatprep.subr.mxu0 0.0
  %4346 = vmatpush1.msra.mxu0 0.0
  %4347 = vmatprep.subr.mxu0 0.0
  %4348 = vmatpush1.msra.mxu0 0.0
  %4349 = vmatprep.subr.mxu0 0.0
  %4350 = vmatpush1.msra.mxu0 0.0
  %4351 = vmatprep.subr.mxu0 0.0
  %4352 = vmatpush1.msra.mxu0 0.0
  %4353 = vmatprep.subr.mxu0 0.0
  %4354 = vmatpush1.msra.mxu0 0.0
  %4355 = vmatprep.subr.mxu0 0.0
  %4356 = vmatpush1.msra.mxu0 0.0
  %4357 = vmatprep.subr.mxu0 0.0
  %4358 = vmatpush1.msra.mxu0 0.0
  %4359 = vmatprep.subr.mxu0 0.0
  %4360 = vmatpush1.msra.mxu0 0.0
  %4361 = vmatprep.subr.mxu0 0.0
  %4362 = vmatpush1.msra.mxu0 0.0
  %4363 = vmatprep.subr.mxu0 0.0
  %4364 = vmatpush1.msra.mxu0 0.0
  %4365 = vmatprep.subr.mxu0 0.0
  %4366 = vmatpush1.msra.mxu0 0.0
  %4367 = vmatprep.subr.mxu0 0.0
  %4368 = vmatpush1.msra.mxu0 0.0
  %4369 = vmatprep.subr.mxu0 0.0
  %4370 = vmatpush1.msra.mxu0 0.0
  %4371 = vmatprep.subr.mxu0 0.0
  %4372 = vmatpush1.msra.mxu0 0.0
  %4373 = vmatprep.subr.mxu0 0.0
  %4374 = vmatpush1.msra.mxu0 0.0
  %4375 = vmatprep.subr.mxu0 0.0
  %4376 = vmatpush1.msra.mxu0 0.0
  %4377 = vmatprep.subr.mxu0 0.0
  %4378 = vmatpush1.msra.mxu0 0.0
  %4379 = vmatprep.subr.mxu0 0.0
  %4380 = vmatpush1.msra.mxu0 0.0
  %4381 = vmatprep.subr.mxu0 0.0
  %4382 = vmatpush1.msra.mxu0 0.0
  %4383 = vmatprep.subr.mxu0 0.0
  %4384 = vmatpush1.msra.mxu0 0.0
  %4385 = vmatprep.subr.mxu0 0.0
  %4386 = vmatpush1.msra.mxu0 0.0
  %4387 = vmatprep.subr.mxu0 0.0
  %4388 = vmatpush1.msra.mxu0 0.0
  %4389 = vmatprep.subr.mxu0 0.0
  %4390 = vmatpush1.msra.mxu0 0.0
  %4391 = vmatprep.subr.mxu0 0.0
  %4392 = vmatpush1.msra.mxu0 0.0
  %4393 = vmatprep.subr.mxu0 0.0
  %4394 = vmatpush1.msra.mxu0 0.0
  %4395 = vmatprep.subr.mxu0 0.0
  %4396 = vmatpush1.msra.mxu0 0.0
  %4397 = vmatprep.subr.mxu0 0.0
  %4398 = vmatpush1.msra.mxu0 0.0
  %4399 = vmatprep.subr.mxu0 0.0
  %4400 = vmatpush1.msra.mxu0 0.0
  %4401 = vmatprep.subr.mxu0 0.0
  %4402 = vmatpush1.msra.mxu0 0.0
  %4403 = vmatprep.subr.mxu0 0.0
  %4404 = vmatpush1.msra.mxu0 0.0
  %4405 = vmatprep.mubr.f32.mxu0 0.0
  %4406 = vmatmul.mubr.f32.gmra.mrb[0].mxu0 %v4339
  %v4407 = vpop.f32.mrb[0].mxu0
  %v4408 = vadd.f32 0.0, %v4407
  %v4409 = vpop.f32.mrb[0].mxu0
  %v4410 = vadd.f32 0.0, %v4409
  %4411 = vdwg.mxu0
  %4412 = vmatprep.subr.mxu0 %v4331
  %4413 = vmatpush1.msra.mxu0 %v4330
  %4414 = vmatprep.subr.mxu0 0.0
  %4415 = vmatpush1.msra.mxu0 0.0
  %4416 = vmatprep.subr.mxu0 0.0
  %4417 = vmatpush1.msra.mxu0 0.0
  %4418 = vmatprep.subr.mxu0 0.0
  %4419 = vmatpush1.msra.mxu0 0.0
  %4420 = vmatprep.subr.mxu0 0.0
  %4421 = vmatpush1.msra.mxu0 0.0
  %4422 = vmatprep.subr.mxu0 0.0
  %4423 = vmatpush1.msra.mxu0 0.0
  %4424 = vmatprep.subr.mxu0 0.0
  %4425 = vmatpush1.msra.mxu0 0.0
  %4426 = vmatprep.subr.mxu0 0.0
  %4427 = vmatpush1.msra.mxu0 0.0
  %4428 = vmatprep.subr.mxu0 0.0
  %4429 = vmatpush1.msra.mxu0 0.0
  %4430 = vmatprep.subr.mxu0 0.0
  %4431 = vmatpush1.msra.mxu0 0.0
  %4432 = vmatprep.subr.mxu0 0.0
  %4433 = vmatpush1.msra.mxu0 0.0
  %4434 = vmatprep.subr.mxu0 0.0
  %4435 = vmatpush1.msra.mxu0 0.0
  %4436 = vmatprep.subr.mxu0 0.0
  %4437 = vmatpush1.msra.mxu0 0.0
  %4438 = vmatprep.subr.mxu0 0.0
  %4439 = vmatpush1.msra.mxu0 0.0
  %4440 = vmatprep.subr.mxu0 0.0
  %4441 = vmatpush1.msra.mxu0 0.0
  %4442 = vmatprep.subr.mxu0 0.0
  %4443 = vmatpush1.msra.mxu0 0.0
  %4444 = vmatprep.subr.mxu0 0.0
  %4445 = vmatpush1.msra.mxu0 0.0
  %4446 = vmatprep.subr.mxu0 0.0
  %4447 = vmatpush1.msra.mxu0 0.0
  %4448 = vmatprep.subr.mxu0 0.0
  %4449 = vmatpush1.msra.mxu0 0.0
  %4450 = vmatprep.subr.mxu0 0.0
  %4451 = vmatpush1.msra.mxu0 0.0
  %4452 = vmatprep.subr.mxu0 0.0
  %4453 = vmatpush1.msra.mxu0 0.0
  %4454 = vmatprep.subr.mxu0 0.0
  %4455 = vmatpush1.msra.mxu0 0.0
  %4456 = vmatprep.subr.mxu0 0.0
  %4457 = vmatpush1.msra.mxu0 0.0
  %4458 = vmatprep.subr.mxu0 0.0
  %4459 = vmatpush1.msra.mxu0 0.0
  %4460 = vmatprep.subr.mxu0 0.0
  %4461 = vmatpush1.msra.mxu0 0.0
  %4462 = vmatprep.subr.mxu0 0.0
  %4463 = vmatpush1.msra.mxu0 0.0
  %4464 = vmatprep.subr.mxu0 0.0
  %4465 = vmatpush1.msra.mxu0 0.0
  %4466 = vmatprep.subr.mxu0 0.0
  %4467 = vmatpush1.msra.mxu0 0.0
  %4468 = vmatprep.subr.mxu0 0.0
  %4469 = vmatpush1.msra.mxu0 0.0
  %4470 = vmatprep.subr.mxu0 0.0
  %4471 = vmatpush1.msra.mxu0 0.0
  %4472 = vmatprep.subr.mxu0 0.0
  %4473 = vmatpush1.msra.mxu0 0.0
  %4474 = vmatprep.subr.mxu0 0.0
  %4475 = vmatpush1.msra.mxu0 0.0
  %4476 = vmatprep.mubr.f32.mxu0 0.0
  %4477 = vmatmul.mubr.f32.gmra.mrb[0].mxu0 %v4339
  %v4478 = vpop.f32.mrb[0].mxu0
  %v4479 = vadd.f32 0.0, %v4478
  %v4480 = vpop.f32.mrb[0].mxu0
  %v4481 = vadd.f32 0.0, %v4480
  %4482 = vdwg.mxu0
  %4483 = vmatprep.subr.mxu0 0.0
  %4484 = vmatpush1.msra.mxu0 %v4332
  %4485 = vmatprep.subr.mxu0 0.0
  %4486 = vmatpush1.msra.mxu0 0.0
  %4487 = vmatprep.subr.mxu0 0.0
  %4488 = vmatpush1.msra.mxu0 0.0
  %4489 = vmatprep.subr.mxu0 0.0
  %4490 = vmatpush1.msra.mxu0 0.0
  %4491 = vmatprep.subr.mxu0 0.0
  %4492 = vmatpush1.msra.mxu0 0.0
  %4493 = vmatprep.subr.mxu0 0.0
  %4494 = vmatpush1.msra.mxu0 0.0
  %4495 = vmatprep.subr.mxu0 0.0
  %4496 = vmatpush1.msra.mxu0 0.0
  %4497 = vmatprep.subr.mxu0 0.0
  %4498 = vmatpush1.msra.mxu0 0.0
  %4499 = vmatprep.subr.mxu0 0.0
  %4500 = vmatpush1.msra.mxu0 0.0
  %4501 = vmatprep.subr.mxu0 0.0
  %4502 = vmatpush1.msra.mxu0 0.0
  %4503 = vmatprep.subr.mxu0 0.0
  %4504 = vmatpush1.msra.mxu0 0.0
  %4505 = vmatprep.subr.mxu0 0.0
  %4506 = vmatpush1.msra.mxu0 0.0
  %4507 = vmatprep.subr.mxu0 0.0
  %4508 = vmatpush1.msra.mxu0 0.0
  %4509 = vmatprep.subr.mxu0 0.0
  %4510 = vmatpush1.msra.mxu0 0.0
  %4511 = vmatprep.subr.mxu0 0.0
  %4512 = vmatpush1.msra.mxu0 0.0
  %4513 = vmatprep.subr.mxu0 0.0
  %4514 = vmatpush1.msra.mxu0 0.0
  %4515 = vmatprep.subr.mxu0 0.0
  %4516 = vmatpush1.msra.mxu0 0.0
  %4517 = vmatprep.subr.mxu0 0.0
  %4518 = vmatpush1.msra.mxu0 0.0
  %4519 = vmatprep.subr.mxu0 0.0
  %4520 = vmatpush1.msra.mxu0 0.0
  %4521 = vmatprep.subr.mxu0 0.0
  %4522 = vmatpush1.msra.mxu0 0.0
  %4523 = vmatprep.subr.mxu0 0.0
  %4524 = vmatpush1.msra.mxu0 0.0
  %4525 = vmatprep.subr.mxu0 0.0
  %4526 = vmatpush1.msra.mxu0 0.0
  %4527 = vmatprep.subr.mxu0 0.0
  %4528 = vmatpush1.msra.mxu0 0.0
  %4529 = vmatprep.subr.mxu0 0.0
  %4530 = vmatpush1.msra.mxu0 0.0
  %4531 = vmatprep.subr.mxu0 0.0
  %4532 = vmatpush1.msra.mxu0 0.0
  %4533 = vmatprep.subr.mxu0 0.0
  %4534 = vmatpush1.msra.mxu0 0.0
  %4535 = vmatprep.subr.mxu0 0.0
  %4536 = vmatpush1.msra.mxu0 0.0
  %4537 = vmatprep.subr.mxu0 0.0
  %4538 = vmatpush1.msra.mxu0 0.0
  %4539 = vmatprep.subr.mxu0 0.0
  %4540 = vmatpush1.msra.mxu0 0.0
  %4541 = vmatprep.subr.mxu0 0.0
  %4542 = vmatpush1.msra.mxu0 0.0
  %4543 = vmatprep.subr.mxu0 0.0
  %4544 = vmatpush1.msra.mxu0 0.0
  %4545 = vmatprep.subr.mxu0 0.0
  %4546 = vmatpush1.msra.mxu0 0.0
  %4547 = vmatprep.mubr.f32.mxu0 0.0
  %4548 = vmatmul.mubr.f32.gmra.mrb[0].mxu0 %v4339
  %v4549 = vpop.f32.mrb[0].mxu0
  %v4550 = vadd.f32 0.0, %v4549
  %v4551 = vpop.f32.mrb[0].mxu0
  %4552 = vdwg.mxu0
  %v4553 = vadd.f32 %v4309, %v4408
  %v4554 = vadd.f32 %v4310, %v4410
  %v4555 = vadd.f32 %v4311, %v4479
  %v4556 = vadd.f32 %v4312, %v4481
  %v4557 = vadd.f32 %v4313, %v4550
  %v4558 = vld [vmem:[%s4] sm:$0xf]
  %4560 = vset.pattern.permute.xlu0 0
  %4561 = vperm.xlu0 %4560, %v4558
  %v4562 = vpop.permute.xlu0 %4561
  %v4564 = vadd.f32 %v4553, %v4562
  %v4565 = vadd.f32 %v4554, %v4562
  %v4566 = vadd.f32 %v4555, %v4562
  %v4567 = vadd.f32 %v4556, %v4562
  %v4568 = vadd.f32 %v4557, %v4562
  %v4569 = vmax.f32 %v4564, 0.0
  %v4570 = vmax.f32 %v4565, 0.0
  %v4571 = vmax.f32 %v4566, 0.0
  %v4572 = vmax.f32 %v4567, 0.0
  %v4573 = vmax.f32 %v4568, 0.0
  %4579 = vrot.lane.b32.xlu0 %v4569, 127
  %v4580 = vpop.permute.xlu0 %4579
  %4581 = vrot.lane.b32.xlu0 %v4570, 127
  %v4582 = vpop.permute.xlu0 %4581
  %4583 = vrot.lane.b32.xlu0 %v4571, 127
  %v4584 = vpop.permute.xlu0 %4583
  %4585 = vrot.lane.b32.xlu0 %v4572, 127
  %v4586 = vpop.permute.xlu0 %4585
  %4587 = vrot.lane.b32.xlu0 %v4573, 127
  %v4588 = vpop.permute.xlu0 %4587
  %v4589 = vsel %vm47, %v4580, %v4582
  %v4590 = vsel %vm47, %v4582, %v4584
  %v4591 = vsel %vm47, %v4584, %v4586
  %v4592 = vsel %vm47, %v4586, %v4588
  %v4598 = vmax.f32 %v4569, %v4589
  %v4599 = vmax.f32 %v4570, %v4590
  %v4600 = vmax.f32 %v4571, %v4591
  %v4601 = vmax.f32 %v4572, %v4592
  %v4602 = vmax.f32 %v4573, %v4588
  %4608 = vrot.lane.b32.xlu0 %v4598, 110
  %v4609 = vpop.permute.xlu0 %4608
  %4610 = vrot.lane.b32.xlu0 %v4599, 110
  %v4611 = vpop.permute.xlu0 %4610
  %4612 = vrot.lane.b32.xlu0 %v4600, 110
  %v4613 = vpop.permute.xlu0 %4612
  %4614 = vrot.lane.b32.xlu0 %v4601, 110
  %v4615 = vpop.permute.xlu0 %4614
  %4616 = vrot.lane.b32.xlu0 %v4602, 110
  %v4617 = vpop.permute.xlu0 %4616
  %v4618 = vsel %vm779, %v4609, %v4611
  %v4619 = vsel %vm779, %v4611, %v4613
  %v4620 = vsel %vm779, %v4613, %v4615
  %v4621 = vsel %vm779, %v4615, %v4617
  %v4627 = vmax.f32 %v4598, %v4618
  %v4628 = vmax.f32 %v4599, %v4619
  %v4629 = vmax.f32 %v4600, %v4620
  %v4630 = vmax.f32 %v4601, %v4621
  %v4631 = vmax.f32 %v4602, %v4617
  %v4632 = vld [vmem:[%s6] sm:$0xff]
  %v4633 = vld [vmem:[%s6 + $0x8] sm:$0xff]
  %v4634 = vld [vmem:[%s6 + $0x10] sm:$0xff]
  %v4635 = vld [vmem:[%s6 + $0x18] sm:$0xff]
  %v4636 = vld [vmem:[%s6 + $0x20] sm:$0xff]
  %v4637 = vld [vmem:[%s6 + $0x28] sm:$0xff]
  %v4638 = vld [vmem:[%s6 + $0x30] sm:$0xff]
  %v4639 = vld [vmem:[%s6 + $0x38] sm:$0xff]
  %v4640 = vld [vmem:[%s6 + $0x40] sm:$0xff]
  %v4641 = vld [vmem:[%s6 + $0x48] sm:$0xff]
  %v4642 = vld [vmem:[%s6 + $0x50] sm:$0xff]
  %v4643 = vld [vmem:[%s6 + $0x58] sm:$0xff]
  %v4644 = vld [vmem:[%s6 + $0x60] sm:$0xff]
  %v4645 = vld [vmem:[%s6 + $0x68] sm:$0xff]
  %v4646 = vld [vmem:[%s6 + $0x70] sm:$0xff]
  %v4647 = vld [vmem:[%s6 + $0x78] sm:$0xff]
  %v4648 = vld [vmem:[%s6 + $0x80] sm:$0xff]
  %v4649 = vld [vmem:[%s6 + $0x88] sm:$0xff]
  %v4650 = vld [vmem:[%s6 + $0x90] sm:$0xff]
  %v4651 = vld [vmem:[%s6 + $0x98] sm:$0xff]
  %v4652 = vld [vmem:[%s6 + $0xa0] sm:$0xff]
  %v4653 = vld [vmem:[%s6 + $0xa8] sm:$0xff]
  %v4654 = vld [vmem:[%s6 + $0xb0] sm:$0xff]
  %v4655 = vld [vmem:[%s6 + $0xb8] sm:$0xff]
  %v4656 = vld [vmem:[%s6 + $0xc0] sm:$0xff]
  %v4657 = vld [vmem:[%s6 + $0xc8] sm:$0xff]
  %v4658 = vld [vmem:[%s6 + $0xd0] sm:$0xff]
  %v4659 = vld [vmem:[%s6 + $0xd8] sm:$0xff]
  %v4660 = vld [vmem:[%s6 + $0xe0] sm:$0xff]
  %v4661 = vld [vmem:[%s6 + $0xe8] sm:$0xff]
  %v4662 = vld [vmem:[%s6 + $0xf0] sm:$0xff]
  %v4663 = vld [vmem:[%s6 + $0xf8] sm:$0xff]
  %v4664 = vld [vmem:[%s6 + $0x100] sm:$0xff]
  %v4665 = vld [vmem:[%s6 + $0x108] sm:$0xff]
  %v4666 = vld [vmem:[%s6 + $0x110] sm:$0xff]
  %v4667 = vld [vmem:[%s6 + $0x118] sm:$0xff]
  %v4668 = vld [vmem:[%s6 + $0x120] sm:$0xff]
  %v4669 = vld [vmem:[%s6 + $0x128] sm:$0xff]
  %v4670 = vld [vmem:[%s6 + $0x130] sm:$0xff]
  %v4671 = vld [vmem:[%s6 + $0x138] sm:$0xff]
  %v4672 = vld [vmem:[%s6 + $0x140] sm:$0xff]
  %v4673 = vld [vmem:[%s6 + $0x148] sm:$0xff]
  %v4674 = vld [vmem:[%s6 + $0x150] sm:$0xff]
  %v4675 = vld [vmem:[%s6 + $0x158] sm:$0xff]
  %v4676 = vld [vmem:[%s6 + $0x160] sm:$0xff]
  %v4677 = vld [vmem:[%s6 + $0x168] sm:$0xff]
  %v4678 = vld [vmem:[%s6 + $0x170] sm:$0xff]
  %v4679 = vld [vmem:[%s6 + $0x178] sm:$0xff]
  %v4680 = vld [vmem:[%s6 + $0x180] sm:$0xff]
  %v4681 = vld [vmem:[%s6 + $0x188] sm:$0xff]
  %v4682 = vld [vmem:[%s6 + $0x190] sm:$0xff]
  %v4683 = vld [vmem:[%s6 + $0x198] sm:$0xff]
  %v4684 = vld [vmem:[%s6 + $0x1a0] sm:$0xff]
  %v4685 = vld [vmem:[%s6 + $0x1a8] sm:$0xff]
  %v4686 = vld [vmem:[%s6 + $0x1b0] sm:$0xff]
  %v4687 = vld [vmem:[%s6 + $0x1b8] sm:$0xff]
  %v4688 = vld [vmem:[%s6 + $0x1c0] sm:$0xff]
  %v4689 = vld [vmem:[%s6 + $0x1c8] sm:$0xff]
  %v4690 = vld [vmem:[%s6 + $0x1d0] sm:$0xff]
  %v4691 = vld [vmem:[%s6 + $0x1d8] sm:$0xff]
  %v4692 = vld [vmem:[%s6 + $0x1e0] sm:$0xff]
  %v4693 = vld [vmem:[%s6 + $0x1e8] sm:$0xff]
  %v4694 = vld [vmem:[%s6 + $0x1f0] sm:$0xff]
  %v4695 = vld [vmem:[%s6 + $0x1f8] sm:$0xff]
  %v4696 = vld [vmem:[%s6 + $0x200] sm:$0xff]
  %v4697 = vld [vmem:[%s6 + $0x208] sm:$0xff]
  %v4698 = vld [vmem:[%s6 + $0x210] sm:$0xff]
  %v4699 = vld [vmem:[%s6 + $0x218] sm:$0xff]
  %v4700 = vld [vmem:[%s6 + $0x220] sm:$0xff]
  %v4701 = vld [vmem:[%s6 + $0x228] sm:$0xff]
  %v4702 = vld [vmem:[%s6 + $0x230] sm:$0xff]
  %v4703 = vld [vmem:[%s6 + $0x238] sm:$0xff]
  %v4704 = vld [vmem:[%s6 + $0x240] sm:$0xff]
  %v4705 = vld [vmem:[%s6 + $0x248] sm:$0x7f]
  %vm4706 = vcmask 646144
  %v4708 = vsel %vm4706, %v4631, 0
  %vm4710 = vcmask 1046528
  %v4712 = vsel %vm4710, %v4705, 0
  %4714 = vmatprep.subr.mxu0 0.0
  %4715 = vmatpush1.msra.mxu0 %v4632
  %4716 = vmatprep.subr.mxu0 0.0
  %4717 = vmatpush1.msra.mxu0 %v4633
  %4718 = vmatprep.subr.mxu0 0.0
  %4719 = vmatpush1.msra.mxu0 %v4634
  %4720 = vmatprep.subr.mxu0 0.0
  %4721 = vmatpush1.msra.mxu0 %v4635
  %4722 = vmatprep.subr.mxu0 0.0
  %4723 = vmatpush1.msra.mxu0 %v4636
  %4724 = vmatprep.subr.mxu0 0.0
  %4725 = vmatpush1.msra.mxu0 %v4637
  %4726 = vmatprep.subr.mxu0 0.0
  %4727 = vmatpush1.msra.mxu0 %v4638
  %4728 = vmatprep.subr.mxu0 0.0
  %4729 = vmatpush1.msra.mxu0 %v4639
  %4730 = vmatprep.subr.mxu0 0.0
  %4731 = vmatpush1.msra.mxu0 %v4640
  %4732 = vmatprep.subr.mxu0 0.0
  %4733 = vmatpush1.msra.mxu0 %v4641
  %4734 = vmatprep.subr.mxu0 0.0
  %4735 = vmatpush1.msra.mxu0 %v4642
  %4736 = vmatprep.subr.mxu0 0.0
  %4737 = vmatpush1.msra.mxu0 %v4643
  %4738 = vmatprep.subr.mxu0 0.0
  %4739 = vmatpush1.msra.mxu0 %v4644
  %4740 = vmatprep.subr.mxu0 0.0
  %4741 = vmatpush1.msra.mxu0 %v4645
  %4742 = vmatprep.subr.mxu0 0.0
  %4743 = vmatpush1.msra.mxu0 %v4646
  %4744 = vmatprep.subr.mxu0 0.0
  %4745 = vmatpush1.msra.mxu0 %v4647
  %4746 = vmatprep.subr.mxu0 0.0
  %4747 = vmatpush1.msra.mxu0 %v4648
  %4748 = vmatprep.subr.mxu0 0.0
  %4749 = vmatpush1.msra.mxu0 %v4649
  %4750 = vmatprep.subr.mxu0 0.0
  %4751 = vmatpush1.msra.mxu0 %v4650
  %4752 = vmatprep.subr.mxu0 0.0
  %4753 = vmatpush1.msra.mxu0 %v4651
  %4754 = vmatprep.subr.mxu0 0.0
  %4755 = vmatpush1.msra.mxu0 %v4652
  %4756 = vmatprep.subr.mxu0 0.0
  %4757 = vmatpush1.msra.mxu0 %v4653
  %4758 = vmatprep.subr.mxu0 0.0
  %4759 = vmatpush1.msra.mxu0 %v4654
  %4760 = vmatprep.subr.mxu0 0.0
  %4761 = vmatpush1.msra.mxu0 %v4655
  %4762 = vmatprep.subr.mxu0 0.0
  %4763 = vmatpush1.msra.mxu0 %v4656
  %4764 = vmatprep.subr.mxu0 0.0
  %4765 = vmatpush1.msra.mxu0 %v4657
  %4766 = vmatprep.subr.mxu0 0.0
  %4767 = vmatpush1.msra.mxu0 %v4658
  %4768 = vmatprep.subr.mxu0 0.0
  %4769 = vmatpush1.msra.mxu0 %v4659
  %4770 = vmatprep.subr.mxu0 0.0
  %4771 = vmatpush1.msra.mxu0 %v4660
  %4772 = vmatprep.subr.mxu0 0.0
  %4773 = vmatpush1.msra.mxu0 %v4661
  %4774 = vmatprep.subr.mxu0 0.0
  %4775 = vmatpush1.msra.mxu0 %v4662
  %4776 = vmatprep.subr.mxu0 0.0
  %4777 = vmatpush1.msra.mxu0 %v4663
  %4778 = vmatprep.mubr.f32.mxu0 %v4628
  %4779 = vmatmul.mubr.f32.gmra.mrb[0].mxu0 %v4627
  %v4780 = vpop.f32.mrb[0].mxu0
  %v4781 = vadd.f32 0.0, %v4780
  %v4782 = vpop.f32.mrb[0].mxu0
  %4783 = vdwg.mxu0
  %4784 = vmatprep.subr.mxu0 0.0
  %4785 = vmatpush1.msra.mxu0 %v4664
  %4786 = vmatprep.subr.mxu0 0.0
  %4787 = vmatpush1.msra.mxu0 %v4665
  %4788 = vmatprep.subr.mxu0 0.0
  %4789 = vmatpush1.msra.mxu0 %v4666
  %4790 = vmatprep.subr.mxu0 0.0
  %4791 = vmatpush1.msra.mxu0 %v4667
  %4792 = vmatprep.subr.mxu0 0.0
  %4793 = vmatpush1.msra.mxu0 %v4668
  %4794 = vmatprep.subr.mxu0 0.0
  %4795 = vmatpush1.msra.mxu0 %v4669
  %4796 = vmatprep.subr.mxu0 0.0
  %4797 = vmatpush1.msra.mxu0 %v4670
  %4798 = vmatprep.subr.mxu0 0.0
  %4799 = vmatpush1.msra.mxu0 %v4671
  %4800 = vmatprep.subr.mxu0 0.0
  %4801 = vmatpush1.msra.mxu0 %v4672
  %4802 = vmatprep.subr.mxu0 0.0
  %4803 = vmatpush1.msra.mxu0 %v4673
  %4804 = vmatprep.subr.mxu0 0.0
  %4805 = vmatpush1.msra.mxu0 %v4674
  %4806 = vmatprep.subr.mxu0 0.0
  %4807 = vmatpush1.msra.mxu0 %v4675
  %4808 = vmatprep.subr.mxu0 0.0
  %4809 = vmatpush1.msra.mxu0 %v4676
  %4810 = vmatprep.subr.mxu0 0.0
  %4811 = vmatpush1.msra.mxu0 %v4677
  %4812 = vmatprep.subr.mxu0 0.0
  %4813 = vmatpush1.msra.mxu0 %v4678
  %4814 = vmatprep.subr.mxu0 0.0
  %4815 = vmatpush1.msra.mxu0 %v4679
  %4816 = vmatprep.subr.mxu0 0.0
  %4817 = vmatpush1.msra.mxu0 %v4680
  %4818 = vmatprep.subr.mxu0 0.0
  %4819 = vmatpush1.msra.mxu0 %v4681
  %4820 = vmatprep.subr.mxu0 0.0
  %4821 = vmatpush1.msra.mxu0 %v4682
  %4822 = vmatprep.subr.mxu0 0.0
  %4823 = vmatpush1.msra.mxu0 %v4683
  %4824 = vmatprep.subr.mxu0 0.0
  %4825 = vmatpush1.msra.mxu0 %v4684
  %4826 = vmatprep.subr.mxu0 0.0
  %4827 = vmatpush1.msra.mxu0 %v4685
  %4828 = vmatprep.subr.mxu0 0.0
  %4829 = vmatpush1.msra.mxu0 %v4686
  %4830 = vmatprep.subr.mxu0 0.0
  %4831 = vmatpush1.msra.mxu0 %v4687
  %4832 = vmatprep.subr.mxu0 0.0
  %4833 = vmatpush1.msra.mxu0 %v4688
  %4834 = vmatprep.subr.mxu0 0.0
  %4835 = vmatpush1.msra.mxu0 %v4689
  %4836 = vmatprep.subr.mxu0 0.0
  %4837 = vmatpush1.msra.mxu0 %v4690
  %4838 = vmatprep.subr.mxu0 0.0
  %4839 = vmatpush1.msra.mxu0 %v4691
  %4840 = vmatprep.subr.mxu0 0.0
  %4841 = vmatpush1.msra.mxu0 %v4692
  %4842 = vmatprep.subr.mxu0 0.0
  %4843 = vmatpush1.msra.mxu0 %v4693
  %4844 = vmatprep.subr.mxu0 0.0
  %4845 = vmatpush1.msra.mxu0 %v4694
  %4846 = vmatprep.subr.mxu0 0.0
  %4847 = vmatpush1.msra.mxu0 %v4695
  %4848 = vmatprep.mubr.f32.mxu0 %v4630
  %4849 = vmatmul.mubr.f32.gmra.mrb[0].mxu0 %v4629
  %v4850 = vpop.f32.mrb[0].mxu0
  %v4851 = vadd.f32 %v4781, %v4850
  %v4852 = vpop.f32.mrb[0].mxu0
  %4853 = vdwg.mxu0
  %4854 = vmatprep.subr.mxu0 0.0
  %4855 = vmatpush1.msra.mxu0 %v4696
  %4856 = vmatprep.subr.mxu0 0.0
  %4857 = vmatpush1.msra.mxu0 %v4697
  %4858 = vmatprep.subr.mxu0 0.0
  %4859 = vmatpush1.msra.mxu0 %v4698
  %4860 = vmatprep.subr.mxu0 0.0
  %4861 = vmatpush1.msra.mxu0 %v4699
  %4862 = vmatprep.subr.mxu0 0.0
  %4863 = vmatpush1.msra.mxu0 %v4700
  %4864 = vmatprep.subr.mxu0 0.0
  %4865 = vmatpush1.msra.mxu0 %v4701
  %4866 = vmatprep.subr.mxu0 0.0
  %4867 = vmatpush1.msra.mxu0 %v4702
  %4868 = vmatprep.subr.mxu0 0.0
  %4869 = vmatpush1.msra.mxu0 %v4703
  %4870 = vmatprep.subr.mxu0 0.0
  %4871 = vmatpush1.msra.mxu0 %v4704
  %4872 = vmatprep.subr.mxu0 0.0
  %4873 = vmatpush1.msra.mxu0 %v4712
  %4874 = vmatprep.subr.mxu0 0.0
  %4875 = vmatpush1.msra.mxu0 0.0
  %4876 = vmatprep.subr.mxu0 0.0
  %4877 = vmatpush1.msra.mxu0 0.0
  %4878 = vmatprep.subr.mxu0 0.0
  %4879 = vmatpush1.msra.mxu0 0.0
  %4880 = vmatprep.subr.mxu0 0.0
  %4881 = vmatpush1.msra.mxu0 0.0
  %4882 = vmatprep.subr.mxu0 0.0
  %4883 = vmatpush1.msra.mxu0 0.0
  %4884 = vmatprep.subr.mxu0 0.0
  %4885 = vmatpush1.msra.mxu0 0.0
  %4886 = vmatprep.subr.mxu0 0.0
  %4887 = vmatpush1.msra.mxu0 0.0
  %4888 = vmatprep.subr.mxu0 0.0
  %4889 = vmatpush1.msra.mxu0 0.0
  %4890 = vmatprep.subr.mxu0 0.0
  %4891 = vmatpush1.msra.mxu0 0.0
  %4892 = vmatprep.subr.mxu0 0.0
  %4893 = vmatpush1.msra.mxu0 0.0
  %4894 = vmatprep.subr.mxu0 0.0
  %4895 = vmatpush1.msra.mxu0 0.0
  %4896 = vmatprep.subr.mxu0 0.0
  %4897 = vmatpush1.msra.mxu0 0.0
  %4898 = vmatprep.subr.mxu0 0.0
  %4899 = vmatpush1.msra.mxu0 0.0
  %4900 = vmatprep.subr.mxu0 0.0
  %4901 = vmatpush1.msra.mxu0 0.0
  %4902 = vmatprep.subr.mxu0 0.0
  %4903 = vmatpush1.msra.mxu0 0.0
  %4904 = vmatprep.subr.mxu0 0.0
  %4905 = vmatpush1.msra.mxu0 0.0
  %4906 = vmatprep.subr.mxu0 0.0
  %4907 = vmatpush1.msra.mxu0 0.0
  %4908 = vmatprep.subr.mxu0 0.0
  %4909 = vmatpush1.msra.mxu0 0.0
  %4910 = vmatprep.subr.mxu0 0.0
  %4911 = vmatpush1.msra.mxu0 0.0
  %4912 = vmatprep.subr.mxu0 0.0
  %4913 = vmatpush1.msra.mxu0 0.0
  %4914 = vmatprep.subr.mxu0 0.0
  %4915 = vmatpush1.msra.mxu0 0.0
  %4916 = vmatprep.subr.mxu0 0.0
  %4917 = vmatpush1.msra.mxu0 0.0
  %4918 = vmatprep.mubr.f32.mxu0 0.0
  %4919 = vmatmul.mubr.f32.gmra.mrb[0].mxu0 %v4708
  %v4920 = vpop.f32.mrb[0].mxu0
  %v4921 = vadd.f32 %v4851, %v4920
  %v4922 = vpop.f32.mrb[0].mxu0
  %4923 = vdwg.mxu0
  %4924 = vst [vmem:[%s7] sm:$0xf] %v4921
  // Predicated region
  $region30: #{basic_block.1} parent=0 // pred_check
    _
  $region31: #{basic_block.1} parent=0 // pred_check_branch
    %4926 = sbr.rel (0) target = $region33
  $region32: #{basic_block.1} parent=0 // pred_region
    _
  $region33: #{basic_block.1} parent=0 // pred_fallthru
    _
  // Predicated region
  $region34: #{basic_block.1} parent=0 // pred_check
    _
  $region35: #{basic_block.1} parent=0 // pred_check_branch
    %4928 = sbr.rel (0) target = $region37
  $region36: #{basic_block.1} parent=0 // pred_region
    _
  $region37: #{basic_block.1} parent=0 // pred_fallthru
    _

</llo_original>
